<compile_context>
chip_gen: v7x
topology: tpu7x:2x2x1
jax: 0.10.0
libtpu: 0.0.40
codegen_flags: <defaults>
</compile_context>

<pallas_src>
import functools

import jax
import jax.numpy as jnp
from jax import lax
from jax.experimental import pallas as pl
from jax.experimental.pallas import tpu as pltpu


def lstm_kernel(
    x_ref,       # (T, I)
    wih_ref,     # (I, 4*Hp)  = W_ih^T, gate order [i,f,g,o], each gate padded to Hp lanes
    whh_ref,     # (Hp, 4*Hp) = W_hh^T, same padding (pad rows/cols zero)
    b_ref,       # (1, 4*Hp)  = b_ih + b_hh, padded
    gamma_ref,   # (1, Hp)    LayerNorm weight, pad lanes zero
    beta_ref,    # (1, Hp)    LayerNorm bias, pad lanes zero
    wfc_ref,     # (Hp, Op)   fc.weight^T, pad rows/cols zero
    bfc_ref,     # (1, Op)    fc.bias, pad cols zero
    out_ref,     # (T, Op)
    *,
    hidden_size,
):
    T = x_ref.shape[0]
    Hp = whh_ref.shape[0]          # 128-lane-aligned hidden width
    H = hidden_size                # real hidden size (64)

    # ---- hoisted input projection + bias: one (T,I)@(I,4Hp) MXU op, off the chain
    u = jnp.dot(x_ref[...], wih_ref[...], preferred_element_type=jnp.float32) + b_ref[...]

    # W_hh loaded & cast once; stays resident across the unrolled steps.
    whh16 = whh_ref[...].astype(jnp.bfloat16)
    gamma = gamma_ref[...]
    beta = beta_ref[...]
    wfc = wfc_ref[...]
    bfc = bfc_ref[...]

    lane = lax.broadcasted_iota(jnp.int32, (1, Hp), 1)
    valid = lane < H
    inv_h = 1.0 / H
    eps = 1e-5

    h = jnp.zeros((1, Hp), jnp.float32)
    c = jnp.zeros((1, Hp), jnp.float32)

    # ---- LSTM recurrence, fully unrolled (T is a static Python int).
    # Pad lanes: gates_pad = 0 -> i=f=o=0.5, g=0 -> c_pad, h_pad stay exactly 0.
    for t in range(T):
        gates = u[t:t + 1, :] + jnp.dot(
            h.astype(jnp.bfloat16), whh16, preferred_element_type=jnp.float32)
        i_g = jax.nn.sigmoid(gates[:, 0 * Hp:1 * Hp])   # 128-lane-aligned vreg picks
        f_g = jax.nn.sigmoid(gates[:, 1 * Hp:2 * Hp])
        g_g = jnp.tanh(gates[:, 2 * Hp:3 * Hp])
        o_g = jax.nn.sigmoid(gates[:, 3 * Hp:4 * Hp])
        c = f_g * c + i_g * g_g
        h = o_g * jnp.tanh(c)

        # ---- per-row tail (LayerNorm over the 64 valid lanes, FC, softplus).
        # Off the h->h chain: scheduled as filler under the next step's latency.
        mu = jnp.sum(h, axis=-1, keepdims=True) * inv_h         # pad lanes of h are 0
        diff = jnp.where(valid, h - mu, 0.0)                    # mask pad lanes
        var = jnp.sum(diff * diff, axis=-1, keepdims=True) * inv_h
        y = diff * lax.rsqrt(var + eps) * gamma + beta          # pad lanes -> 0
        # TODO(synk): nn.Dropout is identity in eval mode (and nn.LSTM dropout is
        #             inert for a single layer), so dropout is implemented as identity.
        logits = jnp.dot(y, wfc, preferred_element_type=jnp.float32) + bfc
        out_ref[t:t + 1, :] = jnp.logaddexp(0.0, logits)        # stable softplus


@functools.partial(jax.jit, static_argnames=("hidden_size", "output_size"))
def lstm_forward(x, params, hidden_size, output_size):
    T = x.shape[0]
    Op = params["wfc"].shape[1]

    vmem = pl.BlockSpec(memory_space=pltpu.MemorySpace.VMEM)
    args = (
        x,
        params["wih"], params["whh"], params["b"],
        params["gamma"], params["beta"],
        params["wfc"], params["bfc"],
    )

    out_padded = pl.pallas_call(
        functools.partial(lstm_kernel, hidden_size=hidden_size),
        out_shape=jax.ShapeDtypeStruct((T, Op), jnp.float32),
        in_specs=[vmem] * len(args),
        out_specs=vmem,
    )(*args)

    return out_padded[:, :output_size]


def init_params(key, input_size, hidden_size, output_size, lane=128):
    """Deterministic init mirroring PyTorch defaults: U(-1/sqrt(H), 1/sqrt(H)),
    with each gate's columns padded to a 128-lane block ([g*Hp : g*Hp+H] valid)."""
    H, I, O = hidden_size, input_size, output_size
    Hp = ((H + lane - 1) // lane) * lane
    Op = ((O + lane - 1) // lane) * lane
    ks = jax.random.split(key, 6)
    s = 1.0 / jnp.sqrt(H)

    def u(k, shape):
        return jax.random.uniform(k, shape, jnp.float32, -s, s)

    # unpadded PyTorch-layout weights (transposed to (in, out)), gate order [i,f,g,o]
    wih = u(ks[0], (I, 4 * H))
    whh = u(ks[1], (H, 4 * H))
    b = u(ks[2], (1, 4 * H)) + u(ks[3], (1, 4 * H))   # b_ih + b_hh
    wfc = u(ks[4], (H, O))
    bfc = u(ks[5], (1, O))

    def pad_gate_cols(w, rows):
        out = jnp.zeros((rows, 4 * Hp), jnp.float32)
        for g in range(4):
            out = out.at[:, g * Hp:g * Hp + H].set(w[:, g * H:(g + 1) * H])
        return out

    wih_p = pad_gate_cols(wih, I)
    whh_p = jnp.zeros((Hp, 4 * Hp), jnp.float32)
    for g in range(4):
        whh_p = whh_p.at[:H, g * Hp:g * Hp + H].set(whh[:, g * H:(g + 1) * H])
    b_p = pad_gate_cols(b, 1)

    gamma = jnp.zeros((1, Hp), jnp.float32).at[:, :H].set(1.0)
    beta = jnp.zeros((1, Hp), jnp.float32)
    wfc_p = jnp.zeros((Hp, Op), jnp.float32).at[:H, :O].set(wfc)
    bfc_p = jnp.zeros((1, Op), jnp.float32).at[:, :O].set(bfc)

    return {
        "wih": wih_p, "whh": whh_p, "b": b_p,
        "gamma": gamma, "beta": beta,
        "wfc": wfc_p, "bfc": bfc_p,
    }


if __name__ == "__main__":
    INPUT_SIZE = 20
    HIDDEN_SIZE = 64
    OUTPUT_SIZE = 61
    SEQ_LEN = 8

    key = jax.random.PRNGKey(0)
    k_x, k_p = jax.random.split(key)

    x = jax.random.normal(k_x, (SEQ_LEN, INPUT_SIZE), dtype=jnp.float32)
    params = init_params(k_p, INPUT_SIZE, HIDDEN_SIZE, OUTPUT_SIZE)

    out = lstm_forward(x, params, HIDDEN_SIZE, OUTPUT_SIZE)
    jax.block_until_ready(out)

    assert out.shape == (SEQ_LEN, OUTPUT_SIZE), out.shape
    assert bool(jnp.all(jnp.isfinite(out)))
    assert bool(jnp.all(out >= 0.0))  # softplus output is non-negative
    print("KERNEL_OK")
</pallas_src>

<mosaic_0001>
module attributes {stable_mosaic.version = 11 : i64} {
  func.func @lstm_kernel(%arg0: memref<8x20xf32, #tpu.memory_space<vmem>>, %arg1: memref<20x512xf32, #tpu.memory_space<vmem>>, %arg2: memref<128x512xf32, #tpu.memory_space<vmem>>, %arg3: memref<1x512xf32, #tpu.memory_space<vmem>>, %arg4: memref<1x128xf32, #tpu.memory_space<vmem>>, %arg5: memref<1x128xf32, #tpu.memory_space<vmem>>, %arg6: memref<128x128xf32, #tpu.memory_space<vmem>>, %arg7: memref<1x128xf32, #tpu.memory_space<vmem>>, %arg8: memref<8x128xf32, #tpu.memory_space<vmem>>) attributes {dimension_semantics = [], scalar_prefetch = 0 : i64, scratch_operands = 0 : i64, tpu.core_type = #tpu.core_type<tc>} {
    %c0 = arith.constant 0 : index
    %c0_0 = arith.constant 0 : index
    %0 = vector.load %arg0[%c0, %c0_0] : memref<8x20xf32, #tpu.memory_space<vmem>>, vector<8x20xf32>
    %c0_1 = arith.constant 0 : index
    %c0_2 = arith.constant 0 : index
    %1 = vector.load %arg1[%c0_1, %c0_2] : memref<20x512xf32, #tpu.memory_space<vmem>>, vector<20x512xf32>
    %cst = arith.constant dense<0.000000e+00> : vector<8x512xf32>
    %2 = tpu.matmul %0, %1, %cst {dimension_numbers = #tpu.dot_dimension_numbers<[1], [0], [0], [1], [0, 0, 1, 1], [], []>} : vector<8x20xf32>, vector<20x512xf32>, vector<8x512xf32> -> vector<8x512xf32>
    %c0_3 = arith.constant 0 : index
    %c0_4 = arith.constant 0 : index
    %3 = vector.load %arg3[%c0_3, %c0_4] : memref<1x512xf32, #tpu.memory_space<vmem>>, vector<1x512xf32>
    %4 = vector.broadcast %3 : vector<1x512xf32> to vector<8x512xf32>
    %5 = arith.addf %2, %4 : vector<8x512xf32>
    %c0_5 = arith.constant 0 : index
    %c0_6 = arith.constant 0 : index
    %6 = vector.load %arg2[%c0_5, %c0_6] : memref<128x512xf32, #tpu.memory_space<vmem>>, vector<128x512xf32>
    %7 = arith.truncf %6 : vector<128x512xf32> to vector<128x512xbf16>
    %c0_7 = arith.constant 0 : index
    %c0_8 = arith.constant 0 : index
    %8 = vector.load %arg4[%c0_7, %c0_8] : memref<1x128xf32, #tpu.memory_space<vmem>>, vector<1x128xf32>
    %c0_9 = arith.constant 0 : index
    %c0_10 = arith.constant 0 : index
    %9 = vector.load %arg5[%c0_9, %c0_10] : memref<1x128xf32, #tpu.memory_space<vmem>>, vector<1x128xf32>
    %c0_11 = arith.constant 0 : index
    %c0_12 = arith.constant 0 : index
    %10 = vector.load %arg6[%c0_11, %c0_12] : memref<128x128xf32, #tpu.memory_space<vmem>>, vector<128x128xf32>
    %c0_13 = arith.constant 0 : index
    %c0_14 = arith.constant 0 : index
    %11 = vector.load %arg7[%c0_13, %c0_14] : memref<1x128xf32, #tpu.memory_space<vmem>>, vector<1x128xf32>
    %12 = tpu.iota {dimensions = array<i32: 1>} : vector<1x128xi32>
    %c64_i32 = arith.constant 64 : i32
    %13 = vector.broadcast %c64_i32 : i32 to vector<1x128xi32>
    %14 = arith.cmpi slt, %12, %13 : vector<1x128xi32>
    %cst_15 = arith.constant 0.000000e+00 : f32
    %15 = vector.broadcast %cst_15 : f32 to vector<1x128xf32>
    %cst_16 = arith.constant 0.000000e+00 : f32
    %16 = vector.broadcast %cst_16 : f32 to vector<1x128xf32>
    %17 = vector.extract_strided_slice %5 {offsets = [0, 0], sizes = [1, 512], strides = [1, 1]} : vector<8x512xf32> to vector<1x512xf32>
    %18 = arith.truncf %15 : vector<1x128xf32> to vector<1x128xbf16>
    %cst_17 = arith.constant dense<0.000000e+00> : vector<1x512xf32>
    %19 = tpu.matmul %18, %7, %cst_17 {dimension_numbers = #tpu.dot_dimension_numbers<[1], [0], [0], [1], [0, 0, 1, 1], [], []>} : vector<1x128xbf16>, vector<128x512xbf16>, vector<1x512xf32> -> vector<1x512xf32>
    %20 = arith.addf %17, %19 : vector<1x512xf32>
    %21 = vector.extract_strided_slice %20 {offsets = [0, 0], sizes = [1, 128], strides = [1, 1]} : vector<1x512xf32> to vector<1x128xf32>
    %22 = arith.negf %21 : vector<1x128xf32>
    %23 = math.exp %22 : vector<1x128xf32>
    %cst_18 = arith.constant 1.000000e+00 : f32
    %24 = vector.broadcast %cst_18 : f32 to vector<1x128xf32>
    %25 = arith.addf %24, %23 : vector<1x128xf32>
    %26 = arith.divf %24, %25 : vector<1x128xf32>
    %27 = vector.extract_strided_slice %20 {offsets = [0, 128], sizes = [1, 128], strides = [1, 1]} : vector<1x512xf32> to vector<1x128xf32>
    %28 = arith.negf %27 : vector<1x128xf32>
    %29 = math.exp %28 : vector<1x128xf32>
    %cst_19 = arith.constant 1.000000e+00 : f32
    %30 = vector.broadcast %cst_19 : f32 to vector<1x128xf32>
    %31 = arith.addf %30, %29 : vector<1x128xf32>
    %32 = arith.divf %30, %31 : vector<1x128xf32>
    %33 = vector.extract_strided_slice %20 {offsets = [0, 256], sizes = [1, 128], strides = [1, 1]} : vector<1x512xf32> to vector<1x128xf32>
    %34 = math.tanh %33 : vector<1x128xf32>
    %35 = vector.extract_strided_slice %20 {offsets = [0, 384], sizes = [1, 128], strides = [1, 1]} : vector<1x512xf32> to vector<1x128xf32>
    %36 = arith.negf %35 : vector<1x128xf32>
    %37 = math.exp %36 : vector<1x128xf32>
    %cst_20 = arith.constant 1.000000e+00 : f32
    %38 = vector.broadcast %cst_20 : f32 to vector<1x128xf32>
    %39 = arith.addf %38, %37 : vector<1x128xf32>
    %40 = arith.divf %38, %39 : vector<1x128xf32>
    %41 = arith.mulf %32, %16 : vector<1x128xf32>
    %42 = arith.mulf %26, %34 : vector<1x128xf32>
    %43 = arith.addf %41, %42 : vector<1x128xf32>
    %44 = math.tanh %43 : vector<1x128xf32>
    %45 = arith.mulf %40, %44 : vector<1x128xf32>
    %cst_21 = arith.constant dense<0.000000e+00> : vector<1xf32>
    %46 = vector.multi_reduction <add>, %45, %cst_21 [1] : vector<1x128xf32> to vector<1xf32>
    %47 = vector.shape_cast %46 : vector<1xf32> to vector<1x1xf32>
    %cst_22 = arith.constant 1.562500e-02 : f32
    %48 = vector.broadcast %cst_22 : f32 to vector<1x1xf32>
    %49 = arith.mulf %47, %48 : vector<1x1xf32>
    %50 = vector.broadcast %49 : vector<1x1xf32> to vector<1x128xf32>
    %51 = arith.subf %45, %50 : vector<1x128xf32>
    %cst_23 = arith.constant 0.000000e+00 : f32
    %52 = vector.broadcast %cst_23 : f32 to vector<1x128xf32>
    %53 = arith.select %14, %51, %52 : vector<1x128xi1>, vector<1x128xf32>
    %54 = arith.mulf %53, %53 : vector<1x128xf32>
    %cst_24 = arith.constant dense<0.000000e+00> : vector<1xf32>
    %55 = vector.multi_reduction <add>, %54, %cst_24 [1] : vector<1x128xf32> to vector<1xf32>
    %56 = vector.shape_cast %55 : vector<1xf32> to vector<1x1xf32>
    %cst_25 = arith.constant 1.562500e-02 : f32
    %57 = vector.broadcast %cst_25 : f32 to vector<1x1xf32>
    %58 = arith.mulf %56, %57 : vector<1x1xf32>
    %cst_26 = arith.constant 9.99999974E-6 : f32
    %59 = vector.broadcast %cst_26 : f32 to vector<1x1xf32>
    %60 = arith.addf %58, %59 : vector<1x1xf32>
    %61 = math.rsqrt %60 : vector<1x1xf32>
    %62 = vector.broadcast %61 : vector<1x1xf32> to vector<1x128xf32>
    %63 = arith.mulf %53, %62 : vector<1x128xf32>
    %64 = arith.mulf %63, %8 : vector<1x128xf32>
    %65 = arith.addf %64, %9 : vector<1x128xf32>
    %cst_27 = arith.constant dense<0.000000e+00> : vector<1x128xf32>
    %66 = tpu.matmul %65, %10, %cst_27 {dimension_numbers = #tpu.dot_dimension_numbers<[1], [0], [0], [1], [0, 0, 1, 1], [], []>} : vector<1x128xf32>, vector<128x128xf32>, vector<1x128xf32> -> vector<1x128xf32>
    %67 = arith.addf %66, %11 : vector<1x128xf32>
    %cst_28 = arith.constant 0.000000e+00 : f32
    %68 = vector.broadcast %cst_28 : f32 to vector<1x128xf32>
    %69 = arith.maximumf %68, %67 : vector<1x128xf32>
    %70 = vector.broadcast %cst_28 : f32 to vector<1x128xf32>
    %71 = arith.subf %70, %67 : vector<1x128xf32>
    %72 = arith.cmpf one, %71, %71 : vector<1x128xf32>
    %73 = vector.broadcast %cst_28 : f32 to vector<1x128xf32>
    %74 = arith.addf %73, %67 : vector<1x128xf32>
    %75 = math.absf %71 : vector<1x128xf32>
    %cst_29 = arith.constant 0.000000e+00 : f32
    %76 = vector.broadcast %cst_29 : f32 to vector<1x128xf32>
    %77 = arith.subf %76, %75 : vector<1x128xf32>
    %78 = math.exp %77 : vector<1x128xf32>
    %79 = math.log1p %78 : vector<1x128xf32>
    %80 = arith.addf %69, %79 : vector<1x128xf32>
    %81 = arith.select %72, %74, %80 : vector<1x128xi1>, vector<1x128xf32>
    %c0_30 = arith.constant 0 : index
    %c0_31 = arith.constant 0 : index
    %82 = vector.load %arg8[%c0_30, %c0_31] : memref<8x128xf32, #tpu.memory_space<vmem>>, vector<1x128xf32>
    tpu.vector_store %arg8[%c0_30, %c0_31], %81 {strides = array<i32>} : memref<8x128xf32, #tpu.memory_space<vmem>>, vector<1x128xf32>,
    %83 = vector.extract_strided_slice %5 {offsets = [1, 0], sizes = [1, 512], strides = [1, 1]} : vector<8x512xf32> to vector<1x512xf32>
    %84 = arith.truncf %45 : vector<1x128xf32> to vector<1x128xbf16>
    %cst_32 = arith.constant dense<0.000000e+00> : vector<1x512xf32>
    %85 = tpu.matmul %84, %7, %cst_32 {dimension_numbers = #tpu.dot_dimension_numbers<[1], [0], [0], [1], [0, 0, 1, 1], [], []>} : vector<1x128xbf16>, vector<128x512xbf16>, vector<1x512xf32> -> vector<1x512xf32>
    %86 = arith.addf %83, %85 : vector<1x512xf32>
    %87 = vector.extract_strided_slice %86 {offsets = [0, 0], sizes = [1, 128], strides = [1, 1]} : vector<1x512xf32> to vector<1x128xf32>
    %88 = arith.negf %87 : vector<1x128xf32>
    %89 = math.exp %88 : vector<1x128xf32>
    %cst_33 = arith.constant 1.000000e+00 : f32
    %90 = vector.broadcast %cst_33 : f32 to vector<1x128xf32>
    %91 = arith.addf %90, %89 : vector<1x128xf32>
    %92 = arith.divf %90, %91 : vector<1x128xf32>
    %93 = vector.extract_strided_slice %86 {offsets = [0, 128], sizes = [1, 128], strides = [1, 1]} : vector<1x512xf32> to vector<1x128xf32>
    %94 = arith.negf %93 : vector<1x128xf32>
    %95 = math.exp %94 : vector<1x128xf32>
    %cst_34 = arith.constant 1.000000e+00 : f32
    %96 = vector.broadcast %cst_34 : f32 to vector<1x128xf32>
    %97 = arith.addf %96, %95 : vector<1x128xf32>
    %98 = arith.divf %96, %97 : vector<1x128xf32>
    %99 = vector.extract_strided_slice %86 {offsets = [0, 256], sizes = [1, 128], strides = [1, 1]} : vector<1x512xf32> to vector<1x128xf32>
    %100 = math.tanh %99 : vector<1x128xf32>
    %101 = vector.extract_strided_slice %86 {offsets = [0, 384], sizes = [1, 128], strides = [1, 1]} : vector<1x512xf32> to vector<1x128xf32>
    %102 = arith.negf %101 : vector<1x128xf32>
    %103 = math.exp %102 : vector<1x128xf32>
    %cst_35 = arith.constant 1.000000e+00 : f32
    %104 = vector.broadcast %cst_35 : f32 to vector<1x128xf32>
    %105 = arith.addf %104, %103 : vector<1x128xf32>
    %106 = arith.divf %104, %105 : vector<1x128xf32>
    %107 = arith.mulf %98, %43 : vector<1x128xf32>
    %108 = arith.mulf %92, %100 : vector<1x128xf32>
    %109 = arith.addf %107, %108 : vector<1x128xf32>
    %110 = math.tanh %109 : vector<1x128xf32>
    %111 = arith.mulf %106, %110 : vector<1x128xf32>
    %cst_36 = arith.constant dense<0.000000e+00> : vector<1xf32>
    %112 = vector.multi_reduction <add>, %111, %cst_36 [1] : vector<1x128xf32> to vector<1xf32>
    %113 = vector.shape_cast %112 : vector<1xf32> to vector<1x1xf32>
    %cst_37 = arith.constant 1.562500e-02 : f32
    %114 = vector.broadcast %cst_37 : f32 to vector<1x1xf32>
    %115 = arith.mulf %113, %114 : vector<1x1xf32>
    %116 = vector.broadcast %115 : vector<1x1xf32> to vector<1x128xf32>
    %117 = arith.subf %111, %116 : vector<1x128xf32>
    %cst_38 = arith.constant 0.000000e+00 : f32
    %118 = vector.broadcast %cst_38 : f32 to vector<1x128xf32>
    %119 = arith.select %14, %117, %118 : vector<1x128xi1>, vector<1x128xf32>
    %120 = arith.mulf %119, %119 : vector<1x128xf32>
    %cst_39 = arith.constant dense<0.000000e+00> : vector<1xf32>
    %121 = vector.multi_reduction <add>, %120, %cst_39 [1] : vector<1x128xf32> to vector<1xf32>
    %122 = vector.shape_cast %121 : vector<1xf32> to vector<1x1xf32>
    %cst_40 = arith.constant 1.562500e-02 : f32
    %123 = vector.broadcast %cst_40 : f32 to vector<1x1xf32>
    %124 = arith.mulf %122, %123 : vector<1x1xf32>
    %cst_41 = arith.constant 9.99999974E-6 : f32
    %125 = vector.broadcast %cst_41 : f32 to vector<1x1xf32>
    %126 = arith.addf %124, %125 : vector<1x1xf32>
    %127 = math.rsqrt %126 : vector<1x1xf32>
    %128 = vector.broadcast %127 : vector<1x1xf32> to vector<1x128xf32>
    %129 = arith.mulf %119, %128 : vector<1x128xf32>
    %130 = arith.mulf %129, %8 : vector<1x128xf32>
    %131 = arith.addf %130, %9 : vector<1x128xf32>
    %cst_42 = arith.constant dense<0.000000e+00> : vector<1x128xf32>
    %132 = tpu.matmul %131, %10, %cst_42 {dimension_numbers = #tpu.dot_dimension_numbers<[1], [0], [0], [1], [0, 0, 1, 1], [], []>} : vector<1x128xf32>, vector<128x128xf32>, vector<1x128xf32> -> vector<1x128xf32>
    %133 = arith.addf %132, %11 : vector<1x128xf32>
    %cst_43 = arith.constant 0.000000e+00 : f32
    %134 = vector.broadcast %cst_43 : f32 to vector<1x128xf32>
    %135 = arith.maximumf %134, %133 : vector<1x128xf32>
    %136 = vector.broadcast %cst_43 : f32 to vector<1x128xf32>
    %137 = arith.subf %136, %133 : vector<1x128xf32>
    %138 = arith.cmpf one, %137, %137 : vector<1x128xf32>
    %139 = vector.broadcast %cst_43 : f32 to vector<1x128xf32>
    %140 = arith.addf %139, %133 : vector<1x128xf32>
    %141 = math.absf %137 : vector<1x128xf32>
    %cst_44 = arith.constant 0.000000e+00 : f32
    %142 = vector.broadcast %cst_44 : f32 to vector<1x128xf32>
    %143 = arith.subf %142, %141 : vector<1x128xf32>
    %144 = math.exp %143 : vector<1x128xf32>
    %145 = math.log1p %144 : vector<1x128xf32>
    %146 = arith.addf %135, %145 : vector<1x128xf32>
    %147 = arith.select %138, %140, %146 : vector<1x128xi1>, vector<1x128xf32>
    %c1 = arith.constant 1 : index
    %c0_45 = arith.constant 0 : index
    %148 = vector.load %arg8[%c1, %c0_45] : memref<8x128xf32, #tpu.memory_space<vmem>>, vector<1x128xf32>
    tpu.vector_store %arg8[%c1, %c0_45], %147 {strides = array<i32>} : memref<8x128xf32, #tpu.memory_space<vmem>>, vector<1x128xf32>,
    %149 = vector.extract_strided_slice %5 {offsets = [2, 0], sizes = [1, 512], strides = [1, 1]} : vector<8x512xf32> to vector<1x512xf32>
    %150 = arith.truncf %111 : vector<1x128xf32> to vector<1x128xbf16>
    %cst_46 = arith.constant dense<0.000000e+00> : vector<1x512xf32>
    %151 = tpu.matmul %150, %7, %cst_46 {dimension_numbers = #tpu.dot_dimension_numbers<[1], [0], [0], [1], [0, 0, 1, 1], [], []>} : vector<1x128xbf16>, vector<128x512xbf16>, vector<1x512xf32> -> vector<1x512xf32>
    %152 = arith.addf %149, %151 : vector<1x512xf32>
    %153 = vector.extract_strided_slice %152 {offsets = [0, 0], sizes = [1, 128], strides = [1, 1]} : vector<1x512xf32> to vector<1x128xf32>
    %154 = arith.negf %153 : vector<1x128xf32>
    %155 = math.exp %154 : vector<1x128xf32>
    %cst_47 = arith.constant 1.000000e+00 : f32
    %156 = vector.broadcast %cst_47 : f32 to vector<1x128xf32>
    %157 = arith.addf %156, %155 : vector<1x128xf32>
    %158 = arith.divf %156, %157 : vector<1x128xf32>
    %159 = vector.extract_strided_slice %152 {offsets = [0, 128], sizes = [1, 128], strides = [1, 1]} : vector<1x512xf32> to vector<1x128xf32>
    %160 = arith.negf %159 : vector<1x128xf32>
    %161 = math.exp %160 : vector<1x128xf32>
    %cst_48 = arith.constant 1.000000e+00 : f32
    %162 = vector.broadcast %cst_48 : f32 to vector<1x128xf32>
    %163 = arith.addf %162, %161 : vector<1x128xf32>
    %164 = arith.divf %162, %163 : vector<1x128xf32>
    %165 = vector.extract_strided_slice %152 {offsets = [0, 256], sizes = [1, 128], strides = [1, 1]} : vector<1x512xf32> to vector<1x128xf32>
    %166 = math.tanh %165 : vector<1x128xf32>
    %167 = vector.extract_strided_slice %152 {offsets = [0, 384], sizes = [1, 128], strides = [1, 1]} : vector<1x512xf32> to vector<1x128xf32>
    %168 = arith.negf %167 : vector<1x128xf32>
    %169 = math.exp %168 : vector<1x128xf32>
    %cst_49 = arith.constant 1.000000e+00 : f32
    %170 = vector.broadcast %cst_49 : f32 to vector<1x128xf32>
    %171 = arith.addf %170, %169 : vector<1x128xf32>
    %172 = arith.divf %170, %171 : vector<1x128xf32>
    %173 = arith.mulf %164, %109 : vector<1x128xf32>
    %174 = arith.mulf %158, %166 : vector<1x128xf32>
    %175 = arith.addf %173, %174 : vector<1x128xf32>
    %176 = math.tanh %175 : vector<1x128xf32>
    %177 = arith.mulf %172, %176 : vector<1x128xf32>
    %cst_50 = arith.constant dense<0.000000e+00> : vector<1xf32>
    %178 = vector.multi_reduction <add>, %177, %cst_50 [1] : vector<1x128xf32> to vector<1xf32>
    %179 = vector.shape_cast %178 : vector<1xf32> to vector<1x1xf32>
    %cst_51 = arith.constant 1.562500e-02 : f32
    %180 = vector.broadcast %cst_51 : f32 to vector<1x1xf32>
    %181 = arith.mulf %179, %180 : vector<1x1xf32>
    %182 = vector.broadcast %181 : vector<1x1xf32> to vector<1x128xf32>
    %183 = arith.subf %177, %182 : vector<1x128xf32>
    %cst_52 = arith.constant 0.000000e+00 : f32
    %184 = vector.broadcast %cst_52 : f32 to vector<1x128xf32>
    %185 = arith.select %14, %183, %184 : vector<1x128xi1>, vector<1x128xf32>
    %186 = arith.mulf %185, %185 : vector<1x128xf32>
    %cst_53 = arith.constant dense<0.000000e+00> : vector<1xf32>
    %187 = vector.multi_reduction <add>, %186, %cst_53 [1] : vector<1x128xf32> to vector<1xf32>
    %188 = vector.shape_cast %187 : vector<1xf32> to vector<1x1xf32>
    %cst_54 = arith.constant 1.562500e-02 : f32
    %189 = vector.broadcast %cst_54 : f32 to vector<1x1xf32>
    %190 = arith.mulf %188, %189 : vector<1x1xf32>
    %cst_55 = arith.constant 9.99999974E-6 : f32
    %191 = vector.broadcast %cst_55 : f32 to vector<1x1xf32>
    %192 = arith.addf %190, %191 : vector<1x1xf32>
    %193 = math.rsqrt %192 : vector<1x1xf32>
    %194 = vector.broadcast %193 : vector<1x1xf32> to vector<1x128xf32>
    %195 = arith.mulf %185, %194 : vector<1x128xf32>
    %196 = arith.mulf %195, %8 : vector<1x128xf32>
    %197 = arith.addf %196, %9 : vector<1x128xf32>
    %cst_56 = arith.constant dense<0.000000e+00> : vector<1x128xf32>
    %198 = tpu.matmul %197, %10, %cst_56 {dimension_numbers = #tpu.dot_dimension_numbers<[1], [0], [0], [1], [0, 0, 1, 1], [], []>} : vector<1x128xf32>, vector<128x128xf32>, vector<1x128xf32> -> vector<1x128xf32>
    %199 = arith.addf %198, %11 : vector<1x128xf32>
    %cst_57 = arith.constant 0.000000e+00 : f32
    %200 = vector.broadcast %cst_57 : f32 to vector<1x128xf32>
    %201 = arith.maximumf %200, %199 : vector<1x128xf32>
    %202 = vector.broadcast %cst_57 : f32 to vector<1x128xf32>
    %203 = arith.subf %202, %199 : vector<1x128xf32>
    %204 = arith.cmpf one, %203, %203 : vector<1x128xf32>
    %205 = vector.broadcast %cst_57 : f32 to vector<1x128xf32>
    %206 = arith.addf %205, %199 : vector<1x128xf32>
    %207 = math.absf %203 : vector<1x128xf32>
    %cst_58 = arith.constant 0.000000e+00 : f32
    %208 = vector.broadcast %cst_58 : f32 to vector<1x128xf32>
    %209 = arith.subf %208, %207 : vector<1x128xf32>
    %210 = math.exp %209 : vector<1x128xf32>
    %211 = math.log1p %210 : vector<1x128xf32>
    %212 = arith.addf %201, %211 : vector<1x128xf32>
    %213 = arith.select %204, %206, %212 : vector<1x128xi1>, vector<1x128xf32>
    %c2 = arith.constant 2 : index
    %c0_59 = arith.constant 0 : index
    %214 = vector.load %arg8[%c2, %c0_59] : memref<8x128xf32, #tpu.memory_space<vmem>>, vector<1x128xf32>
    tpu.vector_store %arg8[%c2, %c0_59], %213 {strides = array<i32>} : memref<8x128xf32, #tpu.memory_space<vmem>>, vector<1x128xf32>,
    %215 = vector.extract_strided_slice %5 {offsets = [3, 0], sizes = [1, 512], strides = [1, 1]} : vector<8x512xf32> to vector<1x512xf32>
    %216 = arith.truncf %177 : vector<1x128xf32> to vector<1x128xbf16>
    %cst_60 = arith.constant dense<0.000000e+00> : vector<1x512xf32>
    %217 = tpu.matmul %216, %7, %cst_60 {dimension_numbers = #tpu.dot_dimension_numbers<[1], [0], [0], [1], [0, 0, 1, 1], [], []>} : vector<1x128xbf16>, vector<128x512xbf16>, vector<1x512xf32> -> vector<1x512xf32>
    %218 = arith.addf %215, %217 : vector<1x512xf32>
    %219 = vector.extract_strided_slice %218 {offsets = [0, 0], sizes = [1, 128], strides = [1, 1]} : vector<1x512xf32> to vector<1x128xf32>
    %220 = arith.negf %219 : vector<1x128xf32>
    %221 = math.exp %220 : vector<1x128xf32>
    %cst_61 = arith.constant 1.000000e+00 : f32
    %222 = vector.broadcast %cst_61 : f32 to vector<1x128xf32>
    %223 = arith.addf %222, %221 : vector<1x128xf32>
    %224 = arith.divf %222, %223 : vector<1x128xf32>
    %225 = vector.extract_strided_slice %218 {offsets = [0, 128], sizes = [1, 128], strides = [1, 1]} : vector<1x512xf32> to vector<1x128xf32>
    %226 = arith.negf %225 : vector<1x128xf32>
    %227 = math.exp %226 : vector<1x128xf32>
    %cst_62 = arith.constant 1.000000e+00 : f32
    %228 = vector.broadcast %cst_62 : f32 to vector<1x128xf32>
    %229 = arith.addf %228, %227 : vector<1x128xf32>
    %230 = arith.divf %228, %229 : vector<1x128xf32>
    %231 = vector.extract_strided_slice %218 {offsets = [0, 256], sizes = [1, 128], strides = [1, 1]} : vector<1x512xf32> to vector<1x128xf32>
    %232 = math.tanh %231 : vector<1x128xf32>
    %233 = vector.extract_strided_slice %218 {offsets = [0, 384], sizes = [1, 128], strides = [1, 1]} : vector<1x512xf32> to vector<1x128xf32>
    %234 = arith.negf %233 : vector<1x128xf32>
    %235 = math.exp %234 : vector<1x128xf32>
    %cst_63 = arith.constant 1.000000e+00 : f32
    %236 = vector.broadcast %cst_63 : f32 to vector<1x128xf32>
    %237 = arith.addf %236, %235 : vector<1x128xf32>
    %238 = arith.divf %236, %237 : vector<1x128xf32>
    %239 = arith.mulf %230, %175 : vector<1x128xf32>
    %240 = arith.mulf %224, %232 : vector<1x128xf32>
    %241 = arith.addf %239, %240 : vector<1x128xf32>
    %242 = math.tanh %241 : vector<1x128xf32>
    %243 = arith.mulf %238, %242 : vector<1x128xf32>
    %cst_64 = arith.constant dense<0.000000e+00> : vector<1xf32>
    %244 = vector.multi_reduction <add>, %243, %cst_64 [1] : vector<1x128xf32> to vector<1xf32>
    %245 = vector.shape_cast %244 : vector<1xf32> to vector<1x1xf32>
    %cst_65 = arith.constant 1.562500e-02 : f32
    %246 = vector.broadcast %cst_65 : f32 to vector<1x1xf32>
    %247 = arith.mulf %245, %246 : vector<1x1xf32>
    %248 = vector.broadcast %247 : vector<1x1xf32> to vector<1x128xf32>
    %249 = arith.subf %243, %248 : vector<1x128xf32>
    %cst_66 = arith.constant 0.000000e+00 : f32
    %250 = vector.broadcast %cst_66 : f32 to vector<1x128xf32>
    %251 = arith.select %14, %249, %250 : vector<1x128xi1>, vector<1x128xf32>
    %252 = arith.mulf %251, %251 : vector<1x128xf32>
    %cst_67 = arith.constant dense<0.000000e+00> : vector<1xf32>
    %253 = vector.multi_reduction <add>, %252, %cst_67 [1] : vector<1x128xf32> to vector<1xf32>
    %254 = vector.shape_cast %253 : vector<1xf32> to vector<1x1xf32>
    %cst_68 = arith.constant 1.562500e-02 : f32
    %255 = vector.broadcast %cst_68 : f32 to vector<1x1xf32>
    %256 = arith.mulf %254, %255 : vector<1x1xf32>
    %cst_69 = arith.constant 9.99999974E-6 : f32
    %257 = vector.broadcast %cst_69 : f32 to vector<1x1xf32>
    %258 = arith.addf %256, %257 : vector<1x1xf32>
    %259 = math.rsqrt %258 : vector<1x1xf32>
    %260 = vector.broadcast %259 : vector<1x1xf32> to vector<1x128xf32>
    %261 = arith.mulf %251, %260 : vector<1x128xf32>
    %262 = arith.mulf %261, %8 : vector<1x128xf32>
    %263 = arith.addf %262, %9 : vector<1x128xf32>
    %cst_70 = arith.constant dense<0.000000e+00> : vector<1x128xf32>
    %264 = tpu.matmul %263, %10, %cst_70 {dimension_numbers = #tpu.dot_dimension_numbers<[1], [0], [0], [1], [0, 0, 1, 1], [], []>} : vector<1x128xf32>, vector<128x128xf32>, vector<1x128xf32> -> vector<1x128xf32>
    %265 = arith.addf %264, %11 : vector<1x128xf32>
    %cst_71 = arith.constant 0.000000e+00 : f32
    %266 = vector.broadcast %cst_71 : f32 to vector<1x128xf32>
    %267 = arith.maximumf %266, %265 : vector<1x128xf32>
    %268 = vector.broadcast %cst_71 : f32 to vector<1x128xf32>
    %269 = arith.subf %268, %265 : vector<1x128xf32>
    %270 = arith.cmpf one, %269, %269 : vector<1x128xf32>
    %271 = vector.broadcast %cst_71 : f32 to vector<1x128xf32>
    %272 = arith.addf %271, %265 : vector<1x128xf32>
    %273 = math.absf %269 : vector<1x128xf32>
    %cst_72 = arith.constant 0.000000e+00 : f32
    %274 = vector.broadcast %cst_72 : f32 to vector<1x128xf32>
    %275 = arith.subf %274, %273 : vector<1x128xf32>
    %276 = math.exp %275 : vector<1x128xf32>
    %277 = math.log1p %276 : vector<1x128xf32>
    %278 = arith.addf %267, %277 : vector<1x128xf32>
    %279 = arith.select %270, %272, %278 : vector<1x128xi1>, vector<1x128xf32>
    %c3 = arith.constant 3 : index
    %c0_73 = arith.constant 0 : index
    %280 = vector.load %arg8[%c3, %c0_73] : memref<8x128xf32, #tpu.memory_space<vmem>>, vector<1x128xf32>
    tpu.vector_store %arg8[%c3, %c0_73], %279 {strides = array<i32>} : memref<8x128xf32, #tpu.memory_space<vmem>>, vector<1x128xf32>,
    %281 = vector.extract_strided_slice %5 {offsets = [4, 0], sizes = [1, 512], strides = [1, 1]} : vector<8x512xf32> to vector<1x512xf32>
    %282 = arith.truncf %243 : vector<1x128xf32> to vector<1x128xbf16>
    %cst_74 = arith.constant dense<0.000000e+00> : vector<1x512xf32>
    %283 = tpu.matmul %282, %7, %cst_74 {dimension_numbers = #tpu.dot_dimension_numbers<[1], [0], [0], [1], [0, 0, 1, 1], [], []>} : vector<1x128xbf16>, vector<128x512xbf16>, vector<1x512xf32> -> vector<1x512xf32>
    %284 = arith.addf %281, %283 : vector<1x512xf32>
    %285 = vector.extract_strided_slice %284 {offsets = [0, 0], sizes = [1, 128], strides = [1, 1]} : vector<1x512xf32> to vector<1x128xf32>
    %286 = arith.negf %285 : vector<1x128xf32>
    %287 = math.exp %286 : vector<1x128xf32>
    %cst_75 = arith.constant 1.000000e+00 : f32
    %288 = vector.broadcast %cst_75 : f32 to vector<1x128xf32>
    %289 = arith.addf %288, %287 : vector<1x128xf32>
    %290 = arith.divf %288, %289 : vector<1x128xf32>
    %291 = vector.extract_strided_slice %284 {offsets = [0, 128], sizes = [1, 128], strides = [1, 1]} : vector<1x512xf32> to vector<1x128xf32>
    %292 = arith.negf %291 : vector<1x128xf32>
    %293 = math.exp %292 : vector<1x128xf32>
    %cst_76 = arith.constant 1.000000e+00 : f32
    %294 = vector.broadcast %cst_76 : f32 to vector<1x128xf32>
    %295 = arith.addf %294, %293 : vector<1x128xf32>
    %296 = arith.divf %294, %295 : vector<1x128xf32>
    %297 = vector.extract_strided_slice %284 {offsets = [0, 256], sizes = [1, 128], strides = [1, 1]} : vector<1x512xf32> to vector<1x128xf32>
    %298 = math.tanh %297 : vector<1x128xf32>
    %299 = vector.extract_strided_slice %284 {offsets = [0, 384], sizes = [1, 128], strides = [1, 1]} : vector<1x512xf32> to vector<1x128xf32>
    %300 = arith.negf %299 : vector<1x128xf32>
    %301 = math.exp %300 : vector<1x128xf32>
    %cst_77 = arith.constant 1.000000e+00 : f32
    %302 = vector.broadcast %cst_77 : f32 to vector<1x128xf32>
    %303 = arith.addf %302, %301 : vector<1x128xf32>
    %304 = arith.divf %302, %303 : vector<1x128xf32>
    %305 = arith.mulf %296, %241 : vector<1x128xf32>
    %306 = arith.mulf %290, %298 : vector<1x128xf32>
    %307 = arith.addf %305, %306 : vector<1x128xf32>
    %308 = math.tanh %307 : vector<1x128xf32>
    %309 = arith.mulf %304, %308 : vector<1x128xf32>
    %cst_78 = arith.constant dense<0.000000e+00> : vector<1xf32>
    %310 = vector.multi_reduction <add>, %309, %cst_78 [1] : vector<1x128xf32> to vector<1xf32>
    %311 = vector.shape_cast %310 : vector<1xf32> to vector<1x1xf32>
    %cst_79 = arith.constant 1.562500e-02 : f32
    %312 = vector.broadcast %cst_79 : f32 to vector<1x1xf32>
    %313 = arith.mulf %311, %312 : vector<1x1xf32>
    %314 = vector.broadcast %313 : vector<1x1xf32> to vector<1x128xf32>
    %315 = arith.subf %309, %314 : vector<1x128xf32>
    %cst_80 = arith.constant 0.000000e+00 : f32
    %316 = vector.broadcast %cst_80 : f32 to vector<1x128xf32>
    %317 = arith.select %14, %315, %316 : vector<1x128xi1>, vector<1x128xf32>
    %318 = arith.mulf %317, %317 : vector<1x128xf32>
    %cst_81 = arith.constant dense<0.000000e+00> : vector<1xf32>
    %319 = vector.multi_reduction <add>, %318, %cst_81 [1] : vector<1x128xf32> to vector<1xf32>
    %320 = vector.shape_cast %319 : vector<1xf32> to vector<1x1xf32>
    %cst_82 = arith.constant 1.562500e-02 : f32
    %321 = vector.broadcast %cst_82 : f32 to vector<1x1xf32>
    %322 = arith.mulf %320, %321 : vector<1x1xf32>
    %cst_83 = arith.constant 9.99999974E-6 : f32
    %323 = vector.broadcast %cst_83 : f32 to vector<1x1xf32>
    %324 = arith.addf %322, %323 : vector<1x1xf32>
    %325 = math.rsqrt %324 : vector<1x1xf32>
    %326 = vector.broadcast %325 : vector<1x1xf32> to vector<1x128xf32>
    %327 = arith.mulf %317, %326 : vector<1x128xf32>
    %328 = arith.mulf %327, %8 : vector<1x128xf32>
    %329 = arith.addf %328, %9 : vector<1x128xf32>
    %cst_84 = arith.constant dense<0.000000e+00> : vector<1x128xf32>
    %330 = tpu.matmul %329, %10, %cst_84 {dimension_numbers = #tpu.dot_dimension_numbers<[1], [0], [0], [1], [0, 0, 1, 1], [], []>} : vector<1x128xf32>, vector<128x128xf32>, vector<1x128xf32> -> vector<1x128xf32>
    %331 = arith.addf %330, %11 : vector<1x128xf32>
    %cst_85 = arith.constant 0.000000e+00 : f32
    %332 = vector.broadcast %cst_85 : f32 to vector<1x128xf32>
    %333 = arith.maximumf %332, %331 : vector<1x128xf32>
    %334 = vector.broadcast %cst_85 : f32 to vector<1x128xf32>
    %335 = arith.subf %334, %331 : vector<1x128xf32>
    %336 = arith.cmpf one, %335, %335 : vector<1x128xf32>
    %337 = vector.broadcast %cst_85 : f32 to vector<1x128xf32>
    %338 = arith.addf %337, %331 : vector<1x128xf32>
    %339 = math.absf %335 : vector<1x128xf32>
    %cst_86 = arith.constant 0.000000e+00 : f32
    %340 = vector.broadcast %cst_86 : f32 to vector<1x128xf32>
    %341 = arith.subf %340, %339 : vector<1x128xf32>
    %342 = math.exp %341 : vector<1x128xf32>
    %343 = math.log1p %342 : vector<1x128xf32>
    %344 = arith.addf %333, %343 : vector<1x128xf32>
    %345 = arith.select %336, %338, %344 : vector<1x128xi1>, vector<1x128xf32>
    %c4 = arith.constant 4 : index
    %c0_87 = arith.constant 0 : index
    %346 = vector.load %arg8[%c4, %c0_87] : memref<8x128xf32, #tpu.memory_space<vmem>>, vector<1x128xf32>
    tpu.vector_store %arg8[%c4, %c0_87], %345 {strides = array<i32>} : memref<8x128xf32, #tpu.memory_space<vmem>>, vector<1x128xf32>,
    %347 = vector.extract_strided_slice %5 {offsets = [5, 0], sizes = [1, 512], strides = [1, 1]} : vector<8x512xf32> to vector<1x512xf32>
    %348 = arith.truncf %309 : vector<1x128xf32> to vector<1x128xbf16>
    %cst_88 = arith.constant dense<0.000000e+00> : vector<1x512xf32>
    %349 = tpu.matmul %348, %7, %cst_88 {dimension_numbers = #tpu.dot_dimension_numbers<[1], [0], [0], [1], [0, 0, 1, 1], [], []>} : vector<1x128xbf16>, vector<128x512xbf16>, vector<1x512xf32> -> vector<1x512xf32>
    %350 = arith.addf %347, %349 : vector<1x512xf32>
    %351 = vector.extract_strided_slice %350 {offsets = [0, 0], sizes = [1, 128], strides = [1, 1]} : vector<1x512xf32> to vector<1x128xf32>
    %352 = arith.negf %351 : vector<1x128xf32>
    %353 = math.exp %352 : vector<1x128xf32>
    %cst_89 = arith.constant 1.000000e+00 : f32
    %354 = vector.broadcast %cst_89 : f32 to vector<1x128xf32>
    %355 = arith.addf %354, %353 : vector<1x128xf32>
    %356 = arith.divf %354, %355 : vector<1x128xf32>
    %357 = vector.extract_strided_slice %350 {offsets = [0, 128], sizes = [1, 128], strides = [1, 1]} : vector<1x512xf32> to vector<1x128xf32>
    %358 = arith.negf %357 : vector<1x128xf32>
    %359 = math.exp %358 : vector<1x128xf32>
    %cst_90 = arith.constant 1.000000e+00 : f32
    %360 = vector.broadcast %cst_90 : f32 to vector<1x128xf32>
    %361 = arith.addf %360, %359 : vector<1x128xf32>
    %362 = arith.divf %360, %361 : vector<1x128xf32>
    %363 = vector.extract_strided_slice %350 {offsets = [0, 256], sizes = [1, 128], strides = [1, 1]} : vector<1x512xf32> to vector<1x128xf32>
    %364 = math.tanh %363 : vector<1x128xf32>
    %365 = vector.extract_strided_slice %350 {offsets = [0, 384], sizes = [1, 128], strides = [1, 1]} : vector<1x512xf32> to vector<1x128xf32>
    %366 = arith.negf %365 : vector<1x128xf32>
    %367 = math.exp %366 : vector<1x128xf32>
    %cst_91 = arith.constant 1.000000e+00 : f32
    %368 = vector.broadcast %cst_91 : f32 to vector<1x128xf32>
    %369 = arith.addf %368, %367 : vector<1x128xf32>
    %370 = arith.divf %368, %369 : vector<1x128xf32>
    %371 = arith.mulf %362, %307 : vector<1x128xf32>
    %372 = arith.mulf %356, %364 : vector<1x128xf32>
    %373 = arith.addf %371, %372 : vector<1x128xf32>
    %374 = math.tanh %373 : vector<1x128xf32>
    %375 = arith.mulf %370, %374 : vector<1x128xf32>
    %cst_92 = arith.constant dense<0.000000e+00> : vector<1xf32>
    %376 = vector.multi_reduction <add>, %375, %cst_92 [1] : vector<1x128xf32> to vector<1xf32>
    %377 = vector.shape_cast %376 : vector<1xf32> to vector<1x1xf32>
    %cst_93 = arith.constant 1.562500e-02 : f32
    %378 = vector.broadcast %cst_93 : f32 to vector<1x1xf32>
    %379 = arith.mulf %377, %378 : vector<1x1xf32>
    %380 = vector.broadcast %379 : vector<1x1xf32> to vector<1x128xf32>
    %381 = arith.subf %375, %380 : vector<1x128xf32>
    %cst_94 = arith.constant 0.000000e+00 : f32
    %382 = vector.broadcast %cst_94 : f32 to vector<1x128xf32>
    %383 = arith.select %14, %381, %382 : vector<1x128xi1>, vector<1x128xf32>
    %384 = arith.mulf %383, %383 : vector<1x128xf32>
    %cst_95 = arith.constant dense<0.000000e+00> : vector<1xf32>
    %385 = vector.multi_reduction <add>, %384, %cst_95 [1] : vector<1x128xf32> to vector<1xf32>
    %386 = vector.shape_cast %385 : vector<1xf32> to vector<1x1xf32>
    %cst_96 = arith.constant 1.562500e-02 : f32
    %387 = vector.broadcast %cst_96 : f32 to vector<1x1xf32>
    %388 = arith.mulf %386, %387 : vector<1x1xf32>
    %cst_97 = arith.constant 9.99999974E-6 : f32
    %389 = vector.broadcast %cst_97 : f32 to vector<1x1xf32>
    %390 = arith.addf %388, %389 : vector<1x1xf32>
    %391 = math.rsqrt %390 : vector<1x1xf32>
    %392 = vector.broadcast %391 : vector<1x1xf32> to vector<1x128xf32>
    %393 = arith.mulf %383, %392 : vector<1x128xf32>
    %394 = arith.mulf %393, %8 : vector<1x128xf32>
    %395 = arith.addf %394, %9 : vector<1x128xf32>
    %cst_98 = arith.constant dense<0.000000e+00> : vector<1x128xf32>
    %396 = tpu.matmul %395, %10, %cst_98 {dimension_numbers = #tpu.dot_dimension_numbers<[1], [0], [0], [1], [0, 0, 1, 1], [], []>} : vector<1x128xf32>, vector<128x128xf32>, vector<1x128xf32> -> vector<1x128xf32>
    %397 = arith.addf %396, %11 : vector<1x128xf32>
    %cst_99 = arith.constant 0.000000e+00 : f32
    %398 = vector.broadcast %cst_99 : f32 to vector<1x128xf32>
    %399 = arith.maximumf %398, %397 : vector<1x128xf32>
    %400 = vector.broadcast %cst_99 : f32 to vector<1x128xf32>
    %401 = arith.subf %400, %397 : vector<1x128xf32>
    %402 = arith.cmpf one, %401, %401 : vector<1x128xf32>
    %403 = vector.broadcast %cst_99 : f32 to vector<1x128xf32>
    %404 = arith.addf %403, %397 : vector<1x128xf32>
    %405 = math.absf %401 : vector<1x128xf32>
    %cst_100 = arith.constant 0.000000e+00 : f32
    %406 = vector.broadcast %cst_100 : f32 to vector<1x128xf32>
    %407 = arith.subf %406, %405 : vector<1x128xf32>
    %408 = math.exp %407 : vector<1x128xf32>
    %409 = math.log1p %408 : vector<1x128xf32>
    %410 = arith.addf %399, %409 : vector<1x128xf32>
    %411 = arith.select %402, %404, %410 : vector<1x128xi1>, vector<1x128xf32>
    %c5 = arith.constant 5 : index
    %c0_101 = arith.constant 0 : index
    %412 = vector.load %arg8[%c5, %c0_101] : memref<8x128xf32, #tpu.memory_space<vmem>>, vector<1x128xf32>
    tpu.vector_store %arg8[%c5, %c0_101], %411 {strides = array<i32>} : memref<8x128xf32, #tpu.memory_space<vmem>>, vector<1x128xf32>,
    %413 = vector.extract_strided_slice %5 {offsets = [6, 0], sizes = [1, 512], strides = [1, 1]} : vector<8x512xf32> to vector<1x512xf32>
    %414 = arith.truncf %375 : vector<1x128xf32> to vector<1x128xbf16>
    %cst_102 = arith.constant dense<0.000000e+00> : vector<1x512xf32>
    %415 = tpu.matmul %414, %7, %cst_102 {dimension_numbers = #tpu.dot_dimension_numbers<[1], [0], [0], [1], [0, 0, 1, 1], [], []>} : vector<1x128xbf16>, vector<128x512xbf16>, vector<1x512xf32> -> vector<1x512xf32>
    %416 = arith.addf %413, %415 : vector<1x512xf32>
    %417 = vector.extract_strided_slice %416 {offsets = [0, 0], sizes = [1, 128], strides = [1, 1]} : vector<1x512xf32> to vector<1x128xf32>
    %418 = arith.negf %417 : vector<1x128xf32>
    %419 = math.exp %418 : vector<1x128xf32>
    %cst_103 = arith.constant 1.000000e+00 : f32
    %420 = vector.broadcast %cst_103 : f32 to vector<1x128xf32>
    %421 = arith.addf %420, %419 : vector<1x128xf32>
    %422 = arith.divf %420, %421 : vector<1x128xf32>
    %423 = vector.extract_strided_slice %416 {offsets = [0, 128], sizes = [1, 128], strides = [1, 1]} : vector<1x512xf32> to vector<1x128xf32>
    %424 = arith.negf %423 : vector<1x128xf32>
    %425 = math.exp %424 : vector<1x128xf32>
    %cst_104 = arith.constant 1.000000e+00 : f32
    %426 = vector.broadcast %cst_104 : f32 to vector<1x128xf32>
    %427 = arith.addf %426, %425 : vector<1x128xf32>
    %428 = arith.divf %426, %427 : vector<1x128xf32>
    %429 = vector.extract_strided_slice %416 {offsets = [0, 256], sizes = [1, 128], strides = [1, 1]} : vector<1x512xf32> to vector<1x128xf32>
    %430 = math.tanh %429 : vector<1x128xf32>
    %431 = vector.extract_strided_slice %416 {offsets = [0, 384], sizes = [1, 128], strides = [1, 1]} : vector<1x512xf32> to vector<1x128xf32>
    %432 = arith.negf %431 : vector<1x128xf32>
    %433 = math.exp %432 : vector<1x128xf32>
    %cst_105 = arith.constant 1.000000e+00 : f32
    %434 = vector.broadcast %cst_105 : f32 to vector<1x128xf32>
    %435 = arith.addf %434, %433 : vector<1x128xf32>
    %436 = arith.divf %434, %435 : vector<1x128xf32>
    %437 = arith.mulf %428, %373 : vector<1x128xf32>
    %438 = arith.mulf %422, %430 : vector<1x128xf32>
    %439 = arith.addf %437, %438 : vector<1x128xf32>
    %440 = math.tanh %439 : vector<1x128xf32>
    %441 = arith.mulf %436, %440 : vector<1x128xf32>
    %cst_106 = arith.constant dense<0.000000e+00> : vector<1xf32>
    %442 = vector.multi_reduction <add>, %441, %cst_106 [1] : vector<1x128xf32> to vector<1xf32>
    %443 = vector.shape_cast %442 : vector<1xf32> to vector<1x1xf32>
    %cst_107 = arith.constant 1.562500e-02 : f32
    %444 = vector.broadcast %cst_107 : f32 to vector<1x1xf32>
    %445 = arith.mulf %443, %444 : vector<1x1xf32>
    %446 = vector.broadcast %445 : vector<1x1xf32> to vector<1x128xf32>
    %447 = arith.subf %441, %446 : vector<1x128xf32>
    %cst_108 = arith.constant 0.000000e+00 : f32
    %448 = vector.broadcast %cst_108 : f32 to vector<1x128xf32>
    %449 = arith.select %14, %447, %448 : vector<1x128xi1>, vector<1x128xf32>
    %450 = arith.mulf %449, %449 : vector<1x128xf32>
    %cst_109 = arith.constant dense<0.000000e+00> : vector<1xf32>
    %451 = vector.multi_reduction <add>, %450, %cst_109 [1] : vector<1x128xf32> to vector<1xf32>
    %452 = vector.shape_cast %451 : vector<1xf32> to vector<1x1xf32>
    %cst_110 = arith.constant 1.562500e-02 : f32
    %453 = vector.broadcast %cst_110 : f32 to vector<1x1xf32>
    %454 = arith.mulf %452, %453 : vector<1x1xf32>
    %cst_111 = arith.constant 9.99999974E-6 : f32
    %455 = vector.broadcast %cst_111 : f32 to vector<1x1xf32>
    %456 = arith.addf %454, %455 : vector<1x1xf32>
    %457 = math.rsqrt %456 : vector<1x1xf32>
    %458 = vector.broadcast %457 : vector<1x1xf32> to vector<1x128xf32>
    %459 = arith.mulf %449, %458 : vector<1x128xf32>
    %460 = arith.mulf %459, %8 : vector<1x128xf32>
    %461 = arith.addf %460, %9 : vector<1x128xf32>
    %cst_112 = arith.constant dense<0.000000e+00> : vector<1x128xf32>
    %462 = tpu.matmul %461, %10, %cst_112 {dimension_numbers = #tpu.dot_dimension_numbers<[1], [0], [0], [1], [0, 0, 1, 1], [], []>} : vector<1x128xf32>, vector<128x128xf32>, vector<1x128xf32> -> vector<1x128xf32>
    %463 = arith.addf %462, %11 : vector<1x128xf32>
    %cst_113 = arith.constant 0.000000e+00 : f32
    %464 = vector.broadcast %cst_113 : f32 to vector<1x128xf32>
    %465 = arith.maximumf %464, %463 : vector<1x128xf32>
    %466 = vector.broadcast %cst_113 : f32 to vector<1x128xf32>
    %467 = arith.subf %466, %463 : vector<1x128xf32>
    %468 = arith.cmpf one, %467, %467 : vector<1x128xf32>
    %469 = vector.broadcast %cst_113 : f32 to vector<1x128xf32>
    %470 = arith.addf %469, %463 : vector<1x128xf32>
    %471 = math.absf %467 : vector<1x128xf32>
    %cst_114 = arith.constant 0.000000e+00 : f32
    %472 = vector.broadcast %cst_114 : f32 to vector<1x128xf32>
    %473 = arith.subf %472, %471 : vector<1x128xf32>
    %474 = math.exp %473 : vector<1x128xf32>
    %475 = math.log1p %474 : vector<1x128xf32>
    %476 = arith.addf %465, %475 : vector<1x128xf32>
    %477 = arith.select %468, %470, %476 : vector<1x128xi1>, vector<1x128xf32>
    %c6 = arith.constant 6 : index
    %c0_115 = arith.constant 0 : index
    %478 = vector.load %arg8[%c6, %c0_115] : memref<8x128xf32, #tpu.memory_space<vmem>>, vector<1x128xf32>
    tpu.vector_store %arg8[%c6, %c0_115], %477 {strides = array<i32>} : memref<8x128xf32, #tpu.memory_space<vmem>>, vector<1x128xf32>,
    %479 = vector.extract_strided_slice %5 {offsets = [7, 0], sizes = [1, 512], strides = [1, 1]} : vector<8x512xf32> to vector<1x512xf32>
    %480 = arith.truncf %441 : vector<1x128xf32> to vector<1x128xbf16>
    %cst_116 = arith.constant dense<0.000000e+00> : vector<1x512xf32>
    %481 = tpu.matmul %480, %7, %cst_116 {dimension_numbers = #tpu.dot_dimension_numbers<[1], [0], [0], [1], [0, 0, 1, 1], [], []>} : vector<1x128xbf16>, vector<128x512xbf16>, vector<1x512xf32> -> vector<1x512xf32>
    %482 = arith.addf %479, %481 : vector<1x512xf32>
    %483 = vector.extract_strided_slice %482 {offsets = [0, 0], sizes = [1, 128], strides = [1, 1]} : vector<1x512xf32> to vector<1x128xf32>
    %484 = arith.negf %483 : vector<1x128xf32>
    %485 = math.exp %484 : vector<1x128xf32>
    %cst_117 = arith.constant 1.000000e+00 : f32
    %486 = vector.broadcast %cst_117 : f32 to vector<1x128xf32>
    %487 = arith.addf %486, %485 : vector<1x128xf32>
    %488 = arith.divf %486, %487 : vector<1x128xf32>
    %489 = vector.extract_strided_slice %482 {offsets = [0, 128], sizes = [1, 128], strides = [1, 1]} : vector<1x512xf32> to vector<1x128xf32>
    %490 = arith.negf %489 : vector<1x128xf32>
    %491 = math.exp %490 : vector<1x128xf32>
    %cst_118 = arith.constant 1.000000e+00 : f32
    %492 = vector.broadcast %cst_118 : f32 to vector<1x128xf32>
    %493 = arith.addf %492, %491 : vector<1x128xf32>
    %494 = arith.divf %492, %493 : vector<1x128xf32>
    %495 = vector.extract_strided_slice %482 {offsets = [0, 256], sizes = [1, 128], strides = [1, 1]} : vector<1x512xf32> to vector<1x128xf32>
    %496 = math.tanh %495 : vector<1x128xf32>
    %497 = vector.extract_strided_slice %482 {offsets = [0, 384], sizes = [1, 128], strides = [1, 1]} : vector<1x512xf32> to vector<1x128xf32>
    %498 = arith.negf %497 : vector<1x128xf32>
    %499 = math.exp %498 : vector<1x128xf32>
    %cst_119 = arith.constant 1.000000e+00 : f32
    %500 = vector.broadcast %cst_119 : f32 to vector<1x128xf32>
    %501 = arith.addf %500, %499 : vector<1x128xf32>
    %502 = arith.divf %500, %501 : vector<1x128xf32>
    %503 = arith.mulf %494, %439 : vector<1x128xf32>
    %504 = arith.mulf %488, %496 : vector<1x128xf32>
    %505 = arith.addf %503, %504 : vector<1x128xf32>
    %506 = math.tanh %505 : vector<1x128xf32>
    %507 = arith.mulf %502, %506 : vector<1x128xf32>
    %cst_120 = arith.constant dense<0.000000e+00> : vector<1xf32>
    %508 = vector.multi_reduction <add>, %507, %cst_120 [1] : vector<1x128xf32> to vector<1xf32>
    %509 = vector.shape_cast %508 : vector<1xf32> to vector<1x1xf32>
    %cst_121 = arith.constant 1.562500e-02 : f32
    %510 = vector.broadcast %cst_121 : f32 to vector<1x1xf32>
    %511 = arith.mulf %509, %510 : vector<1x1xf32>
    %512 = vector.broadcast %511 : vector<1x1xf32> to vector<1x128xf32>
    %513 = arith.subf %507, %512 : vector<1x128xf32>
    %cst_122 = arith.constant 0.000000e+00 : f32
    %514 = vector.broadcast %cst_122 : f32 to vector<1x128xf32>
    %515 = arith.select %14, %513, %514 : vector<1x128xi1>, vector<1x128xf32>
    %516 = arith.mulf %515, %515 : vector<1x128xf32>
    %cst_123 = arith.constant dense<0.000000e+00> : vector<1xf32>
    %517 = vector.multi_reduction <add>, %516, %cst_123 [1] : vector<1x128xf32> to vector<1xf32>
    %518 = vector.shape_cast %517 : vector<1xf32> to vector<1x1xf32>
    %cst_124 = arith.constant 1.562500e-02 : f32
    %519 = vector.broadcast %cst_124 : f32 to vector<1x1xf32>
    %520 = arith.mulf %518, %519 : vector<1x1xf32>
    %cst_125 = arith.constant 9.99999974E-6 : f32
    %521 = vector.broadcast %cst_125 : f32 to vector<1x1xf32>
    %522 = arith.addf %520, %521 : vector<1x1xf32>
    %523 = math.rsqrt %522 : vector<1x1xf32>
    %524 = vector.broadcast %523 : vector<1x1xf32> to vector<1x128xf32>
    %525 = arith.mulf %515, %524 : vector<1x128xf32>
    %526 = arith.mulf %525, %8 : vector<1x128xf32>
    %527 = arith.addf %526, %9 : vector<1x128xf32>
    %cst_126 = arith.constant dense<0.000000e+00> : vector<1x128xf32>
    %528 = tpu.matmul %527, %10, %cst_126 {dimension_numbers = #tpu.dot_dimension_numbers<[1], [0], [0], [1], [0, 0, 1, 1], [], []>} : vector<1x128xf32>, vector<128x128xf32>, vector<1x128xf32> -> vector<1x128xf32>
    %529 = arith.addf %528, %11 : vector<1x128xf32>
    %cst_127 = arith.constant 0.000000e+00 : f32
    %530 = vector.broadcast %cst_127 : f32 to vector<1x128xf32>
    %531 = arith.maximumf %530, %529 : vector<1x128xf32>
    %532 = vector.broadcast %cst_127 : f32 to vector<1x128xf32>
    %533 = arith.subf %532, %529 : vector<1x128xf32>
    %534 = arith.cmpf one, %533, %533 : vector<1x128xf32>
    %535 = vector.broadcast %cst_127 : f32 to vector<1x128xf32>
    %536 = arith.addf %535, %529 : vector<1x128xf32>
    %537 = math.absf %533 : vector<1x128xf32>
    %cst_128 = arith.constant 0.000000e+00 : f32
    %538 = vector.broadcast %cst_128 : f32 to vector<1x128xf32>
    %539 = arith.subf %538, %537 : vector<1x128xf32>
    %540 = math.exp %539 : vector<1x128xf32>
    %541 = math.log1p %540 : vector<1x128xf32>
    %542 = arith.addf %531, %541 : vector<1x128xf32>
    %543 = arith.select %534, %536, %542 : vector<1x128xi1>, vector<1x128xf32>
    %c7 = arith.constant 7 : index
    %c0_129 = arith.constant 0 : index
    %544 = vector.load %arg8[%c7, %c0_129] : memref<8x128xf32, #tpu.memory_space<vmem>>, vector<1x128xf32>
    tpu.vector_store %arg8[%c7, %c0_129], %543 {strides = array<i32>} : memref<8x128xf32, #tpu.memory_space<vmem>>, vector<1x128xf32>,
    return
  }
}

</mosaic_0001>

<llo_original>
// kernel: lstm_forward.1
$region0: #{lstm_forward.1}
  #allocation0 [shape = 'u32[]', space=smem, size = 0x4, offset = 0x4, fixed_abs, tag = 'smem constant byte address 0x4 - core index']
  #allocation1 [shape = 'u32[144,128]{1,0:T(1,128)}', space=vmem, size = 0x12000, scoped, tag = 'internal scratch']
  %s0 = inlined_call_operand.hbm [shape: f32[8,20], index: 0, kind: input, shape index: {}]
  %s1 = inlined_call_operand.hbm [shape: f32[20,512], index: 1, kind: input, shape index: {}]
  %s2 = inlined_call_operand.hbm [shape: f32[128,512], index: 2, kind: input, shape index: {}]
  %s3 = inlined_call_operand.hbm [shape: f32[1,512], index: 3, kind: input, shape index: {}]
  %s4 = inlined_call_operand.vmem [shape: f32[1,128], index: 4, kind: input, shape index: {}]
  %s5 = inlined_call_operand.vmem [shape: f32[1,128], index: 5, kind: input, shape index: {}]
  %s6 = inlined_call_operand.hbm [shape: f32[128,128], index: 6, kind: input, shape index: {}]
  %s7 = inlined_call_operand.vmem [shape: f32[1,128], index: 7, kind: input, shape index: {}]
  %s8 = inlined_call_operand.hbm [shape: f32[8,128], index: 8, kind: output, shape index: {}]
  %s9 = sld [smem:[#allocation0]]
  $region62: #{lstm_forward.1} parent=0
    _
  %s11 = ssub.s32 1, %s9
  %s12 = scalar_select 0, %s11, %s9
  $region1: #{lstm_forward.1} parent=0
    #allocation2 [shape = 'u8[4096]{0}', space=vmem, size = 0x1000, scoped, tag = 'input window, operand 0, single buffered']
    #allocation3 [shape = 's32[1]{0}', space=sflag, size = 0x4, scoped, tag = 'scoped memory for lstm_forward.1']
    #allocation4 [shape = 's32[1]{0}', space=sflag, size = 0x4, scoped, tag = 'scoped memory for lstm_forward.1']
    #allocation5 [shape = 'u8[49152]{0}', space=vmem, size = 0xc000, scoped, tag = 'input window, operand 1, single buffered']
    #allocation6 [shape = 's32[1]{0}', space=sflag, size = 0x4, scoped, tag = 'scoped memory for lstm_forward.1']
    #allocation7 [shape = 'u8[262144]{0}', space=vmem, size = 0x40000, scoped, tag = 'input window, operand 2, single buffered']
    #allocation8 [shape = 'u8[2048]{0}', space=vmem, size = 0x800, scoped, tag = 'input window, operand 3, single buffered']
    #allocation9 [shape = 's32[1]{0}', space=sflag, size = 0x4, scoped, tag = 'scoped memory for lstm_forward.1']
    #allocation10 [shape = 'u8[65536]{0}', space=vmem, size = 0x10000, scoped, tag = 'input window, operand 6, single buffered']
    #allocation11 [shape = 'u8[4096]{0}', space=vmem, size = 0x1000, scoped, tag = 'output window, operand 0, single buffered']
    %13 = vsyncpa [#allocation3], 0
    %14 = vsyncpa [#allocation6], 0
    %15 = vsyncpa [#allocation9], 0
    %16 = vsyncpa [#allocation4], 0
    // Predicated region
    $region2: #{lstm_forward.1} parent=1 // pred_check
      _
    $region3: #{lstm_forward.1} parent=1 // pred_check_branch
      %18 = sbr.rel (0) target = $region5
    $region4: #{lstm_forward.1} parent=1 // pred_region
      %s20 = ssub.s32 128, 128
      %21 = vsyncadd [#allocation3], %s20
      %s23 = sshll.u32 [#allocation2], 4
      %s24 = int_to_ptr.vmem [resolvable:$true] %s23
      %26 = dma.hbm_to_vmem [thread:$0]  %s0, 128, %s24, [#allocation3]
    $region5: #{lstm_forward.1} parent=1 // pred_fallthru
      _
    // Predicated region
    $region6: #{lstm_forward.1} parent=1 // pred_check
      _
    $region7: #{lstm_forward.1} parent=1 // pred_check_branch
      %28 = sbr.rel (0) target = $region9
    $region8: #{lstm_forward.1} parent=1 // pred_region
      %s30 = ssub.s32 1536, 1536
      %31 = vsyncadd [#allocation6], %s30
      %s32 = sshll.u32 [#allocation5], 4
      %s33 = int_to_ptr.vmem [resolvable:$true] %s32
      %38 = dma.hbm_to_vmem [thread:$0]  %s1, 1536, %s33, [#allocation6], 512, 512, 32
    $region9: #{lstm_forward.1} parent=1 // pred_fallthru
      _
    // Predicated region
    $region10: #{lstm_forward.1} parent=1 // pred_check
      _
    $region11: #{lstm_forward.1} parent=1 // pred_check_branch
      %40 = sbr.rel (0) target = $region13
    $region12: #{lstm_forward.1} parent=1 // pred_region
      %s42 = ssub.s32 8192, 8192
      %43 = vsyncadd [#allocation6], %s42
      %s44 = sshll.u32 [#allocation7], 4
      %s45 = int_to_ptr.vmem [resolvable:$true] %s44
      %50 = dma.hbm_to_vmem [thread:$0]  %s2, 8192, %s45, [#allocation6], 512, 512, 32
    $region13: #{lstm_forward.1} parent=1 // pred_fallthru
      _
    // Predicated region
    $region14: #{lstm_forward.1} parent=1 // pred_check
      _
    $region15: #{lstm_forward.1} parent=1 // pred_check_branch
      %52 = sbr.rel (0) target = $region17
    $region16: #{lstm_forward.1} parent=1 // pred_region
      %s54 = ssub.s32 64, 64
      %55 = vsyncadd [#allocation9], %s54
      %s57 = sshll.u32 [#allocation8], 4
      %s58 = int_to_ptr.vmem [resolvable:$true] %s57
      %60 = dma.hbm_to_vmem [thread:$0]  %s3, 64, %s58, [#allocation9]
    $region17: #{lstm_forward.1} parent=1 // pred_fallthru
      _
    // Predicated region
    $region18: #{lstm_forward.1} parent=1 // pred_check
      _
    $region19: #{lstm_forward.1} parent=1 // pred_check_branch
      %62 = sbr.rel (0) target = $region21
    $region20: #{lstm_forward.1} parent=1 // pred_region
      _
    $region21: #{lstm_forward.1} parent=1 // pred_fallthru
      _
    // Predicated region
    $region22: #{lstm_forward.1} parent=1 // pred_check
      _
    $region23: #{lstm_forward.1} parent=1 // pred_check_branch
      %64 = sbr.rel (0) target = $region25
    $region24: #{lstm_forward.1} parent=1 // pred_region
      _
    $region25: #{lstm_forward.1} parent=1 // pred_fallthru
      _
    // Predicated region
    $region26: #{lstm_forward.1} parent=1 // pred_check
      _
    $region27: #{lstm_forward.1} parent=1 // pred_check_branch
      %66 = sbr.rel (0) target = $region29
    $region28: #{lstm_forward.1} parent=1 // pred_region
      %s68 = ssub.s32 2048, 2048
      %69 = vsyncadd [#allocation9], %s68
      %s70 = sshll.u32 [#allocation10], 4
      %s71 = int_to_ptr.vmem [resolvable:$true] %s70
      %76 = dma.hbm_to_vmem [thread:$0]  %s6, 2048, %s71, [#allocation9], 128, 128, 8
    $region29: #{lstm_forward.1} parent=1 // pred_fallthru
      _
    // Predicated region
    $region30: #{lstm_forward.1} parent=1 // pred_check
      _
    $region31: #{lstm_forward.1} parent=1 // pred_check_branch
      %78 = sbr.rel (0) target = $region33
    $region32: #{lstm_forward.1} parent=1 // pred_region
      _
    $region33: #{lstm_forward.1} parent=1 // pred_fallthru
      _
    // Predicated region
    $region34: #{lstm_forward.1} parent=1 // pred_check
      _
    $region35: #{lstm_forward.1} parent=1 // pred_check_branch
      %80 = sbr.rel (0) target = $region37
    $region36: #{lstm_forward.1} parent=1 // pred_region
      %81 = dma.done [#allocation3], 128
    $region37: #{lstm_forward.1} parent=1 // pred_fallthru
      _
    // Predicated region
    $region38: #{lstm_forward.1} parent=1 // pred_check
      _
    $region39: #{lstm_forward.1} parent=1 // pred_check_branch
      %83 = sbr.rel (0) target = $region41
    $region40: #{lstm_forward.1} parent=1 // pred_region
      %84 = dma.done [#allocation6], 1536
    $region41: #{lstm_forward.1} parent=1 // pred_fallthru
      _
    // Predicated region
    $region42: #{lstm_forward.1} parent=1 // pred_check
      _
    $region43: #{lstm_forward.1} parent=1 // pred_check_branch
      %86 = sbr.rel (0) target = $region45
    $region44: #{lstm_forward.1} parent=1 // pred_region
      %87 = dma.done [#allocation6], 8192
    $region45: #{lstm_forward.1} parent=1 // pred_fallthru
      _
    // Predicated region
    $region46: #{lstm_forward.1} parent=1 // pred_check
      _
    $region47: #{lstm_forward.1} parent=1 // pred_check_branch
      %89 = sbr.rel (0) target = $region49
    $region48: #{lstm_forward.1} parent=1 // pred_region
      %90 = dma.done [#allocation9], 64
    $region49: #{lstm_forward.1} parent=1 // pred_fallthru
      _
    // Predicated region
    $region50: #{lstm_forward.1} parent=1 // pred_check
      _
    $region51: #{lstm_forward.1} parent=1 // pred_check_branch
      %92 = sbr.rel (0) target = $region53
    $region52: #{lstm_forward.1} parent=1 // pred_region
      %93 = dma.done [#allocation9], 2048
    $region53: #{lstm_forward.1} parent=1 // pred_fallthru
      _
    %v95 = vld [vmem:[#allocation2] sm:$0xff]
    %v96 = vld [vmem:[#allocation5] sm:$0xff]
    %v97 = vld [vmem:[#allocation5 + $0x8] sm:$0xff]
    %v98 = vld [vmem:[#allocation5 + $0x10] sm:$0xff]
    %v99 = vld [vmem:[#allocation5 + $0x18] sm:$0xff]
    %v100 = vld [vmem:[#allocation5 + $0x20] sm:$0xff]
    %v101 = vld [vmem:[#allocation5 + $0x28] sm:$0xff]
    %v102 = vld [vmem:[#allocation5 + $0x30] sm:$0xff]
    %v103 = vld [vmem:[#allocation5 + $0x38] sm:$0xff]
    %v104 = vld [vmem:[#allocation5 + $0x40] sm:$0xf]
    %v105 = vld [vmem:[#allocation5 + $0x48] sm:$0xf]
    %v106 = vld [vmem:[#allocation5 + $0x50] sm:$0xf]
    %v107 = vld [vmem:[#allocation5 + $0x58] sm:$0xf]
    %v108 = vld [vmem:[#allocation8] sm:$0xf]
    %v110 = vlaneseq
    %v111 = vshrl.u32 %v110, 7
    %v112 = vsub.s32 0, %v111
    %v113 = vrot.slane %v108, %v112
    %v114 = vlaneseq
    %v115 = vshrl.u32 %v114, 7
    %v116 = vsub.s32 1, %v115
    %v117 = vrot.slane %v108, %v116
    %v118 = vlaneseq
    %v119 = vshrl.u32 %v118, 7
    %v120 = vsub.s32 2, %v119
    %v121 = vrot.slane %v108, %v120
    %v122 = vlaneseq
    %v123 = vshrl.u32 %v122, 7
    %v124 = vsub.s32 3, %v123
    %v125 = vrot.slane %v108, %v124
    %vm130 = vcmask 162816
    %v132 = vsel %vm130, %v95, 0
    %vm134 = vcmask 1043456
    %v136 = vsel %vm134, %v104, 0
    %v139 = vsel %vm134, %v105, 0
    %v142 = vsel %vm134, %v106, 0
    %v145 = vsel %vm134, %v107, 0
    %147 = vmatprep.subr.mxu0 %v97
    %148 = vmatpush1.msra.mxu0 %v96
    %149 = vmatprep.subr.mxu0 %v101
    %150 = vmatpush1.msra.mxu0 %v100
    %151 = vmatprep.subr.mxu0 %v139
    %152 = vmatpush1.msra.mxu0 %v136
    %153 = vmatprep.subr.mxu0 0.0
    %154 = vmatpush1.msra.mxu0 0.0
    %155 = vmatprep.subr.mxu0 0.0
    %156 = vmatpush1.msra.mxu0 0.0
    %157 = vmatprep.subr.mxu0 0.0
    %158 = vmatpush1.msra.mxu0 0.0
    %159 = vmatprep.subr.mxu0 0.0
    %160 = vmatpush1.msra.mxu0 0.0
    %161 = vmatprep.subr.mxu0 0.0
    %162 = vmatpush1.msra.mxu0 0.0
    %163 = vmatprep.subr.mxu0 0.0
    %164 = vmatpush1.msra.mxu0 0.0
    %165 = vmatprep.subr.mxu0 0.0
    %166 = vmatpush1.msra.mxu0 0.0
    %167 = vmatprep.subr.mxu0 0.0
    %168 = vmatpush1.msra.mxu0 0.0
    %169 = vmatprep.subr.mxu0 0.0
    %170 = vmatpush1.msra.mxu0 0.0
    %171 = vmatprep.subr.mxu0 0.0
    %172 = vmatpush1.msra.mxu0 0.0
    %173 = vmatprep.subr.mxu0 0.0
    %174 = vmatpush1.msra.mxu0 0.0
    %175 = vmatprep.subr.mxu0 0.0
    %176 = vmatpush1.msra.mxu0 0.0
    %177 = vmatprep.subr.mxu0 0.0
    %178 = vmatpush1.msra.mxu0 0.0
    %179 = vmatprep.subr.mxu0 0.0
    %180 = vmatpush1.msra.mxu0 0.0
    %181 = vmatprep.subr.mxu0 0.0
    %182 = vmatpush1.msra.mxu0 0.0
    %183 = vmatprep.subr.mxu0 0.0
    %184 = vmatpush1.msra.mxu0 0.0
    %185 = vmatprep.subr.mxu0 0.0
    %186 = vmatpush1.msra.mxu0 0.0
    %187 = vmatprep.subr.mxu0 0.0
    %188 = vmatpush1.msra.mxu0 0.0
    %189 = vmatprep.subr.mxu0 0.0
    %190 = vmatpush1.msra.mxu0 0.0
    %191 = vmatprep.subr.mxu0 0.0
    %192 = vmatpush1.msra.mxu0 0.0
    %193 = vmatprep.subr.mxu0 0.0
    %194 = vmatpush1.msra.mxu0 0.0
    %195 = vmatprep.subr.mxu0 0.0
    %196 = vmatpush1.msra.mxu0 0.0
    %197 = vmatprep.subr.mxu0 0.0
    %198 = vmatpush1.msra.mxu0 0.0
    %199 = vmatprep.subr.mxu0 0.0
    %200 = vmatpush1.msra.mxu0 0.0
    %201 = vmatprep.subr.mxu0 0.0
    %202 = vmatpush1.msra.mxu0 0.0
    %203 = vmatprep.subr.mxu0 0.0
    %204 = vmatpush1.msra.mxu0 0.0
    %205 = vmatprep.subr.mxu0 0.0
    %206 = vmatpush1.msra.mxu0 0.0
    %207 = vmatprep.subr.mxu0 0.0
    %208 = vmatpush1.msra.mxu0 0.0
    %209 = vmatprep.subr.mxu0 0.0
    %210 = vmatpush1.msra.mxu0 0.0
    %211 = vmatprep.mubr.f32.mxu0 0.0
    %212 = vmatmul.mubr.f32.gmra.mrb[0].mxu0 %v132
    %v213 = vpop.f32.mrb[0].mxu0
    %v214 = vadd.f32 %v113, %v213
    %v215 = vpop.f32.mrb[0].mxu0
    %v216 = vadd.f32 %v117, %v215
    %217 = vdwg.mxu0
    %218 = vmatprep.subr.mxu0 %v99
    %219 = vmatpush1.msra.mxu0 %v98
    %220 = vmatprep.subr.mxu0 %v103
    %221 = vmatpush1.msra.mxu0 %v102
    %222 = vmatprep.subr.mxu0 %v145
    %223 = vmatpush1.msra.mxu0 %v142
    %224 = vmatprep.subr.mxu0 0.0
    %225 = vmatpush1.msra.mxu0 0.0
    %226 = vmatprep.subr.mxu0 0.0
    %227 = vmatpush1.msra.mxu0 0.0
    %228 = vmatprep.subr.mxu0 0.0
    %229 = vmatpush1.msra.mxu0 0.0
    %230 = vmatprep.subr.mxu0 0.0
    %231 = vmatpush1.msra.mxu0 0.0
    %232 = vmatprep.subr.mxu0 0.0
    %233 = vmatpush1.msra.mxu0 0.0
    %234 = vmatprep.subr.mxu0 0.0
    %235 = vmatpush1.msra.mxu0 0.0
    %236 = vmatprep.subr.mxu0 0.0
    %237 = vmatpush1.msra.mxu0 0.0
    %238 = vmatprep.subr.mxu0 0.0
    %239 = vmatpush1.msra.mxu0 0.0
    %240 = vmatprep.subr.mxu0 0.0
    %241 = vmatpush1.msra.mxu0 0.0
    %242 = vmatprep.subr.mxu0 0.0
    %243 = vmatpush1.msra.mxu0 0.0
    %244 = vmatprep.subr.mxu0 0.0
    %245 = vmatpush1.msra.mxu0 0.0
    %246 = vmatprep.subr.mxu0 0.0
    %247 = vmatpush1.msra.mxu0 0.0
    %248 = vmatprep.subr.mxu0 0.0
    %249 = vmatpush1.msra.mxu0 0.0
    %250 = vmatprep.subr.mxu0 0.0
    %251 = vmatpush1.msra.mxu0 0.0
    %252 = vmatprep.subr.mxu0 0.0
    %253 = vmatpush1.msra.mxu0 0.0
    %254 = vmatprep.subr.mxu0 0.0
    %255 = vmatpush1.msra.mxu0 0.0
    %256 = vmatprep.subr.mxu0 0.0
    %257 = vmatpush1.msra.mxu0 0.0
    %258 = vmatprep.subr.mxu0 0.0
    %259 = vmatpush1.msra.mxu0 0.0
    %260 = vmatprep.subr.mxu0 0.0
    %261 = vmatpush1.msra.mxu0 0.0
    %262 = vmatprep.subr.mxu0 0.0
    %263 = vmatpush1.msra.mxu0 0.0
    %264 = vmatprep.subr.mxu0 0.0
    %265 = vmatpush1.msra.mxu0 0.0
    %266 = vmatprep.subr.mxu0 0.0
    %267 = vmatpush1.msra.mxu0 0.0
    %268 = vmatprep.subr.mxu0 0.0
    %269 = vmatpush1.msra.mxu0 0.0
    %270 = vmatprep.subr.mxu0 0.0
    %271 = vmatpush1.msra.mxu0 0.0
    %272 = vmatprep.subr.mxu0 0.0
    %273 = vmatpush1.msra.mxu0 0.0
    %274 = vmatprep.subr.mxu0 0.0
    %275 = vmatpush1.msra.mxu0 0.0
    %276 = vmatprep.subr.mxu0 0.0
    %277 = vmatpush1.msra.mxu0 0.0
    %278 = vmatprep.subr.mxu0 0.0
    %279 = vmatpush1.msra.mxu0 0.0
    %280 = vmatprep.subr.mxu0 0.0
    %281 = vmatpush1.msra.mxu0 0.0
    %282 = vmatprep.mubr.f32.mxu0 0.0
    %283 = vmatmul.mubr.f32.gmra.mrb[0].mxu0 %v132
    %v284 = vpop.f32.mrb[0].mxu0
    %v285 = vadd.f32 %v121, %v284
    %v286 = vpop.f32.mrb[0].mxu0
    %v287 = vadd.f32 %v125, %v286
    %288 = vdwg.mxu0
    %v289 = vld [vmem:[#allocation7] sm:$0xff]
    %v290 = vld [vmem:[#allocation7 + $0x8] sm:$0xff]
    %v291 = vld [vmem:[#allocation7 + $0x10] sm:$0xff]
    %v292 = vld [vmem:[#allocation7 + $0x18] sm:$0xff]
    %v293 = vld [vmem:[#allocation7 + $0x20] sm:$0xff]
    %v294 = vld [vmem:[#allocation7 + $0x28] sm:$0xff]
    %v295 = vld [vmem:[#allocation7 + $0x30] sm:$0xff]
    %v296 = vld [vmem:[#allocation7 + $0x38] sm:$0xff]
    %v297 = vld [vmem:[#allocation7 + $0x40] sm:$0xff]
    %v298 = vld [vmem:[#allocation7 + $0x48] sm:$0xff]
    %v299 = vld [vmem:[#allocation7 + $0x50] sm:$0xff]
    %v300 = vld [vmem:[#allocation7 + $0x58] sm:$0xff]
    %v301 = vld [vmem:[#allocation7 + $0x60] sm:$0xff]
    %v302 = vld [vmem:[#allocation7 + $0x68] sm:$0xff]
    %v303 = vld [vmem:[#allocation7 + $0x70] sm:$0xff]
    %v304 = vld [vmem:[#allocation7 + $0x78] sm:$0xff]
    %v305 = vld [vmem:[#allocation7 + $0x80] sm:$0xff]
    %v306 = vld [vmem:[#allocation7 + $0x88] sm:$0xff]
    %v307 = vld [vmem:[#allocation7 + $0x90] sm:$0xff]
    %v308 = vld [vmem:[#allocation7 + $0x98] sm:$0xff]
    %v309 = vld [vmem:[#allocation7 + $0xa0] sm:$0xff]
    %v310 = vld [vmem:[#allocation7 + $0xa8] sm:$0xff]
    %v311 = vld [vmem:[#allocation7 + $0xb0] sm:$0xff]
    %v312 = vld [vmem:[#allocation7 + $0xb8] sm:$0xff]
    %v313 = vld [vmem:[#allocation7 + $0xc0] sm:$0xff]
    %v314 = vld [vmem:[#allocation7 + $0xc8] sm:$0xff]
    %v315 = vld [vmem:[#allocation7 + $0xd0] sm:$0xff]
    %v316 = vld [vmem:[#allocation7 + $0xd8] sm:$0xff]
    %v317 = vld [vmem:[#allocation7 + $0xe0] sm:$0xff]
    %v318 = vld [vmem:[#allocation7 + $0xe8] sm:$0xff]
    %v319 = vld [vmem:[#allocation7 + $0xf0] sm:$0xff]
    %v320 = vld [vmem:[#allocation7 + $0xf8] sm:$0xff]
    %v321 = vld [vmem:[#allocation7 + $0x100] sm:$0xff]
    %v322 = vld [vmem:[#allocation7 + $0x108] sm:$0xff]
    %v323 = vld [vmem:[#allocation7 + $0x110] sm:$0xff]
    %v324 = vld [vmem:[#allocation7 + $0x118] sm:$0xff]
    %v325 = vld [vmem:[#allocation7 + $0x120] sm:$0xff]
    %v326 = vld [vmem:[#allocation7 + $0x128] sm:$0xff]
    %v327 = vld [vmem:[#allocation7 + $0x130] sm:$0xff]
    %v328 = vld [vmem:[#allocation7 + $0x138] sm:$0xff]
    %v329 = vld [vmem:[#allocation7 + $0x140] sm:$0xff]
    %v330 = vld [vmem:[#allocation7 + $0x148] sm:$0xff]
    %v331 = vld [vmem:[#allocation7 + $0x150] sm:$0xff]
    %v332 = vld [vmem:[#allocation7 + $0x158] sm:$0xff]
    %v333 = vld [vmem:[#allocation7 + $0x160] sm:$0xff]
    %v334 = vld [vmem:[#allocation7 + $0x168] sm:$0xff]
    %v335 = vld [vmem:[#allocation7 + $0x170] sm:$0xff]
    %v336 = vld [vmem:[#allocation7 + $0x178] sm:$0xff]
    %v337 = vld [vmem:[#allocation7 + $0x180] sm:$0xff]
    %v338 = vld [vmem:[#allocation7 + $0x188] sm:$0xff]
    %v339 = vld [vmem:[#allocation7 + $0x190] sm:$0xff]
    %v340 = vld [vmem:[#allocation7 + $0x198] sm:$0xff]
    %v341 = vld [vmem:[#allocation7 + $0x1a0] sm:$0xff]
    %v342 = vld [vmem:[#allocation7 + $0x1a8] sm:$0xff]
    %v343 = vld [vmem:[#allocation7 + $0x1b0] sm:$0xff]
    %v344 = vld [vmem:[#allocation7 + $0x1b8] sm:$0xff]
    %v345 = vld [vmem:[#allocation7 + $0x1c0] sm:$0xff]
    %v346 = vld [vmem:[#allocation7 + $0x1c8] sm:$0xff]
    %v347 = vld [vmem:[#allocation7 + $0x1d0] sm:$0xff]
    %v348 = vld [vmem:[#allocation7 + $0x1d8] sm:$0xff]
    %v349 = vld [vmem:[#allocation7 + $0x1e0] sm:$0xff]
    %v350 = vld [vmem:[#allocation7 + $0x1e8] sm:$0xff]
    %v351 = vld [vmem:[#allocation7 + $0x1f0] sm:$0xff]
    %v352 = vld [vmem:[#allocation7 + $0x1f8] sm:$0xff]
    %v353 = vpack.c.bf16 %v293, %v289
    %v354 = vpack.c.bf16 %v294, %v290
    %v355 = vpack.c.bf16 %v295, %v291
    %v356 = vpack.c.bf16 %v296, %v292
    %v357 = vpack.c.bf16 %v301, %v297
    %v358 = vpack.c.bf16 %v302, %v298
    %v359 = vpack.c.bf16 %v303, %v299
    %v360 = vpack.c.bf16 %v304, %v300
    %v361 = vpack.c.bf16 %v309, %v305
    %v362 = vpack.c.bf16 %v310, %v306
    %v363 = vpack.c.bf16 %v311, %v307
    %v364 = vpack.c.bf16 %v312, %v308
    %v365 = vpack.c.bf16 %v317, %v313
    %v366 = vpack.c.bf16 %v318, %v314
    %v367 = vpack.c.bf16 %v319, %v315
    %v368 = vpack.c.bf16 %v320, %v316
    %v369 = vpack.c.bf16 %v325, %v321
    %v370 = vpack.c.bf16 %v326, %v322
    %v371 = vpack.c.bf16 %v327, %v323
    %v372 = vpack.c.bf16 %v328, %v324
    %v373 = vpack.c.bf16 %v333, %v329
    %v374 = vpack.c.bf16 %v334, %v330
    %v375 = vpack.c.bf16 %v335, %v331
    %v376 = vpack.c.bf16 %v336, %v332
    %v377 = vpack.c.bf16 %v341, %v337
    %v378 = vpack.c.bf16 %v342, %v338
    %v379 = vpack.c.bf16 %v343, %v339
    %v380 = vpack.c.bf16 %v344, %v340
    %v381 = vpack.c.bf16 %v349, %v345
    %v382 = vpack.c.bf16 %v350, %v346
    %v383 = vpack.c.bf16 %v351, %v347
    %v384 = vpack.c.bf16 %v352, %v348
    %v385 = vld [vmem:[%s4] sm:$0x1]
    %v386 = vld [vmem:[%s5] sm:$0x1]
    %v387 = vld [vmem:[#allocation10] sm:$0xff]
    %v388 = vld [vmem:[#allocation10 + $0x8] sm:$0xff]
    %v389 = vld [vmem:[#allocation10 + $0x10] sm:$0xff]
    %v390 = vld [vmem:[#allocation10 + $0x18] sm:$0xff]
    %v391 = vld [vmem:[#allocation10 + $0x20] sm:$0xff]
    %v392 = vld [vmem:[#allocation10 + $0x28] sm:$0xff]
    %v393 = vld [vmem:[#allocation10 + $0x30] sm:$0xff]
    %v394 = vld [vmem:[#allocation10 + $0x38] sm:$0xff]
    %v395 = vld [vmem:[#allocation10 + $0x40] sm:$0xff]
    %v396 = vld [vmem:[#allocation10 + $0x48] sm:$0xff]
    %v397 = vld [vmem:[#allocation10 + $0x50] sm:$0xff]
    %v398 = vld [vmem:[#allocation10 + $0x58] sm:$0xff]
    %v399 = vld [vmem:[#allocation10 + $0x60] sm:$0xff]
    %v400 = vld [vmem:[#allocation10 + $0x68] sm:$0xff]
    %v401 = vld [vmem:[#allocation10 + $0x70] sm:$0xff]
    %v402 = vld [vmem:[#allocation10 + $0x78] sm:$0xff]
    %v403 = vld [vmem:[%s7] sm:$0x1]
    %v404 = vlaneseq
    %v405 = vand.u32 %v404, 127
    %vm406 = vcmp.lt.s32.totalorder %v405, 64
    %407 = vmatprep.subr.bf16.mxu0 %v354
    %408 = vmatpush1.bf16.msra.mxu0 %v353
    %409 = vmatprep.subr.bf16.mxu0 %v358
    %410 = vmatpush1.bf16.msra.mxu0 %v357
    %411 = vmatprep.subr.bf16.mxu0 %v362
    %412 = vmatpush1.bf16.msra.mxu0 %v361
    %413 = vmatprep.subr.bf16.mxu0 %v366
    %414 = vmatpush1.bf16.msra.mxu0 %v365
    %415 = vmatprep.subr.bf16.mxu0 %v370
    %416 = vmatpush1.bf16.msra.mxu0 %v369
    %417 = vmatprep.subr.bf16.mxu0 %v374
    %418 = vmatpush1.bf16.msra.mxu0 %v373
    %419 = vmatprep.subr.bf16.mxu0 %v378
    %420 = vmatpush1.bf16.msra.mxu0 %v377
    %421 = vmatprep.subr.bf16.mxu0 %v382
    %422 = vmatpush1.bf16.msra.mxu0 %v381
    %423 = vmatprep.subr.bf16.mxu0 0
    %424 = vmatpush1.bf16.msra.mxu0 0
    %425 = vmatprep.subr.bf16.mxu0 0
    %426 = vmatpush1.bf16.msra.mxu0 0
    %427 = vmatprep.subr.bf16.mxu0 0
    %428 = vmatpush1.bf16.msra.mxu0 0
    %429 = vmatprep.subr.bf16.mxu0 0
    %430 = vmatpush1.bf16.msra.mxu0 0
    %431 = vmatprep.subr.bf16.mxu0 0
    %432 = vmatpush1.bf16.msra.mxu0 0
    %433 = vmatprep.subr.bf16.mxu0 0
    %434 = vmatpush1.bf16.msra.mxu0 0
    %435 = vmatprep.subr.bf16.mxu0 0
    %436 = vmatpush1.bf16.msra.mxu0 0
    %437 = vmatprep.subr.bf16.mxu0 0
    %438 = vmatpush1.bf16.msra.mxu0 0
    %439 = vmatprep.mubr.bf16.mxu0 0
    %440 = vmatmul.mubr.bf16.gmra.mrb[0].mxu0 0
    %v441 = vpop.f32.mrb[0].mxu0
    %v442 = vadd.f32 0.0, %v441
    %v443 = vpop.f32.mrb[0].mxu0
    %v444 = vadd.f32 0.0, %v443
    %v445 = vpop.f32.mrb[0].mxu0
    %v446 = vpop.f32.mrb[0].mxu0
    %447 = vdwg.mxu0
    %448 = vmatprep.subr.bf16.mxu0 %v356
    %449 = vmatpush1.bf16.msra.mxu0 %v355
    %450 = vmatprep.subr.bf16.mxu0 %v360
    %451 = vmatpush1.bf16.msra.mxu0 %v359
    %452 = vmatprep.subr.bf16.mxu0 %v364
    %453 = vmatpush1.bf16.msra.mxu0 %v363
    %454 = vmatprep.subr.bf16.mxu0 %v368
    %455 = vmatpush1.bf16.msra.mxu0 %v367
    %456 = vmatprep.subr.bf16.mxu0 %v372
    %457 = vmatpush1.bf16.msra.mxu0 %v371
    %458 = vmatprep.subr.bf16.mxu0 %v376
    %459 = vmatpush1.bf16.msra.mxu0 %v375
    %460 = vmatprep.subr.bf16.mxu0 %v380
    %461 = vmatpush1.bf16.msra.mxu0 %v379
    %462 = vmatprep.subr.bf16.mxu0 %v384
    %463 = vmatpush1.bf16.msra.mxu0 %v383
    %464 = vmatprep.subr.bf16.mxu0 0
    %465 = vmatpush1.bf16.msra.mxu0 0
    %466 = vmatprep.subr.bf16.mxu0 0
    %467 = vmatpush1.bf16.msra.mxu0 0
    %468 = vmatprep.subr.bf16.mxu0 0
    %469 = vmatpush1.bf16.msra.mxu0 0
    %470 = vmatprep.subr.bf16.mxu0 0
    %471 = vmatpush1.bf16.msra.mxu0 0
    %472 = vmatprep.subr.bf16.mxu0 0
    %473 = vmatpush1.bf16.msra.mxu0 0
    %474 = vmatprep.subr.bf16.mxu0 0
    %475 = vmatpush1.bf16.msra.mxu0 0
    %476 = vmatprep.subr.bf16.mxu0 0
    %477 = vmatpush1.bf16.msra.mxu0 0
    %478 = vmatprep.subr.bf16.mxu0 0
    %479 = vmatpush1.bf16.msra.mxu0 0
    %480 = vmatprep.mubr.bf16.mxu0 0
    %481 = vmatmul.mubr.bf16.gmra.mrb[0].mxu0 0
    %v482 = vpop.f32.mrb[0].mxu0
    %v483 = vadd.f32 0.0, %v482
    %v484 = vpop.f32.mrb[0].mxu0
    %v485 = vadd.f32 0.0, %v484
    %v486 = vpop.f32.mrb[0].mxu0
    %v487 = vpop.f32.mrb[0].mxu0
    %488 = vdwg.mxu0
    %v489 = vadd.f32 %v214, %v442
    %v490 = vadd.f32 %v216, %v444
    %v491 = vadd.f32 %v285, %v483
    %v492 = vadd.f32 %v287, %v485
    %v493 = vxor.u32 %v489, 2147483648
    %v494 = vmul.f32 %v493, 1.442695
    %v495 = vpow.pop %v494
    %v496 = vadd.f32 %v495, 1.0
    %v497 = vrcp.pop %v496
    %v498 = vmul.f32 1.0, %v497
    %v499 = vxor.u32 %v490, 2147483648
    %v500 = vmul.f32 %v499, 1.442695
    %v501 = vpow.pop %v500
    %v502 = vadd.f32 %v501, 1.0
    %v503 = vrcp.pop %v502
    %v504 = vmul.f32 1.0, %v503
    %v505 = vtanh.pop %v491
    %v506 = vxor.u32 %v492, 2147483648
    %v507 = vmul.f32 %v506, 1.442695
    %v508 = vpow.pop %v507
    %v509 = vadd.f32 %v508, 1.0
    %v510 = vrcp.pop %v509
    %v511 = vmul.f32 1.0, %v510
    %v512 = vmul.f32 %v504, 0.0
    %v513 = vmul.f32 %v498, %v505
    %v514 = vadd.f32 %v512, %v513
    %v515 = vtanh.pop %v514
    %v516 = vmul.f32 %v511, %v515
    %vm517 = vcmask 1040384
    %v518 = vsel %vm517, %v516, 0.0
    %519 = vadd.xlane.f32.xlu0 %v518
    %v520 = vpop.xlane.xlu0 %519
    %v521 = vmul.f32 %v520, 0.015625
    %v522 = vsub.f32 %v516, %v521
    %v523 = vsel %vm406, %v522, 0.0
    %v524 = vmul.f32 %v523, %v523
    %v525 = vsel %vm517, %v524, 0.0
    %526 = vadd.xlane.f32.xlu0 %v525
    %v527 = vpop.xlane.xlu0 %526
    %v528 = vmul.f32 %v527, 0.015625
    %v529 = vadd.f32 %v528, 1e-05
    %v530 = vrsqrt.pop %v529
    %v531 = vmul.f32 %v523, %v530
    %v532 = vmul.f32 %v531, %v385
    %v533 = vadd.f32 %v532, %v386
    %534 = vmatprep.subr.mxu0 0.0
    %535 = vmatpush1.msra.mxu0 %v387
    %536 = vmatprep.subr.mxu0 0.0
    %537 = vmatpush1.msra.mxu0 %v388
    %538 = vmatprep.subr.mxu0 0.0
    %539 = vmatpush1.msra.mxu0 %v389
    %540 = vmatprep.subr.mxu0 0.0
    %541 = vmatpush1.msra.mxu0 %v390
    %542 = vmatprep.subr.mxu0 0.0
    %543 = vmatpush1.msra.mxu0 %v391
    %544 = vmatprep.subr.mxu0 0.0
    %545 = vmatpush1.msra.mxu0 %v392
    %546 = vmatprep.subr.mxu0 0.0
    %547 = vmatpush1.msra.mxu0 %v393
    %548 = vmatprep.subr.mxu0 0.0
    %549 = vmatpush1.msra.mxu0 %v394
    %550 = vmatprep.subr.mxu0 0.0
    %551 = vmatpush1.msra.mxu0 %v395
    %552 = vmatprep.subr.mxu0 0.0
    %553 = vmatpush1.msra.mxu0 %v396
    %554 = vmatprep.subr.mxu0 0.0
    %555 = vmatpush1.msra.mxu0 %v397
    %556 = vmatprep.subr.mxu0 0.0
    %557 = vmatpush1.msra.mxu0 %v398
    %558 = vmatprep.subr.mxu0 0.0
    %559 = vmatpush1.msra.mxu0 %v399
    %560 = vmatprep.subr.mxu0 0.0
    %561 = vmatpush1.msra.mxu0 %v400
    %562 = vmatprep.subr.mxu0 0.0
    %563 = vmatpush1.msra.mxu0 %v401
    %564 = vmatprep.subr.mxu0 0.0
    %565 = vmatpush1.msra.mxu0 %v402
    %566 = vmatprep.subr.mxu0 0.0
    %567 = vmatpush1.msra.mxu0 0.0
    %568 = vmatprep.subr.mxu0 0.0
    %569 = vmatpush1.msra.mxu0 0.0
    %570 = vmatprep.subr.mxu0 0.0
    %571 = vmatpush1.msra.mxu0 0.0
    %572 = vmatprep.subr.mxu0 0.0
    %573 = vmatpush1.msra.mxu0 0.0
    %574 = vmatprep.subr.mxu0 0.0
    %575 = vmatpush1.msra.mxu0 0.0
    %576 = vmatprep.subr.mxu0 0.0
    %577 = vmatpush1.msra.mxu0 0.0
    %578 = vmatprep.subr.mxu0 0.0
    %579 = vmatpush1.msra.mxu0 0.0
    %580 = vmatprep.subr.mxu0 0.0
    %581 = vmatpush1.msra.mxu0 0.0
    %582 = vmatprep.subr.mxu0 0.0
    %583 = vmatpush1.msra.mxu0 0.0
    %584 = vmatprep.subr.mxu0 0.0
    %585 = vmatpush1.msra.mxu0 0.0
    %586 = vmatprep.subr.mxu0 0.0
    %587 = vmatpush1.msra.mxu0 0.0
    %588 = vmatprep.subr.mxu0 0.0
    %589 = vmatpush1.msra.mxu0 0.0
    %590 = vmatprep.subr.mxu0 0.0
    %591 = vmatpush1.msra.mxu0 0.0
    %592 = vmatprep.subr.mxu0 0.0
    %593 = vmatpush1.msra.mxu0 0.0
    %594 = vmatprep.subr.mxu0 0.0
    %595 = vmatpush1.msra.mxu0 0.0
    %596 = vmatprep.subr.mxu0 0.0
    %597 = vmatpush1.msra.mxu0 0.0
    %598 = vmatprep.mubr.f32.mxu0 0.0
    %599 = vmatmul.mubr.f32.gmra.mrb[0].mxu0 %v533
    %v600 = vpop.f32.mrb[0].mxu0
    %v601 = vadd.f32 %v403, %v600
    %v602 = vpop.f32.mrb[0].mxu0
    %603 = vdwg.mxu0
    %v604 = vmax.f32 %v601, 0.0
    %v605 = vsub.f32 0.0, %v601
    %vm606 = vcmp.ne.f32.partialorder %v605, %v605
    %v607 = vadd.f32 %v601, 0.0
    %v608 = vand.u32 2147483647, %v605
    %v609 = vsub.f32 0.0, %v608
    %v610 = vmul.f32 %v609, 1.442695
    %v611 = vpow.pop %v610
    %v612 = vadd.f32 %v611, 1.0
    %v613 = vlog2.pop %v612
    %v614 = vmul.f32 %v613, 0.6931472
    %v615 = vmul.f32 -0.5, %v611
    %v616 = vadd.f32 %v615, 1.0
    %v617 = vmul.f32 %v616, %v611
    %v618 = vand.u32 2147483647, %v611
    %vm619 = vcmp.lt.f32.partialorder %v618, 0.0004427343
    %v620 = vsel %vm619, %v617, %v614
    %v621 = vadd.f32 %v604, %v620
    %v622 = vsel %vm606, %v607, %v621
    %623 = vst [vmem:[#allocation11] sm:$0x1] %v622
    %v624 = vpack.c.bf16 %v516, %v516
    %625 = vmatprep.subr.bf16.mxu0 %v354
    %626 = vmatpush1.bf16.msra.mxu0 %v353
    %627 = vmatprep.subr.bf16.mxu0 %v358
    %628 = vmatpush1.bf16.msra.mxu0 %v357
    %629 = vmatprep.subr.bf16.mxu0 %v362
    %630 = vmatpush1.bf16.msra.mxu0 %v361
    %631 = vmatprep.subr.bf16.mxu0 %v366
    %632 = vmatpush1.bf16.msra.mxu0 %v365
    %633 = vmatprep.subr.bf16.mxu0 %v370
    %634 = vmatpush1.bf16.msra.mxu0 %v369
    %635 = vmatprep.subr.bf16.mxu0 %v374
    %636 = vmatpush1.bf16.msra.mxu0 %v373
    %637 = vmatprep.subr.bf16.mxu0 %v378
    %638 = vmatpush1.bf16.msra.mxu0 %v377
    %639 = vmatprep.subr.bf16.mxu0 %v382
    %640 = vmatpush1.bf16.msra.mxu0 %v381
    %641 = vmatprep.subr.bf16.mxu0 0
    %642 = vmatpush1.bf16.msra.mxu0 0
    %643 = vmatprep.subr.bf16.mxu0 0
    %644 = vmatpush1.bf16.msra.mxu0 0
    %645 = vmatprep.subr.bf16.mxu0 0
    %646 = vmatpush1.bf16.msra.mxu0 0
    %647 = vmatprep.subr.bf16.mxu0 0
    %648 = vmatpush1.bf16.msra.mxu0 0
    %649 = vmatprep.subr.bf16.mxu0 0
    %650 = vmatpush1.bf16.msra.mxu0 0
    %651 = vmatprep.subr.bf16.mxu0 0
    %652 = vmatpush1.bf16.msra.mxu0 0
    %653 = vmatprep.subr.bf16.mxu0 0
    %654 = vmatpush1.bf16.msra.mxu0 0
    %655 = vmatprep.subr.bf16.mxu0 0
    %656 = vmatpush1.bf16.msra.mxu0 0
    %657 = vmatprep.mubr.bf16.mxu0 0
    %658 = vmatmul.mubr.bf16.gmra.mrb[0].mxu0 %v624
    %v659 = vpop.f32.mrb[0].mxu0
    %v660 = vadd.f32 0.0, %v659
    %v661 = vpop.f32.mrb[0].mxu0
    %v662 = vadd.f32 0.0, %v661
    %v663 = vpop.f32.mrb[0].mxu0
    %v664 = vpop.f32.mrb[0].mxu0
    %665 = vdwg.mxu0
    %666 = vmatprep.subr.bf16.mxu0 %v356
    %667 = vmatpush1.bf16.msra.mxu0 %v355
    %668 = vmatprep.subr.bf16.mxu0 %v360
    %669 = vmatpush1.bf16.msra.mxu0 %v359
    %670 = vmatprep.subr.bf16.mxu0 %v364
    %671 = vmatpush1.bf16.msra.mxu0 %v363
    %672 = vmatprep.subr.bf16.mxu0 %v368
    %673 = vmatpush1.bf16.msra.mxu0 %v367
    %674 = vmatprep.subr.bf16.mxu0 %v372
    %675 = vmatpush1.bf16.msra.mxu0 %v371
    %676 = vmatprep.subr.bf16.mxu0 %v376
    %677 = vmatpush1.bf16.msra.mxu0 %v375
    %678 = vmatprep.subr.bf16.mxu0 %v380
    %679 = vmatpush1.bf16.msra.mxu0 %v379
    %680 = vmatprep.subr.bf16.mxu0 %v384
    %681 = vmatpush1.bf16.msra.mxu0 %v383
    %682 = vmatprep.subr.bf16.mxu0 0
    %683 = vmatpush1.bf16.msra.mxu0 0
    %684 = vmatprep.subr.bf16.mxu0 0
    %685 = vmatpush1.bf16.msra.mxu0 0
    %686 = vmatprep.subr.bf16.mxu0 0
    %687 = vmatpush1.bf16.msra.mxu0 0
    %688 = vmatprep.subr.bf16.mxu0 0
    %689 = vmatpush1.bf16.msra.mxu0 0
    %690 = vmatprep.subr.bf16.mxu0 0
    %691 = vmatpush1.bf16.msra.mxu0 0
    %692 = vmatprep.subr.bf16.mxu0 0
    %693 = vmatpush1.bf16.msra.mxu0 0
    %694 = vmatprep.subr.bf16.mxu0 0
    %695 = vmatpush1.bf16.msra.mxu0 0
    %696 = vmatprep.subr.bf16.mxu0 0
    %697 = vmatpush1.bf16.msra.mxu0 0
    %698 = vmatprep.mubr.bf16.mxu0 0
    %699 = vmatmul.mubr.bf16.gmra.mrb[0].mxu0 %v624
    %v700 = vpop.f32.mrb[0].mxu0
    %v701 = vadd.f32 0.0, %v700
    %v702 = vpop.f32.mrb[0].mxu0
    %v703 = vadd.f32 0.0, %v702
    %v704 = vpop.f32.mrb[0].mxu0
    %v705 = vpop.f32.mrb[0].mxu0
    %706 = vdwg.mxu0
    %v711 = vrot.slane %v660, 7
    %v712 = vrot.slane %v662, 7
    %v713 = vrot.slane %v701, 7
    %v714 = vrot.slane %v703, 7
    %v719 = vadd.f32 %v214, %v711
    %v720 = vadd.f32 %v216, %v712
    %v721 = vadd.f32 %v285, %v713
    %v722 = vadd.f32 %v287, %v714
    %v723 = vxor.u32 %v719, 2147483648
    %v724 = vmul.f32 %v723, 1.442695
    %v725 = vpow.pop %v724
    %v726 = vadd.f32 %v725, 1.0
    %v727 = vrcp.pop %v726
    %v728 = vmul.f32 1.0, %v727
    %v729 = vxor.u32 %v720, 2147483648
    %v730 = vmul.f32 %v729, 1.442695
    %v731 = vpow.pop %v730
    %v732 = vadd.f32 %v731, 1.0
    %v733 = vrcp.pop %v732
    %v734 = vmul.f32 1.0, %v733
    %v735 = vtanh.pop %v721
    %v736 = vxor.u32 %v722, 2147483648
    %v737 = vmul.f32 %v736, 1.442695
    %v738 = vpow.pop %v737
    %v739 = vadd.f32 %v738, 1.0
    %v740 = vrcp.pop %v739
    %v741 = vmul.f32 1.0, %v740
    %v743 = vrot.slane %v514, 7
    %v745 = vmul.f32 %v734, %v743
    %v746 = vmul.f32 %v728, %v735
    %v747 = vadd.f32 %v745, %v746
    %v748 = vtanh.pop %v747
    %v749 = vmul.f32 %v741, %v748
    %vm750 = vcmask 1041409
    %v751 = vsel %vm750, %v749, 0.0
    %752 = vadd.xlane.f32.xlu0 %v751
    %v753 = vpop.xlane.xlu0 %752
    %v754 = vmul.f32 %v753, 0.015625
    %v755 = vsub.f32 %v749, %v754
    %v756 = vsel %vm406, %v755, 0.0
    %v757 = vmul.f32 %v756, %v756
    %v758 = vsel %vm750, %v757, 0.0
    %759 = vadd.xlane.f32.xlu0 %v758
    %v760 = vpop.xlane.xlu0 %759
    %v761 = vmul.f32 %v760, 0.015625
    %v762 = vadd.f32 %v761, 1e-05
    %v763 = vrsqrt.pop %v762
    %v764 = vmul.f32 %v756, %v763
    %v766 = vlaneseq
    %v767 = vshrl.u32 %v766, 7
    %v768 = vsub.s32 0, %v767
    %v769 = vrot.slane %v385, %v768
    %v771 = vmul.f32 %v764, %v769
    %v773 = vlaneseq
    %v774 = vshrl.u32 %v773, 7
    %v775 = vsub.s32 0, %v774
    %v776 = vrot.slane %v386, %v775
    %v778 = vadd.f32 %v771, %v776
    %v780 = vrot.slane %v778, 1
    %782 = vmatprep.subr.mxu0 0.0
    %783 = vmatpush1.msra.mxu0 %v387
    %784 = vmatprep.subr.mxu0 0.0
    %785 = vmatpush1.msra.mxu0 %v388
    %786 = vmatprep.subr.mxu0 0.0
    %787 = vmatpush1.msra.mxu0 %v389
    %788 = vmatprep.subr.mxu0 0.0
    %789 = vmatpush1.msra.mxu0 %v390
    %790 = vmatprep.subr.mxu0 0.0
    %791 = vmatpush1.msra.mxu0 %v391
    %792 = vmatprep.subr.mxu0 0.0
    %793 = vmatpush1.msra.mxu0 %v392
    %794 = vmatprep.subr.mxu0 0.0
    %795 = vmatpush1.msra.mxu0 %v393
    %796 = vmatprep.subr.mxu0 0.0
    %797 = vmatpush1.msra.mxu0 %v394
    %798 = vmatprep.subr.mxu0 0.0
    %799 = vmatpush1.msra.mxu0 %v395
    %800 = vmatprep.subr.mxu0 0.0
    %801 = vmatpush1.msra.mxu0 %v396
    %802 = vmatprep.subr.mxu0 0.0
    %803 = vmatpush1.msra.mxu0 %v397
    %804 = vmatprep.subr.mxu0 0.0
    %805 = vmatpush1.msra.mxu0 %v398
    %806 = vmatprep.subr.mxu0 0.0
    %807 = vmatpush1.msra.mxu0 %v399
    %808 = vmatprep.subr.mxu0 0.0
    %809 = vmatpush1.msra.mxu0 %v400
    %810 = vmatprep.subr.mxu0 0.0
    %811 = vmatpush1.msra.mxu0 %v401
    %812 = vmatprep.subr.mxu0 0.0
    %813 = vmatpush1.msra.mxu0 %v402
    %814 = vmatprep.subr.mxu0 0.0
    %815 = vmatpush1.msra.mxu0 0.0
    %816 = vmatprep.subr.mxu0 0.0
    %817 = vmatpush1.msra.mxu0 0.0
    %818 = vmatprep.subr.mxu0 0.0
    %819 = vmatpush1.msra.mxu0 0.0
    %820 = vmatprep.subr.mxu0 0.0
    %821 = vmatpush1.msra.mxu0 0.0
    %822 = vmatprep.subr.mxu0 0.0
    %823 = vmatpush1.msra.mxu0 0.0
    %824 = vmatprep.subr.mxu0 0.0
    %825 = vmatpush1.msra.mxu0 0.0
    %826 = vmatprep.subr.mxu0 0.0
    %827 = vmatpush1.msra.mxu0 0.0
    %828 = vmatprep.subr.mxu0 0.0
    %829 = vmatpush1.msra.mxu0 0.0
    %830 = vmatprep.subr.mxu0 0.0
    %831 = vmatpush1.msra.mxu0 0.0
    %832 = vmatprep.subr.mxu0 0.0
    %833 = vmatpush1.msra.mxu0 0.0
    %834 = vmatprep.subr.mxu0 0.0
    %835 = vmatpush1.msra.mxu0 0.0
    %836 = vmatprep.subr.mxu0 0.0
    %837 = vmatpush1.msra.mxu0 0.0
    %838 = vmatprep.subr.mxu0 0.0
    %839 = vmatpush1.msra.mxu0 0.0
    %840 = vmatprep.subr.mxu0 0.0
    %841 = vmatpush1.msra.mxu0 0.0
    %842 = vmatprep.subr.mxu0 0.0
    %843 = vmatpush1.msra.mxu0 0.0
    %844 = vmatprep.subr.mxu0 0.0
    %845 = vmatpush1.msra.mxu0 0.0
    %846 = vmatprep.mubr.f32.mxu0 0.0
    %847 = vmatmul.mubr.f32.gmra.mrb[0].mxu0 %v780
    %v848 = vpop.f32.mrb[0].mxu0
    %v849 = vadd.f32 %v403, %v848
    %v850 = vpop.f32.mrb[0].mxu0
    %851 = vdwg.mxu0
    %v852 = vmax.f32 %v849, 0.0
    %v853 = vsub.f32 0.0, %v849
    %vm854 = vcmp.ne.f32.partialorder %v853, %v853
    %v855 = vadd.f32 %v849, 0.0
    %v856 = vand.u32 2147483647, %v853
    %v857 = vsub.f32 0.0, %v856
    %v858 = vmul.f32 %v857, 1.442695
    %v859 = vpow.pop %v858
    %v860 = vadd.f32 %v859, 1.0
    %v861 = vlog2.pop %v860
    %v862 = vmul.f32 %v861, 0.6931472
    %v863 = vmul.f32 -0.5, %v859
    %v864 = vadd.f32 %v863, 1.0
    %v865 = vmul.f32 %v864, %v859
    %v866 = vand.u32 2147483647, %v859
    %vm867 = vcmp.lt.f32.partialorder %v866, 0.0004427343
    %v868 = vsel %vm867, %v865, %v862
    %v869 = vadd.f32 %v852, %v868
    %v870 = vsel %vm854, %v855, %v869
    %871 = vst [vmem:[#allocation11 + $0x1] sm:$0x1] %v870
    %v872 = vpack.c.bf16 %v749, %v749
    %v874 = vshrl.u32 %v872, 16
    %877 = vmatprep.subr.bf16.mxu0 %v354
    %878 = vmatpush1.bf16.msra.mxu0 %v353
    %879 = vmatprep.subr.bf16.mxu0 %v358
    %880 = vmatpush1.bf16.msra.mxu0 %v357
    %881 = vmatprep.subr.bf16.mxu0 %v362
    %882 = vmatpush1.bf16.msra.mxu0 %v361
    %883 = vmatprep.subr.bf16.mxu0 %v366
    %884 = vmatpush1.bf16.msra.mxu0 %v365
    %885 = vmatprep.subr.bf16.mxu0 %v370
    %886 = vmatpush1.bf16.msra.mxu0 %v369
    %887 = vmatprep.subr.bf16.mxu0 %v374
    %888 = vmatpush1.bf16.msra.mxu0 %v373
    %889 = vmatprep.subr.bf16.mxu0 %v378
    %890 = vmatpush1.bf16.msra.mxu0 %v377
    %891 = vmatprep.subr.bf16.mxu0 %v382
    %892 = vmatpush1.bf16.msra.mxu0 %v381
    %893 = vmatprep.subr.bf16.mxu0 0
    %894 = vmatpush1.bf16.msra.mxu0 0
    %895 = vmatprep.subr.bf16.mxu0 0
    %896 = vmatpush1.bf16.msra.mxu0 0
    %897 = vmatprep.subr.bf16.mxu0 0
    %898 = vmatpush1.bf16.msra.mxu0 0
    %899 = vmatprep.subr.bf16.mxu0 0
    %900 = vmatpush1.bf16.msra.mxu0 0
    %901 = vmatprep.subr.bf16.mxu0 0
    %902 = vmatpush1.bf16.msra.mxu0 0
    %903 = vmatprep.subr.bf16.mxu0 0
    %904 = vmatpush1.bf16.msra.mxu0 0
    %905 = vmatprep.subr.bf16.mxu0 0
    %906 = vmatpush1.bf16.msra.mxu0 0
    %907 = vmatprep.subr.bf16.mxu0 0
    %908 = vmatpush1.bf16.msra.mxu0 0
    %909 = vmatprep.mubr.bf16.mxu0 0
    %910 = vmatmul.mubr.bf16.gmra.mrb[0].mxu0 %v874
    %v911 = vpop.f32.mrb[0].mxu0
    %v912 = vadd.f32 0.0, %v911
    %v913 = vpop.f32.mrb[0].mxu0
    %v914 = vadd.f32 0.0, %v913
    %v915 = vpop.f32.mrb[0].mxu0
    %v916 = vpop.f32.mrb[0].mxu0
    %917 = vdwg.mxu0
    %918 = vmatprep.subr.bf16.mxu0 %v356
    %919 = vmatpush1.bf16.msra.mxu0 %v355
    %920 = vmatprep.subr.bf16.mxu0 %v360
    %921 = vmatpush1.bf16.msra.mxu0 %v359
    %922 = vmatprep.subr.bf16.mxu0 %v364
    %923 = vmatpush1.bf16.msra.mxu0 %v363
    %924 = vmatprep.subr.bf16.mxu0 %v368
    %925 = vmatpush1.bf16.msra.mxu0 %v367
    %926 = vmatprep.subr.bf16.mxu0 %v372
    %927 = vmatpush1.bf16.msra.mxu0 %v371
    %928 = vmatprep.subr.bf16.mxu0 %v376
    %929 = vmatpush1.bf16.msra.mxu0 %v375
    %930 = vmatprep.subr.bf16.mxu0 %v380
    %931 = vmatpush1.bf16.msra.mxu0 %v379
    %932 = vmatprep.subr.bf16.mxu0 %v384
    %933 = vmatpush1.bf16.msra.mxu0 %v383
    %934 = vmatprep.subr.bf16.mxu0 0
    %935 = vmatpush1.bf16.msra.mxu0 0
    %936 = vmatprep.subr.bf16.mxu0 0
    %937 = vmatpush1.bf16.msra.mxu0 0
    %938 = vmatprep.subr.bf16.mxu0 0
    %939 = vmatpush1.bf16.msra.mxu0 0
    %940 = vmatprep.subr.bf16.mxu0 0
    %941 = vmatpush1.bf16.msra.mxu0 0
    %942 = vmatprep.subr.bf16.mxu0 0
    %943 = vmatpush1.bf16.msra.mxu0 0
    %944 = vmatprep.subr.bf16.mxu0 0
    %945 = vmatpush1.bf16.msra.mxu0 0
    %946 = vmatprep.subr.bf16.mxu0 0
    %947 = vmatpush1.bf16.msra.mxu0 0
    %948 = vmatprep.subr.bf16.mxu0 0
    %949 = vmatpush1.bf16.msra.mxu0 0
    %950 = vmatprep.mubr.bf16.mxu0 0
    %951 = vmatmul.mubr.bf16.gmra.mrb[0].mxu0 %v874
    %v952 = vpop.f32.mrb[0].mxu0
    %v953 = vadd.f32 0.0, %v952
    %v954 = vpop.f32.mrb[0].mxu0
    %v955 = vadd.f32 0.0, %v954
    %v956 = vpop.f32.mrb[0].mxu0
    %v957 = vpop.f32.mrb[0].mxu0
    %958 = vdwg.mxu0
    %v963 = vrot.slane %v912, 6
    %v964 = vrot.slane %v914, 6
    %v965 = vrot.slane %v953, 6
    %v966 = vrot.slane %v955, 6
    %v971 = vadd.f32 %v214, %v963
    %v972 = vadd.f32 %v216, %v964
    %v973 = vadd.f32 %v285, %v965
    %v974 = vadd.f32 %v287, %v966
    %v975 = vxor.u32 %v971, 2147483648
    %v976 = vmul.f32 %v975, 1.442695
    %v977 = vpow.pop %v976
    %v978 = vadd.f32 %v977, 1.0
    %v979 = vrcp.pop %v978
    %v980 = vmul.f32 1.0, %v979
    %v981 = vxor.u32 %v972, 2147483648
    %v982 = vmul.f32 %v981, 1.442695
    %v983 = vpow.pop %v982
    %v984 = vadd.f32 %v983, 1.0
    %v985 = vrcp.pop %v984
    %v986 = vmul.f32 1.0, %v985
    %v987 = vtanh.pop %v973
    %v988 = vxor.u32 %v974, 2147483648
    %v989 = vmul.f32 %v988, 1.442695
    %v990 = vpow.pop %v989
    %v991 = vadd.f32 %v990, 1.0
    %v992 = vrcp.pop %v991
    %v993 = vmul.f32 1.0, %v992
    %v995 = vrot.slane %v747, 7
    %v997 = vmul.f32 %v986, %v995
    %v998 = vmul.f32 %v980, %v987
    %v999 = vadd.f32 %v997, %v998
    %v1000 = vtanh.pop %v999
    %v1001 = vmul.f32 %v993, %v1000
    %vm1002 = vcmask 1042434
    %v1003 = vsel %vm1002, %v1001, 0.0
    %1004 = vadd.xlane.f32.xlu0 %v1003
    %v1005 = vpop.xlane.xlu0 %1004
    %v1006 = vmul.f32 %v1005, 0.015625
    %v1007 = vsub.f32 %v1001, %v1006
    %v1008 = vsel %vm406, %v1007, 0.0
    %v1009 = vmul.f32 %v1008, %v1008
    %v1010 = vsel %vm1002, %v1009, 0.0
    %1011 = vadd.xlane.f32.xlu0 %v1010
    %v1012 = vpop.xlane.xlu0 %1011
    %v1013 = vmul.f32 %v1012, 0.015625
    %v1014 = vadd.f32 %v1013, 1e-05
    %v1015 = vrsqrt.pop %v1014
    %v1016 = vmul.f32 %v1008, %v1015
    %v1017 = vmul.f32 %v1016, %v769
    %v1018 = vadd.f32 %v1017, %v776
    %v1020 = vrot.slane %v1018, 2
    %1022 = vmatprep.subr.mxu0 0.0
    %1023 = vmatpush1.msra.mxu0 %v387
    %1024 = vmatprep.subr.mxu0 0.0
    %1025 = vmatpush1.msra.mxu0 %v388
    %1026 = vmatprep.subr.mxu0 0.0
    %1027 = vmatpush1.msra.mxu0 %v389
    %1028 = vmatprep.subr.mxu0 0.0
    %1029 = vmatpush1.msra.mxu0 %v390
    %1030 = vmatprep.subr.mxu0 0.0
    %1031 = vmatpush1.msra.mxu0 %v391
    %1032 = vmatprep.subr.mxu0 0.0
    %1033 = vmatpush1.msra.mxu0 %v392
    %1034 = vmatprep.subr.mxu0 0.0
    %1035 = vmatpush1.msra.mxu0 %v393
    %1036 = vmatprep.subr.mxu0 0.0
    %1037 = vmatpush1.msra.mxu0 %v394
    %1038 = vmatprep.subr.mxu0 0.0
    %1039 = vmatpush1.msra.mxu0 %v395
    %1040 = vmatprep.subr.mxu0 0.0
    %1041 = vmatpush1.msra.mxu0 %v396
    %1042 = vmatprep.subr.mxu0 0.0
    %1043 = vmatpush1.msra.mxu0 %v397
    %1044 = vmatprep.subr.mxu0 0.0
    %1045 = vmatpush1.msra.mxu0 %v398
    %1046 = vmatprep.subr.mxu0 0.0
    %1047 = vmatpush1.msra.mxu0 %v399
    %1048 = vmatprep.subr.mxu0 0.0
    %1049 = vmatpush1.msra.mxu0 %v400
    %1050 = vmatprep.subr.mxu0 0.0
    %1051 = vmatpush1.msra.mxu0 %v401
    %1052 = vmatprep.subr.mxu0 0.0
    %1053 = vmatpush1.msra.mxu0 %v402
    %1054 = vmatprep.subr.mxu0 0.0
    %1055 = vmatpush1.msra.mxu0 0.0
    %1056 = vmatprep.subr.mxu0 0.0
    %1057 = vmatpush1.msra.mxu0 0.0
    %1058 = vmatprep.subr.mxu0 0.0
    %1059 = vmatpush1.msra.mxu0 0.0
    %1060 = vmatprep.subr.mxu0 0.0
    %1061 = vmatpush1.msra.mxu0 0.0
    %1062 = vmatprep.subr.mxu0 0.0
    %1063 = vmatpush1.msra.mxu0 0.0
    %1064 = vmatprep.subr.mxu0 0.0
    %1065 = vmatpush1.msra.mxu0 0.0
    %1066 = vmatprep.subr.mxu0 0.0
    %1067 = vmatpush1.msra.mxu0 0.0
    %1068 = vmatprep.subr.mxu0 0.0
    %1069 = vmatpush1.msra.mxu0 0.0
    %1070 = vmatprep.subr.mxu0 0.0
    %1071 = vmatpush1.msra.mxu0 0.0
    %1072 = vmatprep.subr.mxu0 0.0
    %1073 = vmatpush1.msra.mxu0 0.0
    %1074 = vmatprep.subr.mxu0 0.0
    %1075 = vmatpush1.msra.mxu0 0.0
    %1076 = vmatprep.subr.mxu0 0.0
    %1077 = vmatpush1.msra.mxu0 0.0
    %1078 = vmatprep.subr.mxu0 0.0
    %1079 = vmatpush1.msra.mxu0 0.0
    %1080 = vmatprep.subr.mxu0 0.0
    %1081 = vmatpush1.msra.mxu0 0.0
    %1082 = vmatprep.subr.mxu0 0.0
    %1083 = vmatpush1.msra.mxu0 0.0
    %1084 = vmatprep.subr.mxu0 0.0
    %1085 = vmatpush1.msra.mxu0 0.0
    %1086 = vmatprep.mubr.f32.mxu0 0.0
    %1087 = vmatmul.mubr.f32.gmra.mrb[0].mxu0 %v1020
    %v1088 = vpop.f32.mrb[0].mxu0
    %v1089 = vadd.f32 %v403, %v1088
    %v1090 = vpop.f32.mrb[0].mxu0
    %1091 = vdwg.mxu0
    %v1092 = vmax.f32 %v1089, 0.0
    %v1093 = vsub.f32 0.0, %v1089
    %vm1094 = vcmp.ne.f32.partialorder %v1093, %v1093
    %v1095 = vadd.f32 %v1089, 0.0
    %v1096 = vand.u32 2147483647, %v1093
    %v1097 = vsub.f32 0.0, %v1096
    %v1098 = vmul.f32 %v1097, 1.442695
    %v1099 = vpow.pop %v1098
    %v1100 = vadd.f32 %v1099, 1.0
    %v1101 = vlog2.pop %v1100
    %v1102 = vmul.f32 %v1101, 0.6931472
    %v1103 = vmul.f32 -0.5, %v1099
    %v1104 = vadd.f32 %v1103, 1.0
    %v1105 = vmul.f32 %v1104, %v1099
    %v1106 = vand.u32 2147483647, %v1099
    %vm1107 = vcmp.lt.f32.partialorder %v1106, 0.0004427343
    %v1108 = vsel %vm1107, %v1105, %v1102
    %v1109 = vadd.f32 %v1092, %v1108
    %v1110 = vsel %vm1094, %v1095, %v1109
    %1111 = vst [vmem:[#allocation11 + $0x2] sm:$0x1] %v1110
    %v1112 = vpack.c.bf16 %v1001, %v1001
    %v1114 = vrot.slane %v1112, 1
    %1116 = vmatprep.subr.bf16.mxu0 %v354
    %1117 = vmatpush1.bf16.msra.mxu0 %v353
    %1118 = vmatprep.subr.bf16.mxu0 %v358
    %1119 = vmatpush1.bf16.msra.mxu0 %v357
    %1120 = vmatprep.subr.bf16.mxu0 %v362
    %1121 = vmatpush1.bf16.msra.mxu0 %v361
    %1122 = vmatprep.subr.bf16.mxu0 %v366
    %1123 = vmatpush1.bf16.msra.mxu0 %v365
    %1124 = vmatprep.subr.bf16.mxu0 %v370
    %1125 = vmatpush1.bf16.msra.mxu0 %v369
    %1126 = vmatprep.subr.bf16.mxu0 %v374
    %1127 = vmatpush1.bf16.msra.mxu0 %v373
    %1128 = vmatprep.subr.bf16.mxu0 %v378
    %1129 = vmatpush1.bf16.msra.mxu0 %v377
    %1130 = vmatprep.subr.bf16.mxu0 %v382
    %1131 = vmatpush1.bf16.msra.mxu0 %v381
    %1132 = vmatprep.subr.bf16.mxu0 0
    %1133 = vmatpush1.bf16.msra.mxu0 0
    %1134 = vmatprep.subr.bf16.mxu0 0
    %1135 = vmatpush1.bf16.msra.mxu0 0
    %1136 = vmatprep.subr.bf16.mxu0 0
    %1137 = vmatpush1.bf16.msra.mxu0 0
    %1138 = vmatprep.subr.bf16.mxu0 0
    %1139 = vmatpush1.bf16.msra.mxu0 0
    %1140 = vmatprep.subr.bf16.mxu0 0
    %1141 = vmatpush1.bf16.msra.mxu0 0
    %1142 = vmatprep.subr.bf16.mxu0 0
    %1143 = vmatpush1.bf16.msra.mxu0 0
    %1144 = vmatprep.subr.bf16.mxu0 0
    %1145 = vmatpush1.bf16.msra.mxu0 0
    %1146 = vmatprep.subr.bf16.mxu0 0
    %1147 = vmatpush1.bf16.msra.mxu0 0
    %1148 = vmatprep.mubr.bf16.mxu0 0
    %1149 = vmatmul.mubr.bf16.gmra.mrb[0].mxu0 %v1114
    %v1150 = vpop.f32.mrb[0].mxu0
    %v1151 = vadd.f32 0.0, %v1150
    %v1152 = vpop.f32.mrb[0].mxu0
    %v1153 = vadd.f32 0.0, %v1152
    %v1154 = vpop.f32.mrb[0].mxu0
    %v1155 = vpop.f32.mrb[0].mxu0
    %1156 = vdwg.mxu0
    %1157 = vmatprep.subr.bf16.mxu0 %v356
    %1158 = vmatpush1.bf16.msra.mxu0 %v355
    %1159 = vmatprep.subr.bf16.mxu0 %v360
    %1160 = vmatpush1.bf16.msra.mxu0 %v359
    %1161 = vmatprep.subr.bf16.mxu0 %v364
    %1162 = vmatpush1.bf16.msra.mxu0 %v363
    %1163 = vmatprep.subr.bf16.mxu0 %v368
    %1164 = vmatpush1.bf16.msra.mxu0 %v367
    %1165 = vmatprep.subr.bf16.mxu0 %v372
    %1166 = vmatpush1.bf16.msra.mxu0 %v371
    %1167 = vmatprep.subr.bf16.mxu0 %v376
    %1168 = vmatpush1.bf16.msra.mxu0 %v375
    %1169 = vmatprep.subr.bf16.mxu0 %v380
    %1170 = vmatpush1.bf16.msra.mxu0 %v379
    %1171 = vmatprep.subr.bf16.mxu0 %v384
    %1172 = vmatpush1.bf16.msra.mxu0 %v383
    %1173 = vmatprep.subr.bf16.mxu0 0
    %1174 = vmatpush1.bf16.msra.mxu0 0
    %1175 = vmatprep.subr.bf16.mxu0 0
    %1176 = vmatpush1.bf16.msra.mxu0 0
    %1177 = vmatprep.subr.bf16.mxu0 0
    %1178 = vmatpush1.bf16.msra.mxu0 0
    %1179 = vmatprep.subr.bf16.mxu0 0
    %1180 = vmatpush1.bf16.msra.mxu0 0
    %1181 = vmatprep.subr.bf16.mxu0 0
    %1182 = vmatpush1.bf16.msra.mxu0 0
    %1183 = vmatprep.subr.bf16.mxu0 0
    %1184 = vmatpush1.bf16.msra.mxu0 0
    %1185 = vmatprep.subr.bf16.mxu0 0
    %1186 = vmatpush1.bf16.msra.mxu0 0
    %1187 = vmatprep.subr.bf16.mxu0 0
    %1188 = vmatpush1.bf16.msra.mxu0 0
    %1189 = vmatprep.mubr.bf16.mxu0 0
    %1190 = vmatmul.mubr.bf16.gmra.mrb[0].mxu0 %v1114
    %v1191 = vpop.f32.mrb[0].mxu0
    %v1192 = vadd.f32 0.0, %v1191
    %v1193 = vpop.f32.mrb[0].mxu0
    %v1194 = vadd.f32 0.0, %v1193
    %v1195 = vpop.f32.mrb[0].mxu0
    %v1196 = vpop.f32.mrb[0].mxu0
    %1197 = vdwg.mxu0
    %v1202 = vrot.slane %v1151, 5
    %v1203 = vrot.slane %v1153, 5
    %v1204 = vrot.slane %v1192, 5
    %v1205 = vrot.slane %v1194, 5
    %v1210 = vadd.f32 %v214, %v1202
    %v1211 = vadd.f32 %v216, %v1203
    %v1212 = vadd.f32 %v285, %v1204
    %v1213 = vadd.f32 %v287, %v1205
    %v1214 = vxor.u32 %v1210, 2147483648
    %v1215 = vmul.f32 %v1214, 1.442695
    %v1216 = vpow.pop %v1215
    %v1217 = vadd.f32 %v1216, 1.0
    %v1218 = vrcp.pop %v1217
    %v1219 = vmul.f32 1.0, %v1218
    %v1220 = vxor.u32 %v1211, 2147483648
    %v1221 = vmul.f32 %v1220, 1.442695
    %v1222 = vpow.pop %v1221
    %v1223 = vadd.f32 %v1222, 1.0
    %v1224 = vrcp.pop %v1223
    %v1225 = vmul.f32 1.0, %v1224
    %v1226 = vtanh.pop %v1212
    %v1227 = vxor.u32 %v1213, 2147483648
    %v1228 = vmul.f32 %v1227, 1.442695
    %v1229 = vpow.pop %v1228
    %v1230 = vadd.f32 %v1229, 1.0
    %v1231 = vrcp.pop %v1230
    %v1232 = vmul.f32 1.0, %v1231
    %v1234 = vrot.slane %v999, 7
    %v1236 = vmul.f32 %v1225, %v1234
    %v1237 = vmul.f32 %v1219, %v1226
    %v1238 = vadd.f32 %v1236, %v1237
    %v1239 = vtanh.pop %v1238
    %v1240 = vmul.f32 %v1232, %v1239
    %vm1241 = vcmask 1043459
    %v1242 = vsel %vm1241, %v1240, 0.0
    %1243 = vadd.xlane.f32.xlu0 %v1242
    %v1244 = vpop.xlane.xlu0 %1243
    %v1245 = vmul.f32 %v1244, 0.015625
    %v1246 = vsub.f32 %v1240, %v1245
    %v1247 = vsel %vm406, %v1246, 0.0
    %v1248 = vmul.f32 %v1247, %v1247
    %v1249 = vsel %vm1241, %v1248, 0.0
    %1250 = vadd.xlane.f32.xlu0 %v1249
    %v1251 = vpop.xlane.xlu0 %1250
    %v1252 = vmul.f32 %v1251, 0.015625
    %v1253 = vadd.f32 %v1252, 1e-05
    %v1254 = vrsqrt.pop %v1253
    %v1255 = vmul.f32 %v1247, %v1254
    %v1256 = vmul.f32 %v1255, %v769
    %v1257 = vadd.f32 %v1256, %v776
    %v1259 = vrot.slane %v1257, 3
    %1261 = vmatprep.subr.mxu0 0.0
    %1262 = vmatpush1.msra.mxu0 %v387
    %1263 = vmatprep.subr.mxu0 0.0
    %1264 = vmatpush1.msra.mxu0 %v388
    %1265 = vmatprep.subr.mxu0 0.0
    %1266 = vmatpush1.msra.mxu0 %v389
    %1267 = vmatprep.subr.mxu0 0.0
    %1268 = vmatpush1.msra.mxu0 %v390
    %1269 = vmatprep.subr.mxu0 0.0
    %1270 = vmatpush1.msra.mxu0 %v391
    %1271 = vmatprep.subr.mxu0 0.0
    %1272 = vmatpush1.msra.mxu0 %v392
    %1273 = vmatprep.subr.mxu0 0.0
    %1274 = vmatpush1.msra.mxu0 %v393
    %1275 = vmatprep.subr.mxu0 0.0
    %1276 = vmatpush1.msra.mxu0 %v394
    %1277 = vmatprep.subr.mxu0 0.0
    %1278 = vmatpush1.msra.mxu0 %v395
    %1279 = vmatprep.subr.mxu0 0.0
    %1280 = vmatpush1.msra.mxu0 %v396
    %1281 = vmatprep.subr.mxu0 0.0
    %1282 = vmatpush1.msra.mxu0 %v397
    %1283 = vmatprep.subr.mxu0 0.0
    %1284 = vmatpush1.msra.mxu0 %v398
    %1285 = vmatprep.subr.mxu0 0.0
    %1286 = vmatpush1.msra.mxu0 %v399
    %1287 = vmatprep.subr.mxu0 0.0
    %1288 = vmatpush1.msra.mxu0 %v400
    %1289 = vmatprep.subr.mxu0 0.0
    %1290 = vmatpush1.msra.mxu0 %v401
    %1291 = vmatprep.subr.mxu0 0.0
    %1292 = vmatpush1.msra.mxu0 %v402
    %1293 = vmatprep.subr.mxu0 0.0
    %1294 = vmatpush1.msra.mxu0 0.0
    %1295 = vmatprep.subr.mxu0 0.0
    %1296 = vmatpush1.msra.mxu0 0.0
    %1297 = vmatprep.subr.mxu0 0.0
    %1298 = vmatpush1.msra.mxu0 0.0
    %1299 = vmatprep.subr.mxu0 0.0
    %1300 = vmatpush1.msra.mxu0 0.0
    %1301 = vmatprep.subr.mxu0 0.0
    %1302 = vmatpush1.msra.mxu0 0.0
    %1303 = vmatprep.subr.mxu0 0.0
    %1304 = vmatpush1.msra.mxu0 0.0
    %1305 = vmatprep.subr.mxu0 0.0
    %1306 = vmatpush1.msra.mxu0 0.0
    %1307 = vmatprep.subr.mxu0 0.0
    %1308 = vmatpush1.msra.mxu0 0.0
    %1309 = vmatprep.subr.mxu0 0.0
    %1310 = vmatpush1.msra.mxu0 0.0
    %1311 = vmatprep.subr.mxu0 0.0
    %1312 = vmatpush1.msra.mxu0 0.0
    %1313 = vmatprep.subr.mxu0 0.0
    %1314 = vmatpush1.msra.mxu0 0.0
    %1315 = vmatprep.subr.mxu0 0.0
    %1316 = vmatpush1.msra.mxu0 0.0
    %1317 = vmatprep.subr.mxu0 0.0
    %1318 = vmatpush1.msra.mxu0 0.0
    %1319 = vmatprep.subr.mxu0 0.0
    %1320 = vmatpush1.msra.mxu0 0.0
    %1321 = vmatprep.subr.mxu0 0.0
    %1322 = vmatpush1.msra.mxu0 0.0
    %1323 = vmatprep.subr.mxu0 0.0
    %1324 = vmatpush1.msra.mxu0 0.0
    %1325 = vmatprep.mubr.f32.mxu0 0.0
    %1326 = vmatmul.mubr.f32.gmra.mrb[0].mxu0 %v1259
    %v1327 = vpop.f32.mrb[0].mxu0
    %v1328 = vadd.f32 %v403, %v1327
    %v1329 = vpop.f32.mrb[0].mxu0
    %1330 = vdwg.mxu0
    %v1331 = vmax.f32 %v1328, 0.0
    %v1332 = vsub.f32 0.0, %v1328
    %vm1333 = vcmp.ne.f32.partialorder %v1332, %v1332
    %v1334 = vadd.f32 %v1328, 0.0
    %v1335 = vand.u32 2147483647, %v1332
    %v1336 = vsub.f32 0.0, %v1335
    %v1337 = vmul.f32 %v1336, 1.442695
    %v1338 = vpow.pop %v1337
    %v1339 = vadd.f32 %v1338, 1.0
    %v1340 = vlog2.pop %v1339
    %v1341 = vmul.f32 %v1340, 0.6931472
    %v1342 = vmul.f32 -0.5, %v1338
    %v1343 = vadd.f32 %v1342, 1.0
    %v1344 = vmul.f32 %v1343, %v1338
    %v1345 = vand.u32 2147483647, %v1338
    %vm1346 = vcmp.lt.f32.partialorder %v1345, 0.0004427343
    %v1347 = vsel %vm1346, %v1344, %v1341
    %v1348 = vadd.f32 %v1331, %v1347
    %v1349 = vsel %vm1333, %v1334, %v1348
    %1350 = vst [vmem:[#allocation11 + $0x3] sm:$0x1] %v1349
    %v1351 = vpack.c.bf16 %v1240, %v1240
    %v1353 = vshrl.u32 %v1351, 16
    %v1355 = vrot.slane %v1353, 1
    %1357 = vmatprep.subr.bf16.mxu0 %v354
    %1358 = vmatpush1.bf16.msra.mxu0 %v353
    %1359 = vmatprep.subr.bf16.mxu0 %v358
    %1360 = vmatpush1.bf16.msra.mxu0 %v357
    %1361 = vmatprep.subr.bf16.mxu0 %v362
    %1362 = vmatpush1.bf16.msra.mxu0 %v361
    %1363 = vmatprep.subr.bf16.mxu0 %v366
    %1364 = vmatpush1.bf16.msra.mxu0 %v365
    %1365 = vmatprep.subr.bf16.mxu0 %v370
    %1366 = vmatpush1.bf16.msra.mxu0 %v369
    %1367 = vmatprep.subr.bf16.mxu0 %v374
    %1368 = vmatpush1.bf16.msra.mxu0 %v373
    %1369 = vmatprep.subr.bf16.mxu0 %v378
    %1370 = vmatpush1.bf16.msra.mxu0 %v377
    %1371 = vmatprep.subr.bf16.mxu0 %v382
    %1372 = vmatpush1.bf16.msra.mxu0 %v381
    %1373 = vmatprep.subr.bf16.mxu0 0
    %1374 = vmatpush1.bf16.msra.mxu0 0
    %1375 = vmatprep.subr.bf16.mxu0 0
    %1376 = vmatpush1.bf16.msra.mxu0 0
    %1377 = vmatprep.subr.bf16.mxu0 0
    %1378 = vmatpush1.bf16.msra.mxu0 0
    %1379 = vmatprep.subr.bf16.mxu0 0
    %1380 = vmatpush1.bf16.msra.mxu0 0
    %1381 = vmatprep.subr.bf16.mxu0 0
    %1382 = vmatpush1.bf16.msra.mxu0 0
    %1383 = vmatprep.subr.bf16.mxu0 0
    %1384 = vmatpush1.bf16.msra.mxu0 0
    %1385 = vmatprep.subr.bf16.mxu0 0
    %1386 = vmatpush1.bf16.msra.mxu0 0
    %1387 = vmatprep.subr.bf16.mxu0 0
    %1388 = vmatpush1.bf16.msra.mxu0 0
    %1389 = vmatprep.mubr.bf16.mxu0 0
    %1390 = vmatmul.mubr.bf16.gmra.mrb[0].mxu0 %v1355
    %v1391 = vpop.f32.mrb[0].mxu0
    %v1392 = vadd.f32 0.0, %v1391
    %v1393 = vpop.f32.mrb[0].mxu0
    %v1394 = vadd.f32 0.0, %v1393
    %v1395 = vpop.f32.mrb[0].mxu0
    %v1396 = vpop.f32.mrb[0].mxu0
    %1397 = vdwg.mxu0
    %1398 = vmatprep.subr.bf16.mxu0 %v356
    %1399 = vmatpush1.bf16.msra.mxu0 %v355
    %1400 = vmatprep.subr.bf16.mxu0 %v360
    %1401 = vmatpush1.bf16.msra.mxu0 %v359
    %1402 = vmatprep.subr.bf16.mxu0 %v364
    %1403 = vmatpush1.bf16.msra.mxu0 %v363
    %1404 = vmatprep.subr.bf16.mxu0 %v368
    %1405 = vmatpush1.bf16.msra.mxu0 %v367
    %1406 = vmatprep.subr.bf16.mxu0 %v372
    %1407 = vmatpush1.bf16.msra.mxu0 %v371
    %1408 = vmatprep.subr.bf16.mxu0 %v376
    %1409 = vmatpush1.bf16.msra.mxu0 %v375
    %1410 = vmatprep.subr.bf16.mxu0 %v380
    %1411 = vmatpush1.bf16.msra.mxu0 %v379
    %1412 = vmatprep.subr.bf16.mxu0 %v384
    %1413 = vmatpush1.bf16.msra.mxu0 %v383
    %1414 = vmatprep.subr.bf16.mxu0 0
    %1415 = vmatpush1.bf16.msra.mxu0 0
    %1416 = vmatprep.subr.bf16.mxu0 0
    %1417 = vmatpush1.bf16.msra.mxu0 0
    %1418 = vmatprep.subr.bf16.mxu0 0
    %1419 = vmatpush1.bf16.msra.mxu0 0
    %1420 = vmatprep.subr.bf16.mxu0 0
    %1421 = vmatpush1.bf16.msra.mxu0 0
    %1422 = vmatprep.subr.bf16.mxu0 0
    %1423 = vmatpush1.bf16.msra.mxu0 0
    %1424 = vmatprep.subr.bf16.mxu0 0
    %1425 = vmatpush1.bf16.msra.mxu0 0
    %1426 = vmatprep.subr.bf16.mxu0 0
    %1427 = vmatpush1.bf16.msra.mxu0 0
    %1428 = vmatprep.subr.bf16.mxu0 0
    %1429 = vmatpush1.bf16.msra.mxu0 0
    %1430 = vmatprep.mubr.bf16.mxu0 0
    %1431 = vmatmul.mubr.bf16.gmra.mrb[0].mxu0 %v1355
    %v1432 = vpop.f32.mrb[0].mxu0
    %v1433 = vadd.f32 0.0, %v1432
    %v1434 = vpop.f32.mrb[0].mxu0
    %v1435 = vadd.f32 0.0, %v1434
    %v1436 = vpop.f32.mrb[0].mxu0
    %v1437 = vpop.f32.mrb[0].mxu0
    %1438 = vdwg.mxu0
    %v1443 = vrot.slane %v1392, 4
    %v1444 = vrot.slane %v1394, 4
    %v1445 = vrot.slane %v1433, 4
    %v1446 = vrot.slane %v1435, 4
    %v1451 = vadd.f32 %v214, %v1443
    %v1452 = vadd.f32 %v216, %v1444
    %v1453 = vadd.f32 %v285, %v1445
    %v1454 = vadd.f32 %v287, %v1446
    %v1455 = vxor.u32 %v1451, 2147483648
    %v1456 = vmul.f32 %v1455, 1.442695
    %v1457 = vpow.pop %v1456
    %v1458 = vadd.f32 %v1457, 1.0
    %v1459 = vrcp.pop %v1458
    %v1460 = vmul.f32 1.0, %v1459
    %v1461 = vxor.u32 %v1452, 2147483648
    %v1462 = vmul.f32 %v1461, 1.442695
    %v1463 = vpow.pop %v1462
    %v1464 = vadd.f32 %v1463, 1.0
    %v1465 = vrcp.pop %v1464
    %v1466 = vmul.f32 1.0, %v1465
    %v1467 = vtanh.pop %v1453
    %v1468 = vxor.u32 %v1454, 2147483648
    %v1469 = vmul.f32 %v1468, 1.442695
    %v1470 = vpow.pop %v1469
    %v1471 = vadd.f32 %v1470, 1.0
    %v1472 = vrcp.pop %v1471
    %v1473 = vmul.f32 1.0, %v1472
    %v1475 = vrot.slane %v1238, 7
    %v1477 = vmul.f32 %v1466, %v1475
    %v1478 = vmul.f32 %v1460, %v1467
    %v1479 = vadd.f32 %v1477, %v1478
    %v1480 = vtanh.pop %v1479
    %v1481 = vmul.f32 %v1473, %v1480
    %vm1482 = vcmask 1044484
    %v1483 = vsel %vm1482, %v1481, 0.0
    %1484 = vadd.xlane.f32.xlu0 %v1483
    %v1485 = vpop.xlane.xlu0 %1484
    %v1486 = vmul.f32 %v1485, 0.015625
    %v1487 = vsub.f32 %v1481, %v1486
    %v1488 = vsel %vm406, %v1487, 0.0
    %v1489 = vmul.f32 %v1488, %v1488
    %v1490 = vsel %vm1482, %v1489, 0.0
    %1491 = vadd.xlane.f32.xlu0 %v1490
    %v1492 = vpop.xlane.xlu0 %1491
    %v1493 = vmul.f32 %v1492, 0.015625
    %v1494 = vadd.f32 %v1493, 1e-05
    %v1495 = vrsqrt.pop %v1494
    %v1496 = vmul.f32 %v1488, %v1495
    %v1497 = vmul.f32 %v1496, %v769
    %v1498 = vadd.f32 %v1497, %v776
    %v1500 = vrot.slane %v1498, 4
    %1502 = vmatprep.subr.mxu0 0.0
    %1503 = vmatpush1.msra.mxu0 %v387
    %1504 = vmatprep.subr.mxu0 0.0
    %1505 = vmatpush1.msra.mxu0 %v388
    %1506 = vmatprep.subr.mxu0 0.0
    %1507 = vmatpush1.msra.mxu0 %v389
    %1508 = vmatprep.subr.mxu0 0.0
    %1509 = vmatpush1.msra.mxu0 %v390
    %1510 = vmatprep.subr.mxu0 0.0
    %1511 = vmatpush1.msra.mxu0 %v391
    %1512 = vmatprep.subr.mxu0 0.0
    %1513 = vmatpush1.msra.mxu0 %v392
    %1514 = vmatprep.subr.mxu0 0.0
    %1515 = vmatpush1.msra.mxu0 %v393
    %1516 = vmatprep.subr.mxu0 0.0
    %1517 = vmatpush1.msra.mxu0 %v394
    %1518 = vmatprep.subr.mxu0 0.0
    %1519 = vmatpush1.msra.mxu0 %v395
    %1520 = vmatprep.subr.mxu0 0.0
    %1521 = vmatpush1.msra.mxu0 %v396
    %1522 = vmatprep.subr.mxu0 0.0
    %1523 = vmatpush1.msra.mxu0 %v397
    %1524 = vmatprep.subr.mxu0 0.0
    %1525 = vmatpush1.msra.mxu0 %v398
    %1526 = vmatprep.subr.mxu0 0.0
    %1527 = vmatpush1.msra.mxu0 %v399
    %1528 = vmatprep.subr.mxu0 0.0
    %1529 = vmatpush1.msra.mxu0 %v400
    %1530 = vmatprep.subr.mxu0 0.0
    %1531 = vmatpush1.msra.mxu0 %v401
    %1532 = vmatprep.subr.mxu0 0.0
    %1533 = vmatpush1.msra.mxu0 %v402
    %1534 = vmatprep.subr.mxu0 0.0
    %1535 = vmatpush1.msra.mxu0 0.0
    %1536 = vmatprep.subr.mxu0 0.0
    %1537 = vmatpush1.msra.mxu0 0.0
    %1538 = vmatprep.subr.mxu0 0.0
    %1539 = vmatpush1.msra.mxu0 0.0
    %1540 = vmatprep.subr.mxu0 0.0
    %1541 = vmatpush1.msra.mxu0 0.0
    %1542 = vmatprep.subr.mxu0 0.0
    %1543 = vmatpush1.msra.mxu0 0.0
    %1544 = vmatprep.subr.mxu0 0.0
    %1545 = vmatpush1.msra.mxu0 0.0
    %1546 = vmatprep.subr.mxu0 0.0
    %1547 = vmatpush1.msra.mxu0 0.0
    %1548 = vmatprep.subr.mxu0 0.0
    %1549 = vmatpush1.msra.mxu0 0.0
    %1550 = vmatprep.subr.mxu0 0.0
    %1551 = vmatpush1.msra.mxu0 0.0
    %1552 = vmatprep.subr.mxu0 0.0
    %1553 = vmatpush1.msra.mxu0 0.0
    %1554 = vmatprep.subr.mxu0 0.0
    %1555 = vmatpush1.msra.mxu0 0.0
    %1556 = vmatprep.subr.mxu0 0.0
    %1557 = vmatpush1.msra.mxu0 0.0
    %1558 = vmatprep.subr.mxu0 0.0
    %1559 = vmatpush1.msra.mxu0 0.0
    %1560 = vmatprep.subr.mxu0 0.0
    %1561 = vmatpush1.msra.mxu0 0.0
    %1562 = vmatprep.subr.mxu0 0.0
    %1563 = vmatpush1.msra.mxu0 0.0
    %1564 = vmatprep.subr.mxu0 0.0
    %1565 = vmatpush1.msra.mxu0 0.0
    %1566 = vmatprep.mubr.f32.mxu0 0.0
    %1567 = vmatmul.mubr.f32.gmra.mrb[0].mxu0 %v1500
    %v1568 = vpop.f32.mrb[0].mxu0
    %v1569 = vadd.f32 %v403, %v1568
    %v1570 = vpop.f32.mrb[0].mxu0
    %1571 = vdwg.mxu0
    %v1572 = vmax.f32 %v1569, 0.0
    %v1573 = vsub.f32 0.0, %v1569
    %vm1574 = vcmp.ne.f32.partialorder %v1573, %v1573
    %v1575 = vadd.f32 %v1569, 0.0
    %v1576 = vand.u32 2147483647, %v1573
    %v1577 = vsub.f32 0.0, %v1576
    %v1578 = vmul.f32 %v1577, 1.442695
    %v1579 = vpow.pop %v1578
    %v1580 = vadd.f32 %v1579, 1.0
    %v1581 = vlog2.pop %v1580
    %v1582 = vmul.f32 %v1581, 0.6931472
    %v1583 = vmul.f32 -0.5, %v1579
    %v1584 = vadd.f32 %v1583, 1.0
    %v1585 = vmul.f32 %v1584, %v1579
    %v1586 = vand.u32 2147483647, %v1579
    %vm1587 = vcmp.lt.f32.partialorder %v1586, 0.0004427343
    %v1588 = vsel %vm1587, %v1585, %v1582
    %v1589 = vadd.f32 %v1572, %v1588
    %v1590 = vsel %vm1574, %v1575, %v1589
    %1591 = vst [vmem:[#allocation11 + $0x4] sm:$0x1] %v1590
    %v1592 = vpack.c.bf16 %v1481, %v1481
    %v1594 = vrot.slane %v1592, 2
    %1596 = vmatprep.subr.bf16.mxu0 %v354
    %1597 = vmatpush1.bf16.msra.mxu0 %v353
    %1598 = vmatprep.subr.bf16.mxu0 %v358
    %1599 = vmatpush1.bf16.msra.mxu0 %v357
    %1600 = vmatprep.subr.bf16.mxu0 %v362
    %1601 = vmatpush1.bf16.msra.mxu0 %v361
    %1602 = vmatprep.subr.bf16.mxu0 %v366
    %1603 = vmatpush1.bf16.msra.mxu0 %v365
    %1604 = vmatprep.subr.bf16.mxu0 %v370
    %1605 = vmatpush1.bf16.msra.mxu0 %v369
    %1606 = vmatprep.subr.bf16.mxu0 %v374
    %1607 = vmatpush1.bf16.msra.mxu0 %v373
    %1608 = vmatprep.subr.bf16.mxu0 %v378
    %1609 = vmatpush1.bf16.msra.mxu0 %v377
    %1610 = vmatprep.subr.bf16.mxu0 %v382
    %1611 = vmatpush1.bf16.msra.mxu0 %v381
    %1612 = vmatprep.subr.bf16.mxu0 0
    %1613 = vmatpush1.bf16.msra.mxu0 0
    %1614 = vmatprep.subr.bf16.mxu0 0
    %1615 = vmatpush1.bf16.msra.mxu0 0
    %1616 = vmatprep.subr.bf16.mxu0 0
    %1617 = vmatpush1.bf16.msra.mxu0 0
    %1618 = vmatprep.subr.bf16.mxu0 0
    %1619 = vmatpush1.bf16.msra.mxu0 0
    %1620 = vmatprep.subr.bf16.mxu0 0
    %1621 = vmatpush1.bf16.msra.mxu0 0
    %1622 = vmatprep.subr.bf16.mxu0 0
    %1623 = vmatpush1.bf16.msra.mxu0 0
    %1624 = vmatprep.subr.bf16.mxu0 0
    %1625 = vmatpush1.bf16.msra.mxu0 0
    %1626 = vmatprep.subr.bf16.mxu0 0
    %1627 = vmatpush1.bf16.msra.mxu0 0
    %1628 = vmatprep.mubr.bf16.mxu0 0
    %1629 = vmatmul.mubr.bf16.gmra.mrb[0].mxu0 %v1594
    %v1630 = vpop.f32.mrb[0].mxu0
    %v1631 = vadd.f32 0.0, %v1630
    %v1632 = vpop.f32.mrb[0].mxu0
    %v1633 = vadd.f32 0.0, %v1632
    %v1634 = vpop.f32.mrb[0].mxu0
    %v1635 = vpop.f32.mrb[0].mxu0
    %1636 = vdwg.mxu0
    %1637 = vmatprep.subr.bf16.mxu0 %v356
    %1638 = vmatpush1.bf16.msra.mxu0 %v355
    %1639 = vmatprep.subr.bf16.mxu0 %v360
    %1640 = vmatpush1.bf16.msra.mxu0 %v359
    %1641 = vmatprep.subr.bf16.mxu0 %v364
    %1642 = vmatpush1.bf16.msra.mxu0 %v363
    %1643 = vmatprep.subr.bf16.mxu0 %v368
    %1644 = vmatpush1.bf16.msra.mxu0 %v367
    %1645 = vmatprep.subr.bf16.mxu0 %v372
    %1646 = vmatpush1.bf16.msra.mxu0 %v371
    %1647 = vmatprep.subr.bf16.mxu0 %v376
    %1648 = vmatpush1.bf16.msra.mxu0 %v375
    %1649 = vmatprep.subr.bf16.mxu0 %v380
    %1650 = vmatpush1.bf16.msra.mxu0 %v379
    %1651 = vmatprep.subr.bf16.mxu0 %v384
    %1652 = vmatpush1.bf16.msra.mxu0 %v383
    %1653 = vmatprep.subr.bf16.mxu0 0
    %1654 = vmatpush1.bf16.msra.mxu0 0
    %1655 = vmatprep.subr.bf16.mxu0 0
    %1656 = vmatpush1.bf16.msra.mxu0 0
    %1657 = vmatprep.subr.bf16.mxu0 0
    %1658 = vmatpush1.bf16.msra.mxu0 0
    %1659 = vmatprep.subr.bf16.mxu0 0
    %1660 = vmatpush1.bf16.msra.mxu0 0
    %1661 = vmatprep.subr.bf16.mxu0 0
    %1662 = vmatpush1.bf16.msra.mxu0 0
    %1663 = vmatprep.subr.bf16.mxu0 0
    %1664 = vmatpush1.bf16.msra.mxu0 0
    %1665 = vmatprep.subr.bf16.mxu0 0
    %1666 = vmatpush1.bf16.msra.mxu0 0
    %1667 = vmatprep.subr.bf16.mxu0 0
    %1668 = vmatpush1.bf16.msra.mxu0 0
    %1669 = vmatprep.mubr.bf16.mxu0 0
    %1670 = vmatmul.mubr.bf16.gmra.mrb[0].mxu0 %v1594
    %v1671 = vpop.f32.mrb[0].mxu0
    %v1672 = vadd.f32 0.0, %v1671
    %v1673 = vpop.f32.mrb[0].mxu0
    %v1674 = vadd.f32 0.0, %v1673
    %v1675 = vpop.f32.mrb[0].mxu0
    %v1676 = vpop.f32.mrb[0].mxu0
    %1677 = vdwg.mxu0
    %v1682 = vrot.slane %v1631, 3
    %v1683 = vrot.slane %v1633, 3
    %v1684 = vrot.slane %v1672, 3
    %v1685 = vrot.slane %v1674, 3
    %v1690 = vadd.f32 %v214, %v1682
    %v1691 = vadd.f32 %v216, %v1683
    %v1692 = vadd.f32 %v285, %v1684
    %v1693 = vadd.f32 %v287, %v1685
    %v1694 = vxor.u32 %v1690, 2147483648
    %v1695 = vmul.f32 %v1694, 1.442695
    %v1696 = vpow.pop %v1695
    %v1697 = vadd.f32 %v1696, 1.0
    %v1698 = vrcp.pop %v1697
    %v1699 = vmul.f32 1.0, %v1698
    %v1700 = vxor.u32 %v1691, 2147483648
    %v1701 = vmul.f32 %v1700, 1.442695
    %v1702 = vpow.pop %v1701
    %v1703 = vadd.f32 %v1702, 1.0
    %v1704 = vrcp.pop %v1703
    %v1705 = vmul.f32 1.0, %v1704
    %v1706 = vtanh.pop %v1692
    %v1707 = vxor.u32 %v1693, 2147483648
    %v1708 = vmul.f32 %v1707, 1.442695
    %v1709 = vpow.pop %v1708
    %v1710 = vadd.f32 %v1709, 1.0
    %v1711 = vrcp.pop %v1710
    %v1712 = vmul.f32 1.0, %v1711
    %v1714 = vrot.slane %v1479, 7
    %v1716 = vmul.f32 %v1705, %v1714
    %v1717 = vmul.f32 %v1699, %v1706
    %v1718 = vadd.f32 %v1716, %v1717
    %v1719 = vtanh.pop %v1718
    %v1720 = vmul.f32 %v1712, %v1719
    %vm1721 = vcmask 1045509
    %v1722 = vsel %vm1721, %v1720, 0.0
    %1723 = vadd.xlane.f32.xlu0 %v1722
    %v1724 = vpop.xlane.xlu0 %1723
    %v1725 = vmul.f32 %v1724, 0.015625
    %v1726 = vsub.f32 %v1720, %v1725
    %v1727 = vsel %vm406, %v1726, 0.0
    %v1728 = vmul.f32 %v1727, %v1727
    %v1729 = vsel %vm1721, %v1728, 0.0
    %1730 = vadd.xlane.f32.xlu0 %v1729
    %v1731 = vpop.xlane.xlu0 %1730
    %v1732 = vmul.f32 %v1731, 0.015625
    %v1733 = vadd.f32 %v1732, 1e-05
    %v1734 = vrsqrt.pop %v1733
    %v1735 = vmul.f32 %v1727, %v1734
    %v1736 = vmul.f32 %v1735, %v769
    %v1737 = vadd.f32 %v1736, %v776
    %v1739 = vrot.slane %v1737, 5
    %1741 = vmatprep.subr.mxu0 0.0
    %1742 = vmatpush1.msra.mxu0 %v387
    %1743 = vmatprep.subr.mxu0 0.0
    %1744 = vmatpush1.msra.mxu0 %v388
    %1745 = vmatprep.subr.mxu0 0.0
    %1746 = vmatpush1.msra.mxu0 %v389
    %1747 = vmatprep.subr.mxu0 0.0
    %1748 = vmatpush1.msra.mxu0 %v390
    %1749 = vmatprep.subr.mxu0 0.0
    %1750 = vmatpush1.msra.mxu0 %v391
    %1751 = vmatprep.subr.mxu0 0.0
    %1752 = vmatpush1.msra.mxu0 %v392
    %1753 = vmatprep.subr.mxu0 0.0
    %1754 = vmatpush1.msra.mxu0 %v393
    %1755 = vmatprep.subr.mxu0 0.0
    %1756 = vmatpush1.msra.mxu0 %v394
    %1757 = vmatprep.subr.mxu0 0.0
    %1758 = vmatpush1.msra.mxu0 %v395
    %1759 = vmatprep.subr.mxu0 0.0
    %1760 = vmatpush1.msra.mxu0 %v396
    %1761 = vmatprep.subr.mxu0 0.0
    %1762 = vmatpush1.msra.mxu0 %v397
    %1763 = vmatprep.subr.mxu0 0.0
    %1764 = vmatpush1.msra.mxu0 %v398
    %1765 = vmatprep.subr.mxu0 0.0
    %1766 = vmatpush1.msra.mxu0 %v399
    %1767 = vmatprep.subr.mxu0 0.0
    %1768 = vmatpush1.msra.mxu0 %v400
    %1769 = vmatprep.subr.mxu0 0.0
    %1770 = vmatpush1.msra.mxu0 %v401
    %1771 = vmatprep.subr.mxu0 0.0
    %1772 = vmatpush1.msra.mxu0 %v402
    %1773 = vmatprep.subr.mxu0 0.0
    %1774 = vmatpush1.msra.mxu0 0.0
    %1775 = vmatprep.subr.mxu0 0.0
    %1776 = vmatpush1.msra.mxu0 0.0
    %1777 = vmatprep.subr.mxu0 0.0
    %1778 = vmatpush1.msra.mxu0 0.0
    %1779 = vmatprep.subr.mxu0 0.0
    %1780 = vmatpush1.msra.mxu0 0.0
    %1781 = vmatprep.subr.mxu0 0.0
    %1782 = vmatpush1.msra.mxu0 0.0
    %1783 = vmatprep.subr.mxu0 0.0
    %1784 = vmatpush1.msra.mxu0 0.0
    %1785 = vmatprep.subr.mxu0 0.0
    %1786 = vmatpush1.msra.mxu0 0.0
    %1787 = vmatprep.subr.mxu0 0.0
    %1788 = vmatpush1.msra.mxu0 0.0
    %1789 = vmatprep.subr.mxu0 0.0
    %1790 = vmatpush1.msra.mxu0 0.0
    %1791 = vmatprep.subr.mxu0 0.0
    %1792 = vmatpush1.msra.mxu0 0.0
    %1793 = vmatprep.subr.mxu0 0.0
    %1794 = vmatpush1.msra.mxu0 0.0
    %1795 = vmatprep.subr.mxu0 0.0
    %1796 = vmatpush1.msra.mxu0 0.0
    %1797 = vmatprep.subr.mxu0 0.0
    %1798 = vmatpush1.msra.mxu0 0.0
    %1799 = vmatprep.subr.mxu0 0.0
    %1800 = vmatpush1.msra.mxu0 0.0
    %1801 = vmatprep.subr.mxu0 0.0
    %1802 = vmatpush1.msra.mxu0 0.0
    %1803 = vmatprep.subr.mxu0 0.0
    %1804 = vmatpush1.msra.mxu0 0.0
    %1805 = vmatprep.mubr.f32.mxu0 0.0
    %1806 = vmatmul.mubr.f32.gmra.mrb[0].mxu0 %v1739
    %v1807 = vpop.f32.mrb[0].mxu0
    %v1808 = vadd.f32 %v403, %v1807
    %v1809 = vpop.f32.mrb[0].mxu0
    %1810 = vdwg.mxu0
    %v1811 = vmax.f32 %v1808, 0.0
    %v1812 = vsub.f32 0.0, %v1808
    %vm1813 = vcmp.ne.f32.partialorder %v1812, %v1812
    %v1814 = vadd.f32 %v1808, 0.0
    %v1815 = vand.u32 2147483647, %v1812
    %v1816 = vsub.f32 0.0, %v1815
    %v1817 = vmul.f32 %v1816, 1.442695
    %v1818 = vpow.pop %v1817
    %v1819 = vadd.f32 %v1818, 1.0
    %v1820 = vlog2.pop %v1819
    %v1821 = vmul.f32 %v1820, 0.6931472
    %v1822 = vmul.f32 -0.5, %v1818
    %v1823 = vadd.f32 %v1822, 1.0
    %v1824 = vmul.f32 %v1823, %v1818
    %v1825 = vand.u32 2147483647, %v1818
    %vm1826 = vcmp.lt.f32.partialorder %v1825, 0.0004427343
    %v1827 = vsel %vm1826, %v1824, %v1821
    %v1828 = vadd.f32 %v1811, %v1827
    %v1829 = vsel %vm1813, %v1814, %v1828
    %1830 = vst [vmem:[#allocation11 + $0x5] sm:$0x1] %v1829
    %v1831 = vpack.c.bf16 %v1720, %v1720
    %v1833 = vshrl.u32 %v1831, 16
    %v1835 = vrot.slane %v1833, 2
    %1837 = vmatprep.subr.bf16.mxu0 %v354
    %1838 = vmatpush1.bf16.msra.mxu0 %v353
    %1839 = vmatprep.subr.bf16.mxu0 %v358
    %1840 = vmatpush1.bf16.msra.mxu0 %v357
    %1841 = vmatprep.subr.bf16.mxu0 %v362
    %1842 = vmatpush1.bf16.msra.mxu0 %v361
    %1843 = vmatprep.subr.bf16.mxu0 %v366
    %1844 = vmatpush1.bf16.msra.mxu0 %v365
    %1845 = vmatprep.subr.bf16.mxu0 %v370
    %1846 = vmatpush1.bf16.msra.mxu0 %v369
    %1847 = vmatprep.subr.bf16.mxu0 %v374
    %1848 = vmatpush1.bf16.msra.mxu0 %v373
    %1849 = vmatprep.subr.bf16.mxu0 %v378
    %1850 = vmatpush1.bf16.msra.mxu0 %v377
    %1851 = vmatprep.subr.bf16.mxu0 %v382
    %1852 = vmatpush1.bf16.msra.mxu0 %v381
    %1853 = vmatprep.subr.bf16.mxu0 0
    %1854 = vmatpush1.bf16.msra.mxu0 0
    %1855 = vmatprep.subr.bf16.mxu0 0
    %1856 = vmatpush1.bf16.msra.mxu0 0
    %1857 = vmatprep.subr.bf16.mxu0 0
    %1858 = vmatpush1.bf16.msra.mxu0 0
    %1859 = vmatprep.subr.bf16.mxu0 0
    %1860 = vmatpush1.bf16.msra.mxu0 0
    %1861 = vmatprep.subr.bf16.mxu0 0
    %1862 = vmatpush1.bf16.msra.mxu0 0
    %1863 = vmatprep.subr.bf16.mxu0 0
    %1864 = vmatpush1.bf16.msra.mxu0 0
    %1865 = vmatprep.subr.bf16.mxu0 0
    %1866 = vmatpush1.bf16.msra.mxu0 0
    %1867 = vmatprep.subr.bf16.mxu0 0
    %1868 = vmatpush1.bf16.msra.mxu0 0
    %1869 = vmatprep.mubr.bf16.mxu0 0
    %1870 = vmatmul.mubr.bf16.gmra.mrb[0].mxu0 %v1835
    %v1871 = vpop.f32.mrb[0].mxu0
    %v1872 = vadd.f32 0.0, %v1871
    %v1873 = vpop.f32.mrb[0].mxu0
    %v1874 = vadd.f32 0.0, %v1873
    %v1875 = vpop.f32.mrb[0].mxu0
    %v1876 = vpop.f32.mrb[0].mxu0
    %1877 = vdwg.mxu0
    %1878 = vmatprep.subr.bf16.mxu0 %v356
    %1879 = vmatpush1.bf16.msra.mxu0 %v355
    %1880 = vmatprep.subr.bf16.mxu0 %v360
    %1881 = vmatpush1.bf16.msra.mxu0 %v359
    %1882 = vmatprep.subr.bf16.mxu0 %v364
    %1883 = vmatpush1.bf16.msra.mxu0 %v363
    %1884 = vmatprep.subr.bf16.mxu0 %v368
    %1885 = vmatpush1.bf16.msra.mxu0 %v367
    %1886 = vmatprep.subr.bf16.mxu0 %v372
    %1887 = vmatpush1.bf16.msra.mxu0 %v371
    %1888 = vmatprep.subr.bf16.mxu0 %v376
    %1889 = vmatpush1.bf16.msra.mxu0 %v375
    %1890 = vmatprep.subr.bf16.mxu0 %v380
    %1891 = vmatpush1.bf16.msra.mxu0 %v379
    %1892 = vmatprep.subr.bf16.mxu0 %v384
    %1893 = vmatpush1.bf16.msra.mxu0 %v383
    %1894 = vmatprep.subr.bf16.mxu0 0
    %1895 = vmatpush1.bf16.msra.mxu0 0
    %1896 = vmatprep.subr.bf16.mxu0 0
    %1897 = vmatpush1.bf16.msra.mxu0 0
    %1898 = vmatprep.subr.bf16.mxu0 0
    %1899 = vmatpush1.bf16.msra.mxu0 0
    %1900 = vmatprep.subr.bf16.mxu0 0
    %1901 = vmatpush1.bf16.msra.mxu0 0
    %1902 = vmatprep.subr.bf16.mxu0 0
    %1903 = vmatpush1.bf16.msra.mxu0 0
    %1904 = vmatprep.subr.bf16.mxu0 0
    %1905 = vmatpush1.bf16.msra.mxu0 0
    %1906 = vmatprep.subr.bf16.mxu0 0
    %1907 = vmatpush1.bf16.msra.mxu0 0
    %1908 = vmatprep.subr.bf16.mxu0 0
    %1909 = vmatpush1.bf16.msra.mxu0 0
    %1910 = vmatprep.mubr.bf16.mxu0 0
    %1911 = vmatmul.mubr.bf16.gmra.mrb[0].mxu0 %v1835
    %v1912 = vpop.f32.mrb[0].mxu0
    %v1913 = vadd.f32 0.0, %v1912
    %v1914 = vpop.f32.mrb[0].mxu0
    %v1915 = vadd.f32 0.0, %v1914
    %v1916 = vpop.f32.mrb[0].mxu0
    %v1917 = vpop.f32.mrb[0].mxu0
    %1918 = vdwg.mxu0
    %v1923 = vrot.slane %v1872, 2
    %v1924 = vrot.slane %v1874, 2
    %v1925 = vrot.slane %v1913, 2
    %v1926 = vrot.slane %v1915, 2
    %v1931 = vadd.f32 %v214, %v1923
    %v1932 = vadd.f32 %v216, %v1924
    %v1933 = vadd.f32 %v285, %v1925
    %v1934 = vadd.f32 %v287, %v1926
    %v1935 = vxor.u32 %v1931, 2147483648
    %v1936 = vmul.f32 %v1935, 1.442695
    %v1937 = vpow.pop %v1936
    %v1938 = vadd.f32 %v1937, 1.0
    %v1939 = vrcp.pop %v1938
    %v1940 = vmul.f32 1.0, %v1939
    %v1941 = vxor.u32 %v1932, 2147483648
    %v1942 = vmul.f32 %v1941, 1.442695
    %v1943 = vpow.pop %v1942
    %v1944 = vadd.f32 %v1943, 1.0
    %v1945 = vrcp.pop %v1944
    %v1946 = vmul.f32 1.0, %v1945
    %v1947 = vtanh.pop %v1933
    %v1948 = vxor.u32 %v1934, 2147483648
    %v1949 = vmul.f32 %v1948, 1.442695
    %v1950 = vpow.pop %v1949
    %v1951 = vadd.f32 %v1950, 1.0
    %v1952 = vrcp.pop %v1951
    %v1953 = vmul.f32 1.0, %v1952
    %v1955 = vrot.slane %v1718, 7
    %v1957 = vmul.f32 %v1946, %v1955
    %v1958 = vmul.f32 %v1940, %v1947
    %v1959 = vadd.f32 %v1957, %v1958
    %v1960 = vtanh.pop %v1959
    %v1961 = vmul.f32 %v1953, %v1960
    %vm1962 = vcmask 1046534
    %v1963 = vsel %vm1962, %v1961, 0.0
    %1964 = vadd.xlane.f32.xlu0 %v1963
    %v1965 = vpop.xlane.xlu0 %1964
    %v1966 = vmul.f32 %v1965, 0.015625
    %v1967 = vsub.f32 %v1961, %v1966
    %v1968 = vsel %vm406, %v1967, 0.0
    %v1969 = vmul.f32 %v1968, %v1968
    %v1970 = vsel %vm1962, %v1969, 0.0
    %1971 = vadd.xlane.f32.xlu0 %v1970
    %v1972 = vpop.xlane.xlu0 %1971
    %v1973 = vmul.f32 %v1972, 0.015625
    %v1974 = vadd.f32 %v1973, 1e-05
    %v1975 = vrsqrt.pop %v1974
    %v1976 = vmul.f32 %v1968, %v1975
    %v1977 = vmul.f32 %v1976, %v769
    %v1978 = vadd.f32 %v1977, %v776
    %v1980 = vrot.slane %v1978, 6
    %1982 = vmatprep.subr.mxu0 0.0
    %1983 = vmatpush1.msra.mxu0 %v387
    %1984 = vmatprep.subr.mxu0 0.0
    %1985 = vmatpush1.msra.mxu0 %v388
    %1986 = vmatprep.subr.mxu0 0.0
    %1987 = vmatpush1.msra.mxu0 %v389
    %1988 = vmatprep.subr.mxu0 0.0
    %1989 = vmatpush1.msra.mxu0 %v390
    %1990 = vmatprep.subr.mxu0 0.0
    %1991 = vmatpush1.msra.mxu0 %v391
    %1992 = vmatprep.subr.mxu0 0.0
    %1993 = vmatpush1.msra.mxu0 %v392
    %1994 = vmatprep.subr.mxu0 0.0
    %1995 = vmatpush1.msra.mxu0 %v393
    %1996 = vmatprep.subr.mxu0 0.0
    %1997 = vmatpush1.msra.mxu0 %v394
    %1998 = vmatprep.subr.mxu0 0.0
    %1999 = vmatpush1.msra.mxu0 %v395
    %2000 = vmatprep.subr.mxu0 0.0
    %2001 = vmatpush1.msra.mxu0 %v396
    %2002 = vmatprep.subr.mxu0 0.0
    %2003 = vmatpush1.msra.mxu0 %v397
    %2004 = vmatprep.subr.mxu0 0.0
    %2005 = vmatpush1.msra.mxu0 %v398
    %2006 = vmatprep.subr.mxu0 0.0
    %2007 = vmatpush1.msra.mxu0 %v399
    %2008 = vmatprep.subr.mxu0 0.0
    %2009 = vmatpush1.msra.mxu0 %v400
    %2010 = vmatprep.subr.mxu0 0.0
    %2011 = vmatpush1.msra.mxu0 %v401
    %2012 = vmatprep.subr.mxu0 0.0
    %2013 = vmatpush1.msra.mxu0 %v402
    %2014 = vmatprep.subr.mxu0 0.0
    %2015 = vmatpush1.msra.mxu0 0.0
    %2016 = vmatprep.subr.mxu0 0.0
    %2017 = vmatpush1.msra.mxu0 0.0
    %2018 = vmatprep.subr.mxu0 0.0
    %2019 = vmatpush1.msra.mxu0 0.0
    %2020 = vmatprep.subr.mxu0 0.0
    %2021 = vmatpush1.msra.mxu0 0.0
    %2022 = vmatprep.subr.mxu0 0.0
    %2023 = vmatpush1.msra.mxu0 0.0
    %2024 = vmatprep.subr.mxu0 0.0
    %2025 = vmatpush1.msra.mxu0 0.0
    %2026 = vmatprep.subr.mxu0 0.0
    %2027 = vmatpush1.msra.mxu0 0.0
    %2028 = vmatprep.subr.mxu0 0.0
    %2029 = vmatpush1.msra.mxu0 0.0
    %2030 = vmatprep.subr.mxu0 0.0
    %2031 = vmatpush1.msra.mxu0 0.0
    %2032 = vmatprep.subr.mxu0 0.0
    %2033 = vmatpush1.msra.mxu0 0.0
    %2034 = vmatprep.subr.mxu0 0.0
    %2035 = vmatpush1.msra.mxu0 0.0
    %2036 = vmatprep.subr.mxu0 0.0
    %2037 = vmatpush1.msra.mxu0 0.0
    %2038 = vmatprep.subr.mxu0 0.0
    %2039 = vmatpush1.msra.mxu0 0.0
    %2040 = vmatprep.subr.mxu0 0.0
    %2041 = vmatpush1.msra.mxu0 0.0
    %2042 = vmatprep.subr.mxu0 0.0
    %2043 = vmatpush1.msra.mxu0 0.0
    %2044 = vmatprep.subr.mxu0 0.0
    %2045 = vmatpush1.msra.mxu0 0.0
    %2046 = vmatprep.mubr.f32.mxu0 0.0
    %2047 = vmatmul.mubr.f32.gmra.mrb[0].mxu0 %v1980
    %v2048 = vpop.f32.mrb[0].mxu0
    %v2049 = vadd.f32 %v403, %v2048
    %v2050 = vpop.f32.mrb[0].mxu0
    %2051 = vdwg.mxu0
    %v2052 = vmax.f32 %v2049, 0.0
    %v2053 = vsub.f32 0.0, %v2049
    %vm2054 = vcmp.ne.f32.partialorder %v2053, %v2053
    %v2055 = vadd.f32 %v2049, 0.0
    %v2056 = vand.u32 2147483647, %v2053
    %v2057 = vsub.f32 0.0, %v2056
    %v2058 = vmul.f32 %v2057, 1.442695
    %v2059 = vpow.pop %v2058
    %v2060 = vadd.f32 %v2059, 1.0
    %v2061 = vlog2.pop %v2060
    %v2062 = vmul.f32 %v2061, 0.6931472
    %v2063 = vmul.f32 -0.5, %v2059
    %v2064 = vadd.f32 %v2063, 1.0
    %v2065 = vmul.f32 %v2064, %v2059
    %v2066 = vand.u32 2147483647, %v2059
    %vm2067 = vcmp.lt.f32.partialorder %v2066, 0.0004427343
    %v2068 = vsel %vm2067, %v2065, %v2062
    %v2069 = vadd.f32 %v2052, %v2068
    %v2070 = vsel %vm2054, %v2055, %v2069
    %2071 = vst [vmem:[#allocation11 + $0x6] sm:$0x1] %v2070
    %v2072 = vpack.c.bf16 %v1961, %v1961
    %v2074 = vrot.slane %v2072, 3
    %2076 = vmatprep.subr.bf16.mxu0 %v354
    %2077 = vmatpush1.bf16.msra.mxu0 %v353
    %2078 = vmatprep.subr.bf16.mxu0 %v358
    %2079 = vmatpush1.bf16.msra.mxu0 %v357
    %2080 = vmatprep.subr.bf16.mxu0 %v362
    %2081 = vmatpush1.bf16.msra.mxu0 %v361
    %2082 = vmatprep.subr.bf16.mxu0 %v366
    %2083 = vmatpush1.bf16.msra.mxu0 %v365
    %2084 = vmatprep.subr.bf16.mxu0 %v370
    %2085 = vmatpush1.bf16.msra.mxu0 %v369
    %2086 = vmatprep.subr.bf16.mxu0 %v374
    %2087 = vmatpush1.bf16.msra.mxu0 %v373
    %2088 = vmatprep.subr.bf16.mxu0 %v378
    %2089 = vmatpush1.bf16.msra.mxu0 %v377
    %2090 = vmatprep.subr.bf16.mxu0 %v382
    %2091 = vmatpush1.bf16.msra.mxu0 %v381
    %2092 = vmatprep.subr.bf16.mxu0 0
    %2093 = vmatpush1.bf16.msra.mxu0 0
    %2094 = vmatprep.subr.bf16.mxu0 0
    %2095 = vmatpush1.bf16.msra.mxu0 0
    %2096 = vmatprep.subr.bf16.mxu0 0
    %2097 = vmatpush1.bf16.msra.mxu0 0
    %2098 = vmatprep.subr.bf16.mxu0 0
    %2099 = vmatpush1.bf16.msra.mxu0 0
    %2100 = vmatprep.subr.bf16.mxu0 0
    %2101 = vmatpush1.bf16.msra.mxu0 0
    %2102 = vmatprep.subr.bf16.mxu0 0
    %2103 = vmatpush1.bf16.msra.mxu0 0
    %2104 = vmatprep.subr.bf16.mxu0 0
    %2105 = vmatpush1.bf16.msra.mxu0 0
    %2106 = vmatprep.subr.bf16.mxu0 0
    %2107 = vmatpush1.bf16.msra.mxu0 0
    %2108 = vmatprep.mubr.bf16.mxu0 0
    %2109 = vmatmul.mubr.bf16.gmra.mrb[0].mxu0 %v2074
    %v2110 = vpop.f32.mrb[0].mxu0
    %v2111 = vadd.f32 0.0, %v2110
    %v2112 = vpop.f32.mrb[0].mxu0
    %v2113 = vadd.f32 0.0, %v2112
    %v2114 = vpop.f32.mrb[0].mxu0
    %v2115 = vpop.f32.mrb[0].mxu0
    %2116 = vdwg.mxu0
    %2117 = vmatprep.subr.bf16.mxu0 %v356
    %2118 = vmatpush1.bf16.msra.mxu0 %v355
    %2119 = vmatprep.subr.bf16.mxu0 %v360
    %2120 = vmatpush1.bf16.msra.mxu0 %v359
    %2121 = vmatprep.subr.bf16.mxu0 %v364
    %2122 = vmatpush1.bf16.msra.mxu0 %v363
    %2123 = vmatprep.subr.bf16.mxu0 %v368
    %2124 = vmatpush1.bf16.msra.mxu0 %v367
    %2125 = vmatprep.subr.bf16.mxu0 %v372
    %2126 = vmatpush1.bf16.msra.mxu0 %v371
    %2127 = vmatprep.subr.bf16.mxu0 %v376
    %2128 = vmatpush1.bf16.msra.mxu0 %v375
    %2129 = vmatprep.subr.bf16.mxu0 %v380
    %2130 = vmatpush1.bf16.msra.mxu0 %v379
    %2131 = vmatprep.subr.bf16.mxu0 %v384
    %2132 = vmatpush1.bf16.msra.mxu0 %v383
    %2133 = vmatprep.subr.bf16.mxu0 0
    %2134 = vmatpush1.bf16.msra.mxu0 0
    %2135 = vmatprep.subr.bf16.mxu0 0
    %2136 = vmatpush1.bf16.msra.mxu0 0
    %2137 = vmatprep.subr.bf16.mxu0 0
    %2138 = vmatpush1.bf16.msra.mxu0 0
    %2139 = vmatprep.subr.bf16.mxu0 0
    %2140 = vmatpush1.bf16.msra.mxu0 0
    %2141 = vmatprep.subr.bf16.mxu0 0
    %2142 = vmatpush1.bf16.msra.mxu0 0
    %2143 = vmatprep.subr.bf16.mxu0 0
    %2144 = vmatpush1.bf16.msra.mxu0 0
    %2145 = vmatprep.subr.bf16.mxu0 0
    %2146 = vmatpush1.bf16.msra.mxu0 0
    %2147 = vmatprep.subr.bf16.mxu0 0
    %2148 = vmatpush1.bf16.msra.mxu0 0
    %2149 = vmatprep.mubr.bf16.mxu0 0
    %2150 = vmatmul.mubr.bf16.gmra.mrb[0].mxu0 %v2074
    %v2151 = vpop.f32.mrb[0].mxu0
    %v2152 = vadd.f32 0.0, %v2151
    %v2153 = vpop.f32.mrb[0].mxu0
    %v2154 = vadd.f32 0.0, %v2153
    %v2155 = vpop.f32.mrb[0].mxu0
    %v2156 = vpop.f32.mrb[0].mxu0
    %2157 = vdwg.mxu0
    %v2162 = vrot.slane %v2111, 1
    %v2163 = vrot.slane %v2113, 1
    %v2164 = vrot.slane %v2152, 1
    %v2165 = vrot.slane %v2154, 1
    %v2170 = vadd.f32 %v214, %v2162
    %v2171 = vadd.f32 %v216, %v2163
    %v2172 = vadd.f32 %v285, %v2164
    %v2173 = vadd.f32 %v287, %v2165
    %v2174 = vxor.u32 %v2170, 2147483648
    %v2175 = vmul.f32 %v2174, 1.442695
    %v2176 = vpow.pop %v2175
    %v2177 = vadd.f32 %v2176, 1.0
    %v2178 = vrcp.pop %v2177
    %v2179 = vmul.f32 1.0, %v2178
    %v2180 = vxor.u32 %v2171, 2147483648
    %v2181 = vmul.f32 %v2180, 1.442695
    %v2182 = vpow.pop %v2181
    %v2183 = vadd.f32 %v2182, 1.0
    %v2184 = vrcp.pop %v2183
    %v2185 = vmul.f32 1.0, %v2184
    %v2186 = vtanh.pop %v2172
    %v2187 = vxor.u32 %v2173, 2147483648
    %v2188 = vmul.f32 %v2187, 1.442695
    %v2189 = vpow.pop %v2188
    %v2190 = vadd.f32 %v2189, 1.0
    %v2191 = vrcp.pop %v2190
    %v2192 = vmul.f32 1.0, %v2191
    %v2194 = vrot.slane %v1959, 7
    %v2196 = vmul.f32 %v2185, %v2194
    %v2197 = vmul.f32 %v2179, %v2186
    %v2198 = vadd.f32 %v2196, %v2197
    %v2199 = vtanh.pop %v2198
    %v2200 = vmul.f32 %v2192, %v2199
    %vm2201 = vcmask 1047559
    %v2202 = vsel %vm2201, %v2200, 0.0
    %2203 = vadd.xlane.f32.xlu0 %v2202
    %v2204 = vpop.xlane.xlu0 %2203
    %v2205 = vmul.f32 %v2204, 0.015625
    %v2206 = vsub.f32 %v2200, %v2205
    %v2207 = vsel %vm406, %v2206, 0.0
    %v2208 = vmul.f32 %v2207, %v2207
    %v2209 = vsel %vm2201, %v2208, 0.0
    %2210 = vadd.xlane.f32.xlu0 %v2209
    %v2211 = vpop.xlane.xlu0 %2210
    %v2212 = vmul.f32 %v2211, 0.015625
    %v2213 = vadd.f32 %v2212, 1e-05
    %v2214 = vrsqrt.pop %v2213
    %v2215 = vmul.f32 %v2207, %v2214
    %v2216 = vmul.f32 %v2215, %v769
    %v2217 = vadd.f32 %v2216, %v776
    %v2219 = vrot.slane %v2217, 7
    %2221 = vmatprep.subr.mxu0 0.0
    %2222 = vmatpush1.msra.mxu0 %v387
    %2223 = vmatprep.subr.mxu0 0.0
    %2224 = vmatpush1.msra.mxu0 %v388
    %2225 = vmatprep.subr.mxu0 0.0
    %2226 = vmatpush1.msra.mxu0 %v389
    %2227 = vmatprep.subr.mxu0 0.0
    %2228 = vmatpush1.msra.mxu0 %v390
    %2229 = vmatprep.subr.mxu0 0.0
    %2230 = vmatpush1.msra.mxu0 %v391
    %2231 = vmatprep.subr.mxu0 0.0
    %2232 = vmatpush1.msra.mxu0 %v392
    %2233 = vmatprep.subr.mxu0 0.0
    %2234 = vmatpush1.msra.mxu0 %v393
    %2235 = vmatprep.subr.mxu0 0.0
    %2236 = vmatpush1.msra.mxu0 %v394
    %2237 = vmatprep.subr.mxu0 0.0
    %2238 = vmatpush1.msra.mxu0 %v395
    %2239 = vmatprep.subr.mxu0 0.0
    %2240 = vmatpush1.msra.mxu0 %v396
    %2241 = vmatprep.subr.mxu0 0.0
    %2242 = vmatpush1.msra.mxu0 %v397
    %2243 = vmatprep.subr.mxu0 0.0
    %2244 = vmatpush1.msra.mxu0 %v398
    %2245 = vmatprep.subr.mxu0 0.0
    %2246 = vmatpush1.msra.mxu0 %v399
    %2247 = vmatprep.subr.mxu0 0.0
    %2248 = vmatpush1.msra.mxu0 %v400
    %2249 = vmatprep.subr.mxu0 0.0
    %2250 = vmatpush1.msra.mxu0 %v401
    %2251 = vmatprep.subr.mxu0 0.0
    %2252 = vmatpush1.msra.mxu0 %v402
    %2253 = vmatprep.subr.mxu0 0.0
    %2254 = vmatpush1.msra.mxu0 0.0
    %2255 = vmatprep.subr.mxu0 0.0
    %2256 = vmatpush1.msra.mxu0 0.0
    %2257 = vmatprep.subr.mxu0 0.0
    %2258 = vmatpush1.msra.mxu0 0.0
    %2259 = vmatprep.subr.mxu0 0.0
    %2260 = vmatpush1.msra.mxu0 0.0
    %2261 = vmatprep.subr.mxu0 0.0
    %2262 = vmatpush1.msra.mxu0 0.0
    %2263 = vmatprep.subr.mxu0 0.0
    %2264 = vmatpush1.msra.mxu0 0.0
    %2265 = vmatprep.subr.mxu0 0.0
    %2266 = vmatpush1.msra.mxu0 0.0
    %2267 = vmatprep.subr.mxu0 0.0
    %2268 = vmatpush1.msra.mxu0 0.0
    %2269 = vmatprep.subr.mxu0 0.0
    %2270 = vmatpush1.msra.mxu0 0.0
    %2271 = vmatprep.subr.mxu0 0.0
    %2272 = vmatpush1.msra.mxu0 0.0
    %2273 = vmatprep.subr.mxu0 0.0
    %2274 = vmatpush1.msra.mxu0 0.0
    %2275 = vmatprep.subr.mxu0 0.0
    %2276 = vmatpush1.msra.mxu0 0.0
    %2277 = vmatprep.subr.mxu0 0.0
    %2278 = vmatpush1.msra.mxu0 0.0
    %2279 = vmatprep.subr.mxu0 0.0
    %2280 = vmatpush1.msra.mxu0 0.0
    %2281 = vmatprep.subr.mxu0 0.0
    %2282 = vmatpush1.msra.mxu0 0.0
    %2283 = vmatprep.subr.mxu0 0.0
    %2284 = vmatpush1.msra.mxu0 0.0
    %2285 = vmatprep.mubr.f32.mxu0 0.0
    %2286 = vmatmul.mubr.f32.gmra.mrb[0].mxu0 %v2219
    %v2287 = vpop.f32.mrb[0].mxu0
    %v2288 = vadd.f32 %v403, %v2287
    %v2289 = vpop.f32.mrb[0].mxu0
    %2290 = vdwg.mxu0
    %v2291 = vmax.f32 %v2288, 0.0
    %v2292 = vsub.f32 0.0, %v2288
    %vm2293 = vcmp.ne.f32.partialorder %v2292, %v2292
    %v2294 = vadd.f32 %v2288, 0.0
    %v2295 = vand.u32 2147483647, %v2292
    %v2296 = vsub.f32 0.0, %v2295
    %v2297 = vmul.f32 %v2296, 1.442695
    %v2298 = vpow.pop %v2297
    %v2299 = vadd.f32 %v2298, 1.0
    %v2300 = vlog2.pop %v2299
    %v2301 = vmul.f32 %v2300, 0.6931472
    %v2302 = vmul.f32 -0.5, %v2298
    %v2303 = vadd.f32 %v2302, 1.0
    %v2304 = vmul.f32 %v2303, %v2298
    %v2305 = vand.u32 2147483647, %v2298
    %vm2306 = vcmp.lt.f32.partialorder %v2305, 0.0004427343
    %v2307 = vsel %vm2306, %v2304, %v2301
    %v2308 = vadd.f32 %v2291, %v2307
    %v2309 = vsel %vm2293, %v2294, %v2308
    %2310 = vst [vmem:[#allocation11 + $0x7] sm:$0x1] %v2309
    // Predicated region
    $region54: #{lstm_forward.1} parent=1 // pred_check
      _
    $region55: #{lstm_forward.1} parent=1 // pred_check_branch
      %2312 = sbr.rel (0) target = $region57
    $region56: #{lstm_forward.1} parent=1 // pred_region
      %s2314 = ssub.s32 128, 128
      %2315 = vsyncadd [#allocation4], %s2314
      %s2317 = sshll.u32 [#allocation11], 4
      %s2318 = int_to_ptr.vmem [resolvable:$true] %s2317
      %2320 = dma.vmem_to_hbm [thread:$0]  %s2318, 128, %s8, [#allocation4]
    $region57: #{lstm_forward.1} parent=1 // pred_fallthru
      _
    // Predicated region
    $region58: #{lstm_forward.1} parent=1 // pred_check
      _
    $region59: #{lstm_forward.1} parent=1 // pred_check_branch
      %2322 = sbr.rel (0) target = $region61
    $region60: #{lstm_forward.1} parent=1 // pred_region
      %2323 = dma.done [#allocation4], 128
    $region61: #{lstm_forward.1} parent=1 // pred_fallthru
      _
    %2324 = vsyncpa [#allocation3], 1
    %2325 = vsyncpa [#allocation6], 1
    %2326 = vsyncpa [#allocation9], 1
    %2327 = vsyncpa [#allocation4], 1

</llo_original>
